<compile_context>
chip_gen: v7x
topology: tpu7x:2x2x1
jax: 0.10.0
libtpu: 0.0.40
codegen_flags: <defaults>
</compile_context>

<pallas_src>
import jax
import jax.numpy as jnp
import numpy as np
from jax.experimental import pallas as pl
from jax.experimental.pallas import tpu as pltpu


# ---------------------------------------------------------------------------
# Single fused kernel: all three LSTM passes + heads + fwd_aff in one call.
# ---------------------------------------------------------------------------
def make_twin_kernel(T, B, H, L):
    """Whole Model.forward in one pallas_call.

    The fwd / bwd streams are packed side-by-side along lanes:
        gate-column layout (width 8H): [i_f i_b | f_f f_b | g_f g_b | o_f o_b]
        combined hidden / cell state : (B, 2H) = [fwd | bwd]
    Pass 1 (vis_x) runs the same combined cell (its bwd half is discarded);
    its fwd half seeds both streams of the interleaved pass-2/3 recurrence.
    """
    H2 = 2 * H
    G = 8 * H

    def kernel(*refs):
        it = iter(refs)
        pg1_ref = next(it)                 # (T, B, 8H) pass-1 pre-gates
        pg23_ref = next(it)                # (T, B, 8H) pass-2/3 pre-gates
        h0_ref = next(it)                  # (L, B, H)
        c0_ref = next(it)                  # (L, B, H)
        w0 = next(it)[...]                 # (2H, 8H) layer-0 recurrent (block-diag)
        wl = [next(it)[...] for _ in range(L - 1)]   # (4H, 8H) fused [x|h] weights
        bl = [next(it)[...] for _ in range(L - 1)]   # (1, 8H)
        head_w = next(it)[...]             # (1, 2H)  [fwd | bwd] readout rows
        head_bf = next(it)[...]            # (1, 1)
        head_bb = next(it)[...]            # (1, 1)
        aff_w = next(it)[...]              # (H, H)
        aff_b = next(it)[...]              # (1, H)
        vis_out = next(it)                 # (T*B, 2H) [fwd_vis | bwd_vis] slab
        heads_out = next(it)               # (T*B, 2)  [fwd_out, bwd_out] cols

        # Gate mask, hoisted (JAX does not CSE broadcast_in_dim inside loops).
        lane = jax.lax.broadcasted_iota(jnp.int32, (B, G), 1)
        is_g = jnp.logical_and(lane >= 4 * H, lane < 6 * H)

        def cell(pre, c_prev):
            # Single EUP pass: sigmoid(x) = 0.5 * tanh(0.5 x) + 0.5 -> scale
            # non-g lanes by 0.5, one tanh of the full vreg, VPU fma rebuild.
            t = jnp.tanh(jnp.where(is_g, pre, 0.5 * pre))
            act = jnp.where(is_g, t, 0.5 * t + 0.5)
            i_g = act[:, 0 * H2:1 * H2]
            f_g = act[:, 1 * H2:2 * H2]
            g_g = act[:, 2 * H2:3 * H2]
            o_g = act[:, 3 * H2:4 * H2]
            c_new = f_g * c_prev + i_g * g_g
            h_new = o_g * jnp.tanh(c_new)
            return h_new, c_new

        def run_pass(pg_ref, hs, cs, collect):
            tops = []
            # TODO(synk): for large T switch to lax.fori_loop / a time grid
            # axis with h/c in VMEM scratch; full unroll is fine at T=8.
            for t in range(T):
                pre0 = pg_ref[t] + jnp.dot(
                    hs[0], w0, preferred_element_type=jnp.float32)
                hs[0], cs[0] = cell(pre0, cs[0])
                x = hs[0]
                for l in range(1, L):
                    lhs = jnp.concatenate([x, hs[l]], axis=1)       # (B, 4H)
                    pre = jnp.dot(lhs, wl[l - 1],
                                  preferred_element_type=jnp.float32) + bl[l - 1]
                    hs[l], cs[l] = cell(pre, cs[l])
                    x = hs[l]
                if collect:
                    tops.append(x)
            return hs, cs, tops

        # -- pass 1: combined cell over vis_x; only the fwd halves matter ----
        hs = [jnp.concatenate([h0_ref[l], h0_ref[l]], axis=1) for l in range(L)]
        cs = [jnp.concatenate([c0_ref[l], c0_ref[l]], axis=1) for l in range(L)]
        hs, cs, _ = run_pass(pg1_ref, hs, cs, collect=False)

        # -- passes 2 & 3: both streams seeded from pass-1 fwd hidden --------
        hs2 = [jnp.concatenate([hs[l][:, :H], hs[l][:, :H]], axis=1)
               for l in range(L)]
        cs2 = [jnp.concatenate([cs[l][:, :H], cs[l][:, :H]], axis=1)
               for l in range(L)]
        _, _, tops = run_pass(pg23_ref, hs2, cs2, collect=True)

        # -- epilogue: lane-dense slab, one batched aff matmul, fused heads --
        slab = jnp.concatenate(tops, axis=0)          # (T*B, 2H), row = t*B+b
        raw_f = slab[:, :H]
        raw_b = slab[:, H:]
        aff = jnp.dot(raw_f, aff_w,
                      preferred_element_type=jnp.float32) + aff_b
        vis_out[...] = jnp.concatenate([aff, raw_b], axis=1)

        log_f = jnp.sum(raw_f * head_w[:, :H], axis=-1, keepdims=True) + head_bf
        log_b = jnp.sum(raw_b * head_w[:, H:], axis=-1, keepdims=True) + head_bb
        heads_out[...] = jax.nn.sigmoid(jnp.concatenate([log_f, log_b], axis=1))

    return kernel


# ---------------------------------------------------------------------------
# Wrapper-side weight packing + model glue (mirrors Model.forward)
# ---------------------------------------------------------------------------
def interleave_gates(a_f, a_b, H):
    """(..., 4H) x (..., 4H) -> (..., 8H) with per-gate [fwd | bwd] columns."""
    parts = []
    for g in range(4):
        parts.append(a_f[..., g * H:(g + 1) * H])
        parts.append(a_b[..., g * H:(g + 1) * H])
    return jnp.concatenate(parts, axis=-1)


def block_gate(w_f, w_b, H):
    """Block-structured two-stream weight: each row block feeds only its own
    stream's gate columns."""
    top = interleave_gates(w_f, jnp.zeros_like(w_f), H)
    bot = interleave_gates(jnp.zeros_like(w_b), w_b, H)
    return jnp.concatenate([top, bot], axis=0)


def select_pregates(x_idx, tbl):
    # Embedding(2, 300) + layer-0 input projection folded into a 2-row table.
    # Token ids are {0, 1} for nn.Embedding(2, .).
    return jnp.where(x_idx[..., None] == 0, tbl[0], tbl[1])


def model_forward_impl(params, vis_x, hid_x_fwd, hid_x_bwd, hidden):
    fwd, bwd = params["fwd_rnn"], params["bwd_rnn"]
    L = len(fwd["w_ih"])
    H = fwd["w_hh"][0].shape[0]
    T, B = vis_x.shape
    embed = params["embed"]

    # 2-row pre-gate tables (embedding + layer-0 input projection + bias).
    tbl_f = embed @ fwd["w_ih"][0] + fwd["b"][0]                    # (2, 4H)
    tbl_b = embed @ bwd["w_ih"][0] + bwd["b"][0]                    # (2, 4H)

    pg1 = interleave_gates(select_pregates(vis_x, tbl_f),
                           select_pregates(vis_x, tbl_b), H)        # (T,B,8H)
    pg23 = interleave_gates(select_pregates(hid_x_fwd, tbl_f),
                            select_pregates(hid_x_bwd, tbl_b), H)   # (T,B,8H)

    # Combined block-diagonal weights (built once outside the kernel).
    w0 = block_gate(fwd["w_hh"][0], bwd["w_hh"][0], H)              # (2H, 8H)
    wl = [jnp.concatenate([block_gate(fwd["w_ih"][l], bwd["w_ih"][l], H),
                           block_gate(fwd["w_hh"][l], bwd["w_hh"][l], H)],
                          axis=0)                                   # (4H, 8H)
          for l in range(1, L)]
    bl = [interleave_gates(fwd["b"][l], bwd["b"][l], H) for l in range(1, L)]

    head_w = jnp.concatenate([params["fwd_out"]["w"].T,
                              params["bwd_out"]["w"].T], axis=1)    # (1, 2H)
    head_bf = params["fwd_out"]["b"]                                # (1, 1)
    head_bb = params["bwd_out"]["b"]                                # (1, 1)
    aff_w = params["fwd_aff"]["w"]                                  # (H, H)
    aff_b = params["fwd_aff"]["b"]                                  # (1, H)

    inputs = [pg1, pg23, hidden[0], hidden[1], w0, *wl, *bl,
              head_w, head_bf, head_bb, aff_w, aff_b]

    vmem = pl.BlockSpec(memory_space=pltpu.MemorySpace.VMEM)
    vis_comb, heads = pl.pallas_call(
        make_twin_kernel(T, B, H, L),
        out_shape=(jax.ShapeDtypeStruct((T * B, 2 * H), jnp.float32),
                   jax.ShapeDtypeStruct((T * B, 2), jnp.float32)),
        in_specs=[vmem] * len(inputs),
        out_specs=(vmem, vmem),
    )(*inputs)

    fwd_out = heads[:, 0].reshape(T, B)
    bwd_out = heads[:, 1].reshape(T, B)
    fwd_vis = vis_comb[:, :H].reshape(T, B, H)
    bwd_vis = vis_comb[:, H:].reshape(T, B, H)
    return fwd_out, bwd_out, fwd_vis, bwd_vis


model_forward = jax.jit(model_forward_impl)


# ---------------------------------------------------------------------------
# Pure-JAX reference (for correctness check)
# ---------------------------------------------------------------------------
def ref_lstm(emb, h0, c0, p):
    L, _, H = h0.shape
    T = emb.shape[0]
    h = [h0[l] for l in range(L)]
    c = [c0[l] for l in range(L)]
    outs = []
    for t in range(T):
        x_in = emb[t]
        for l in range(L):
            g = x_in @ p["w_ih"][l] + h[l] @ p["w_hh"][l] + p["b"][l]
            i_g = jax.nn.sigmoid(g[:, :H])
            f_g = jax.nn.sigmoid(g[:, H:2 * H])
            g_g = jnp.tanh(g[:, 2 * H:3 * H])
            o_g = jax.nn.sigmoid(g[:, 3 * H:4 * H])
            c[l] = f_g * c[l] + i_g * g_g
            h[l] = o_g * jnp.tanh(c[l])
            x_in = h[l]
        outs.append(x_in)
    return jnp.stack(outs, 0), jnp.stack(h, 0), jnp.stack(c, 0)


def ref_run_rnn(params, x_idx, hidden, forward=True):
    T, B = x_idx.shape
    emb = jnp.take(params["embed"], x_idx, axis=0)
    lstm_p = params["fwd_rnn"] if forward else params["bwd_rnn"]
    out, hN, cN = ref_lstm(emb, hidden[0], hidden[1], lstm_p)
    H = out.shape[-1]
    out2d = out.reshape(T * B, H)
    head = params["fwd_out"] if forward else params["bwd_out"]
    out_2d = jax.nn.sigmoid(out2d @ head["w"] + head["b"]).reshape(T, B)
    twin_vis = out
    if forward:
        aff = params["fwd_aff"]
        twin_vis = (out2d @ aff["w"] + aff["b"]).reshape(T, B, H)
    return out_2d, twin_vis, (hN, cN), emb


def ref_forward(params, vis_x, hid_x_fwd, hid_x_bwd, hidden):
    _, _, fwd_hid, _ = ref_run_rnn(params, vis_x, hidden, forward=True)
    fwd_out, fwd_vis, _, _ = ref_run_rnn(params, hid_x_fwd, fwd_hid, forward=True)
    bwd_out, bwd_vis, _, _ = ref_run_rnn(params, hid_x_bwd, fwd_hid, forward=False)
    return fwd_out, bwd_out, fwd_vis, bwd_vis


# ---------------------------------------------------------------------------
# Deterministic parameter construction (matches torch module shapes)
# ---------------------------------------------------------------------------
def init_params(rnn_dim, nlayers, embed_dim=300, seed=0):
    key = jax.random.PRNGKey(seed)

    def nxt():
        nonlocal key
        key, k = jax.random.split(key)
        return k

    def uni(shape, scale=0.1):
        return jax.random.uniform(nxt(), shape, jnp.float32, -scale, scale)

    def lstm_params():
        w_ih, w_hh, b = [], [], []
        for l in range(nlayers):
            in_l = embed_dim if l == 0 else rnn_dim
            # stored pre-transposed: (in, 4H) / (H, 4H); gate order i,f,g,o
            w_ih.append(uni((in_l, 4 * rnn_dim)))
            w_hh.append(uni((rnn_dim, 4 * rnn_dim)))
            b.append(uni((1, 4 * rnn_dim)))  # b_ih + b_hh folded together
        return {"w_ih": w_ih, "w_hh": w_hh, "b": b}

    return {
        "embed": uni((2, embed_dim)),                           # nn.Embedding(2, 300)
        "fwd_rnn": lstm_params(),                               # nn.LSTM(300, H, L)
        "bwd_rnn": lstm_params(),
        "fwd_out": {"w": uni((rnn_dim, 1)), "b": uni((1, 1))},  # Linear(H,1)+Sigmoid
        "bwd_out": {"w": uni((rnn_dim, 1)), "b": uni((1, 1))},
        "fwd_aff": {"w": uni((rnn_dim, rnn_dim)), "b": uni((1, rnn_dim))},
    }


# ---------------------------------------------------------------------------
if __name__ == "__main__":
    rnn_dim, nlayers = 32, 2
    T, B = 8, 2

    params = init_params(rnn_dim, nlayers)

    key = jax.random.PRNGKey(0)
    k1, k2, k3 = jax.random.split(key, 3)
    vis_x = jax.random.randint(k1, (T, B), 0, 2, dtype=jnp.int32)
    hid_x_fwd = jax.random.randint(k2, (T, B), 0, 2, dtype=jnp.int32)
    hid_x_bwd = jax.random.randint(k3, (T, B), 0, 2, dtype=jnp.int32)
    hidden = (
        jnp.zeros((nlayers, B, rnn_dim), jnp.float32),
        jnp.zeros((nlayers, B, rnn_dim), jnp.float32),
    )

    outs = model_forward(params, vis_x, hid_x_fwd, hid_x_bwd, hidden)
    outs = jax.block_until_ready(outs)
    fwd_out, bwd_out, fwd_vis, bwd_vis = outs

    # sanity: shapes match the torch module semantics
    assert fwd_out.shape == (T, B)
    assert bwd_out.shape == (T, B)
    assert fwd_vis.shape == (T, B, rnn_dim)
    assert bwd_vis.shape == (T, B, rnn_dim)

    # numerics vs. pure-JAX reference
    ref = ref_forward(params, vis_x, hid_x_fwd, hid_x_bwd, hidden)
    for got, want in zip(outs, ref):
        np.testing.assert_allclose(np.asarray(got), np.asarray(want),
                                   rtol=2e-3, atol=2e-3)

    print("KERNEL_OK")
</pallas_src>

<mosaic_0001>
module attributes {stable_mosaic.version = 11 : i64} {
  func.func @kernel(%arg0: memref<8x2x256xf32, #tpu.memory_space<vmem>>, %arg1: memref<8x2x256xf32, #tpu.memory_space<vmem>>, %arg2: memref<2x2x32xf32, #tpu.memory_space<vmem>>, %arg3: memref<2x2x32xf32, #tpu.memory_space<vmem>>, %arg4: memref<64x256xf32, #tpu.memory_space<vmem>>, %arg5: memref<128x256xf32, #tpu.memory_space<vmem>>, %arg6: memref<1x256xf32, #tpu.memory_space<vmem>>, %arg7: memref<1x64xf32, #tpu.memory_space<vmem>>, %arg8: memref<1x1xf32, #tpu.memory_space<vmem>>, %arg9: memref<1x1xf32, #tpu.memory_space<vmem>>, %arg10: memref<32x32xf32, #tpu.memory_space<vmem>>, %arg11: memref<1x32xf32, #tpu.memory_space<vmem>>, %arg12: memref<16x64xf32, #tpu.memory_space<vmem>>, %arg13: memref<16x2xf32, #tpu.memory_space<vmem>>) attributes {dimension_semantics = [], scalar_prefetch = 0 : i64, scratch_operands = 0 : i64, tpu.core_type = #tpu.core_type<tc>} {
    %c0 = arith.constant 0 : index
    %c0_0 = arith.constant 0 : index
    %0 = vector.load %arg4[%c0, %c0_0] : memref<64x256xf32, #tpu.memory_space<vmem>>, vector<64x256xf32>
    %c0_1 = arith.constant 0 : index
    %c0_2 = arith.constant 0 : index
    %1 = vector.load %arg5[%c0_1, %c0_2] : memref<128x256xf32, #tpu.memory_space<vmem>>, vector<128x256xf32>
    %c0_3 = arith.constant 0 : index
    %c0_4 = arith.constant 0 : index
    %2 = vector.load %arg6[%c0_3, %c0_4] : memref<1x256xf32, #tpu.memory_space<vmem>>, vector<1x256xf32>
    %c0_5 = arith.constant 0 : index
    %c0_6 = arith.constant 0 : index
    %3 = vector.load %arg7[%c0_5, %c0_6] : memref<1x64xf32, #tpu.memory_space<vmem>>, vector<1x64xf32>
    %c0_7 = arith.constant 0 : index
    %c0_8 = arith.constant 0 : index
    %4 = vector.load %arg8[%c0_7, %c0_8] : memref<1x1xf32, #tpu.memory_space<vmem>>, vector<1x1xf32>
    %c0_9 = arith.constant 0 : index
    %c0_10 = arith.constant 0 : index
    %5 = vector.load %arg9[%c0_9, %c0_10] : memref<1x1xf32, #tpu.memory_space<vmem>>, vector<1x1xf32>
    %c0_11 = arith.constant 0 : index
    %c0_12 = arith.constant 0 : index
    %6 = vector.load %arg10[%c0_11, %c0_12] : memref<32x32xf32, #tpu.memory_space<vmem>>, vector<32x32xf32>
    %c0_13 = arith.constant 0 : index
    %c0_14 = arith.constant 0 : index
    %7 = vector.load %arg11[%c0_13, %c0_14] : memref<1x32xf32, #tpu.memory_space<vmem>>, vector<1x32xf32>
    %8 = tpu.iota {dimensions = array<i32: 1>} : vector<2x256xi32>
    %c128_i32 = arith.constant 128 : i32
    %9 = vector.broadcast %c128_i32 : i32 to vector<2x256xi32>
    %10 = arith.cmpi sge, %8, %9 : vector<2x256xi32>
    %c192_i32 = arith.constant 192 : i32
    %11 = vector.broadcast %c192_i32 : i32 to vector<2x256xi32>
    %12 = arith.cmpi slt, %8, %11 : vector<2x256xi32>
    %13 = arith.andi %10, %12 : vector<2x256xi1>
    %c0_15 = arith.constant 0 : index
    %c0_16 = arith.constant 0 : index
    %c0_17 = arith.constant 0 : index
    %14 = vector.load %arg2[%c0_15, %c0_16, %c0_17] : memref<2x2x32xf32, #tpu.memory_space<vmem>>, vector<1x2x32xf32>
    %15 = vector.shape_cast %14 : vector<1x2x32xf32> to vector<2x32xf32>
    %c0_18 = arith.constant 0 : index
    %c0_19 = arith.constant 0 : index
    %c0_20 = arith.constant 0 : index
    %16 = vector.load %arg2[%c0_18, %c0_19, %c0_20] : memref<2x2x32xf32, #tpu.memory_space<vmem>>, vector<1x2x32xf32>
    %17 = vector.shape_cast %16 : vector<1x2x32xf32> to vector<2x32xf32>
    %18 = tpu.concatenate %15, %17 in 1 : vector<2x32xf32>, vector<2x32xf32> -> vector<2x64xf32>
    %c1 = arith.constant 1 : index
    %c0_21 = arith.constant 0 : index
    %c0_22 = arith.constant 0 : index
    %19 = vector.load %arg2[%c1, %c0_21, %c0_22] : memref<2x2x32xf32, #tpu.memory_space<vmem>>, vector<1x2x32xf32>
    %20 = vector.shape_cast %19 : vector<1x2x32xf32> to vector<2x32xf32>
    %c1_23 = arith.constant 1 : index
    %c0_24 = arith.constant 0 : index
    %c0_25 = arith.constant 0 : index
    %21 = vector.load %arg2[%c1_23, %c0_24, %c0_25] : memref<2x2x32xf32, #tpu.memory_space<vmem>>, vector<1x2x32xf32>
    %22 = vector.shape_cast %21 : vector<1x2x32xf32> to vector<2x32xf32>
    %23 = tpu.concatenate %20, %22 in 1 : vector<2x32xf32>, vector<2x32xf32> -> vector<2x64xf32>
    %c0_26 = arith.constant 0 : index
    %c0_27 = arith.constant 0 : index
    %c0_28 = arith.constant 0 : index
    %24 = vector.load %arg3[%c0_26, %c0_27, %c0_28] : memref<2x2x32xf32, #tpu.memory_space<vmem>>, vector<1x2x32xf32>
    %25 = vector.shape_cast %24 : vector<1x2x32xf32> to vector<2x32xf32>
    %c0_29 = arith.constant 0 : index
    %c0_30 = arith.constant 0 : index
    %c0_31 = arith.constant 0 : index
    %26 = vector.load %arg3[%c0_29, %c0_30, %c0_31] : memref<2x2x32xf32, #tpu.memory_space<vmem>>, vector<1x2x32xf32>
    %27 = vector.shape_cast %26 : vector<1x2x32xf32> to vector<2x32xf32>
    %28 = tpu.concatenate %25, %27 in 1 : vector<2x32xf32>, vector<2x32xf32> -> vector<2x64xf32>
    %c1_32 = arith.constant 1 : index
    %c0_33 = arith.constant 0 : index
    %c0_34 = arith.constant 0 : index
    %29 = vector.load %arg3[%c1_32, %c0_33, %c0_34] : memref<2x2x32xf32, #tpu.memory_space<vmem>>, vector<1x2x32xf32>
    %30 = vector.shape_cast %29 : vector<1x2x32xf32> to vector<2x32xf32>
    %c1_35 = arith.constant 1 : index
    %c0_36 = arith.constant 0 : index
    %c0_37 = arith.constant 0 : index
    %31 = vector.load %arg3[%c1_35, %c0_36, %c0_37] : memref<2x2x32xf32, #tpu.memory_space<vmem>>, vector<1x2x32xf32>
    %32 = vector.shape_cast %31 : vector<1x2x32xf32> to vector<2x32xf32>
    %33 = tpu.concatenate %30, %32 in 1 : vector<2x32xf32>, vector<2x32xf32> -> vector<2x64xf32>
    %c0_38 = arith.constant 0 : index
    %c0_39 = arith.constant 0 : index
    %c0_40 = arith.constant 0 : index
    %34 = vector.load %arg0[%c0_38, %c0_39, %c0_40] : memref<8x2x256xf32, #tpu.memory_space<vmem>>, vector<1x2x256xf32>
    %35 = vector.shape_cast %34 : vector<1x2x256xf32> to vector<2x256xf32>
    %cst = arith.constant dense<0.000000e+00> : vector<2x256xf32>
    %36 = tpu.matmul %18, %0, %cst {dimension_numbers = #tpu.dot_dimension_numbers<[1], [0], [0], [1], [0, 0, 1, 1], [], []>} : vector<2x64xf32>, vector<64x256xf32>, vector<2x256xf32> -> vector<2x256xf32>
    %37 = arith.addf %35, %36 : vector<2x256xf32>
    %cst_41 = arith.constant 5.000000e-01 : f32
    %38 = vector.broadcast %cst_41 : f32 to vector<2x256xf32>
    %39 = arith.mulf %38, %37 : vector<2x256xf32>
    %40 = arith.select %13, %37, %39 : vector<2x256xi1>, vector<2x256xf32>
    %41 = math.tanh %40 : vector<2x256xf32>
    %cst_42 = arith.constant 5.000000e-01 : f32
    %42 = vector.broadcast %cst_42 : f32 to vector<2x256xf32>
    %43 = arith.mulf %42, %41 : vector<2x256xf32>
    %cst_43 = arith.constant 5.000000e-01 : f32
    %44 = vector.broadcast %cst_43 : f32 to vector<2x256xf32>
    %45 = arith.addf %43, %44 : vector<2x256xf32>
    %46 = arith.select %13, %41, %45 : vector<2x256xi1>, vector<2x256xf32>
    %47 = vector.extract_strided_slice %46 {offsets = [0, 0], sizes = [2, 64], strides = [1, 1]} : vector<2x256xf32> to vector<2x64xf32>
    %48 = vector.extract_strided_slice %46 {offsets = [0, 64], sizes = [2, 64], strides = [1, 1]} : vector<2x256xf32> to vector<2x64xf32>
    %49 = vector.extract_strided_slice %46 {offsets = [0, 128], sizes = [2, 64], strides = [1, 1]} : vector<2x256xf32> to vector<2x64xf32>
    %50 = vector.extract_strided_slice %46 {offsets = [0, 192], sizes = [2, 64], strides = [1, 1]} : vector<2x256xf32> to vector<2x64xf32>
    %51 = arith.mulf %48, %28 : vector<2x64xf32>
    %52 = arith.mulf %47, %49 : vector<2x64xf32>
    %53 = arith.addf %51, %52 : vector<2x64xf32>
    %54 = math.tanh %53 : vector<2x64xf32>
    %55 = arith.mulf %50, %54 : vector<2x64xf32>
    %56 = tpu.concatenate %55, %23 in 1 : vector<2x64xf32>, vector<2x64xf32> -> vector<2x128xf32>
    %cst_44 = arith.constant dense<0.000000e+00> : vector<2x256xf32>
    %57 = tpu.matmul %56, %1, %cst_44 {dimension_numbers = #tpu.dot_dimension_numbers<[1], [0], [0], [1], [0, 0, 1, 1], [], []>} : vector<2x128xf32>, vector<128x256xf32>, vector<2x256xf32> -> vector<2x256xf32>
    %58 = vector.broadcast %2 : vector<1x256xf32> to vector<2x256xf32>
    %59 = arith.addf %57, %58 : vector<2x256xf32>
    %cst_45 = arith.constant 5.000000e-01 : f32
    %60 = vector.broadcast %cst_45 : f32 to vector<2x256xf32>
    %61 = arith.mulf %60, %59 : vector<2x256xf32>
    %62 = arith.select %13, %59, %61 : vector<2x256xi1>, vector<2x256xf32>
    %63 = math.tanh %62 : vector<2x256xf32>
    %cst_46 = arith.constant 5.000000e-01 : f32
    %64 = vector.broadcast %cst_46 : f32 to vector<2x256xf32>
    %65 = arith.mulf %64, %63 : vector<2x256xf32>
    %cst_47 = arith.constant 5.000000e-01 : f32
    %66 = vector.broadcast %cst_47 : f32 to vector<2x256xf32>
    %67 = arith.addf %65, %66 : vector<2x256xf32>
    %68 = arith.select %13, %63, %67 : vector<2x256xi1>, vector<2x256xf32>
    %69 = vector.extract_strided_slice %68 {offsets = [0, 0], sizes = [2, 64], strides = [1, 1]} : vector<2x256xf32> to vector<2x64xf32>
    %70 = vector.extract_strided_slice %68 {offsets = [0, 64], sizes = [2, 64], strides = [1, 1]} : vector<2x256xf32> to vector<2x64xf32>
    %71 = vector.extract_strided_slice %68 {offsets = [0, 128], sizes = [2, 64], strides = [1, 1]} : vector<2x256xf32> to vector<2x64xf32>
    %72 = vector.extract_strided_slice %68 {offsets = [0, 192], sizes = [2, 64], strides = [1, 1]} : vector<2x256xf32> to vector<2x64xf32>
    %73 = arith.mulf %70, %33 : vector<2x64xf32>
    %74 = arith.mulf %69, %71 : vector<2x64xf32>
    %75 = arith.addf %73, %74 : vector<2x64xf32>
    %76 = math.tanh %75 : vector<2x64xf32>
    %77 = arith.mulf %72, %76 : vector<2x64xf32>
    %c1_48 = arith.constant 1 : index
    %c0_49 = arith.constant 0 : index
    %c0_50 = arith.constant 0 : index
    %78 = vector.load %arg0[%c1_48, %c0_49, %c0_50] : memref<8x2x256xf32, #tpu.memory_space<vmem>>, vector<1x2x256xf32>
    %79 = vector.shape_cast %78 : vector<1x2x256xf32> to vector<2x256xf32>
    %cst_51 = arith.constant dense<0.000000e+00> : vector<2x256xf32>
    %80 = tpu.matmul %55, %0, %cst_51 {dimension_numbers = #tpu.dot_dimension_numbers<[1], [0], [0], [1], [0, 0, 1, 1], [], []>} : vector<2x64xf32>, vector<64x256xf32>, vector<2x256xf32> -> vector<2x256xf32>
    %81 = arith.addf %79, %80 : vector<2x256xf32>
    %cst_52 = arith.constant 5.000000e-01 : f32
    %82 = vector.broadcast %cst_52 : f32 to vector<2x256xf32>
    %83 = arith.mulf %82, %81 : vector<2x256xf32>
    %84 = arith.select %13, %81, %83 : vector<2x256xi1>, vector<2x256xf32>
    %85 = math.tanh %84 : vector<2x256xf32>
    %cst_53 = arith.constant 5.000000e-01 : f32
    %86 = vector.broadcast %cst_53 : f32 to vector<2x256xf32>
    %87 = arith.mulf %86, %85 : vector<2x256xf32>
    %cst_54 = arith.constant 5.000000e-01 : f32
    %88 = vector.broadcast %cst_54 : f32 to vector<2x256xf32>
    %89 = arith.addf %87, %88 : vector<2x256xf32>
    %90 = arith.select %13, %85, %89 : vector<2x256xi1>, vector<2x256xf32>
    %91 = vector.extract_strided_slice %90 {offsets = [0, 0], sizes = [2, 64], strides = [1, 1]} : vector<2x256xf32> to vector<2x64xf32>
    %92 = vector.extract_strided_slice %90 {offsets = [0, 64], sizes = [2, 64], strides = [1, 1]} : vector<2x256xf32> to vector<2x64xf32>
    %93 = vector.extract_strided_slice %90 {offsets = [0, 128], sizes = [2, 64], strides = [1, 1]} : vector<2x256xf32> to vector<2x64xf32>
    %94 = vector.extract_strided_slice %90 {offsets = [0, 192], sizes = [2, 64], strides = [1, 1]} : vector<2x256xf32> to vector<2x64xf32>
    %95 = arith.mulf %92, %53 : vector<2x64xf32>
    %96 = arith.mulf %91, %93 : vector<2x64xf32>
    %97 = arith.addf %95, %96 : vector<2x64xf32>
    %98 = math.tanh %97 : vector<2x64xf32>
    %99 = arith.mulf %94, %98 : vector<2x64xf32>
    %100 = tpu.concatenate %99, %77 in 1 : vector<2x64xf32>, vector<2x64xf32> -> vector<2x128xf32>
    %cst_55 = arith.constant dense<0.000000e+00> : vector<2x256xf32>
    %101 = tpu.matmul %100, %1, %cst_55 {dimension_numbers = #tpu.dot_dimension_numbers<[1], [0], [0], [1], [0, 0, 1, 1], [], []>} : vector<2x128xf32>, vector<128x256xf32>, vector<2x256xf32> -> vector<2x256xf32>
    %102 = vector.broadcast %2 : vector<1x256xf32> to vector<2x256xf32>
    %103 = arith.addf %101, %102 : vector<2x256xf32>
    %cst_56 = arith.constant 5.000000e-01 : f32
    %104 = vector.broadcast %cst_56 : f32 to vector<2x256xf32>
    %105 = arith.mulf %104, %103 : vector<2x256xf32>
    %106 = arith.select %13, %103, %105 : vector<2x256xi1>, vector<2x256xf32>
    %107 = math.tanh %106 : vector<2x256xf32>
    %cst_57 = arith.constant 5.000000e-01 : f32
    %108 = vector.broadcast %cst_57 : f32 to vector<2x256xf32>
    %109 = arith.mulf %108, %107 : vector<2x256xf32>
    %cst_58 = arith.constant 5.000000e-01 : f32
    %110 = vector.broadcast %cst_58 : f32 to vector<2x256xf32>
    %111 = arith.addf %109, %110 : vector<2x256xf32>
    %112 = arith.select %13, %107, %111 : vector<2x256xi1>, vector<2x256xf32>
    %113 = vector.extract_strided_slice %112 {offsets = [0, 0], sizes = [2, 64], strides = [1, 1]} : vector<2x256xf32> to vector<2x64xf32>
    %114 = vector.extract_strided_slice %112 {offsets = [0, 64], sizes = [2, 64], strides = [1, 1]} : vector<2x256xf32> to vector<2x64xf32>
    %115 = vector.extract_strided_slice %112 {offsets = [0, 128], sizes = [2, 64], strides = [1, 1]} : vector<2x256xf32> to vector<2x64xf32>
    %116 = vector.extract_strided_slice %112 {offsets = [0, 192], sizes = [2, 64], strides = [1, 1]} : vector<2x256xf32> to vector<2x64xf32>
    %117 = arith.mulf %114, %75 : vector<2x64xf32>
    %118 = arith.mulf %113, %115 : vector<2x64xf32>
    %119 = arith.addf %117, %118 : vector<2x64xf32>
    %120 = math.tanh %119 : vector<2x64xf32>
    %121 = arith.mulf %116, %120 : vector<2x64xf32>
    %c2 = arith.constant 2 : index
    %c0_59 = arith.constant 0 : index
    %c0_60 = arith.constant 0 : index
    %122 = vector.load %arg0[%c2, %c0_59, %c0_60] : memref<8x2x256xf32, #tpu.memory_space<vmem>>, vector<1x2x256xf32>
    %123 = vector.shape_cast %122 : vector<1x2x256xf32> to vector<2x256xf32>
    %cst_61 = arith.constant dense<0.000000e+00> : vector<2x256xf32>
    %124 = tpu.matmul %99, %0, %cst_61 {dimension_numbers = #tpu.dot_dimension_numbers<[1], [0], [0], [1], [0, 0, 1, 1], [], []>} : vector<2x64xf32>, vector<64x256xf32>, vector<2x256xf32> -> vector<2x256xf32>
    %125 = arith.addf %123, %124 : vector<2x256xf32>
    %cst_62 = arith.constant 5.000000e-01 : f32
    %126 = vector.broadcast %cst_62 : f32 to vector<2x256xf32>
    %127 = arith.mulf %126, %125 : vector<2x256xf32>
    %128 = arith.select %13, %125, %127 : vector<2x256xi1>, vector<2x256xf32>
    %129 = math.tanh %128 : vector<2x256xf32>
    %cst_63 = arith.constant 5.000000e-01 : f32
    %130 = vector.broadcast %cst_63 : f32 to vector<2x256xf32>
    %131 = arith.mulf %130, %129 : vector<2x256xf32>
    %cst_64 = arith.constant 5.000000e-01 : f32
    %132 = vector.broadcast %cst_64 : f32 to vector<2x256xf32>
    %133 = arith.addf %131, %132 : vector<2x256xf32>
    %134 = arith.select %13, %129, %133 : vector<2x256xi1>, vector<2x256xf32>
    %135 = vector.extract_strided_slice %134 {offsets = [0, 0], sizes = [2, 64], strides = [1, 1]} : vector<2x256xf32> to vector<2x64xf32>
    %136 = vector.extract_strided_slice %134 {offsets = [0, 64], sizes = [2, 64], strides = [1, 1]} : vector<2x256xf32> to vector<2x64xf32>
    %137 = vector.extract_strided_slice %134 {offsets = [0, 128], sizes = [2, 64], strides = [1, 1]} : vector<2x256xf32> to vector<2x64xf32>
    %138 = vector.extract_strided_slice %134 {offsets = [0, 192], sizes = [2, 64], strides = [1, 1]} : vector<2x256xf32> to vector<2x64xf32>
    %139 = arith.mulf %136, %97 : vector<2x64xf32>
    %140 = arith.mulf %135, %137 : vector<2x64xf32>
    %141 = arith.addf %139, %140 : vector<2x64xf32>
    %142 = math.tanh %141 : vector<2x64xf32>
    %143 = arith.mulf %138, %142 : vector<2x64xf32>
    %144 = tpu.concatenate %143, %121 in 1 : vector<2x64xf32>, vector<2x64xf32> -> vector<2x128xf32>
    %cst_65 = arith.constant dense<0.000000e+00> : vector<2x256xf32>
    %145 = tpu.matmul %144, %1, %cst_65 {dimension_numbers = #tpu.dot_dimension_numbers<[1], [0], [0], [1], [0, 0, 1, 1], [], []>} : vector<2x128xf32>, vector<128x256xf32>, vector<2x256xf32> -> vector<2x256xf32>
    %146 = vector.broadcast %2 : vector<1x256xf32> to vector<2x256xf32>
    %147 = arith.addf %145, %146 : vector<2x256xf32>
    %cst_66 = arith.constant 5.000000e-01 : f32
    %148 = vector.broadcast %cst_66 : f32 to vector<2x256xf32>
    %149 = arith.mulf %148, %147 : vector<2x256xf32>
    %150 = arith.select %13, %147, %149 : vector<2x256xi1>, vector<2x256xf32>
    %151 = math.tanh %150 : vector<2x256xf32>
    %cst_67 = arith.constant 5.000000e-01 : f32
    %152 = vector.broadcast %cst_67 : f32 to vector<2x256xf32>
    %153 = arith.mulf %152, %151 : vector<2x256xf32>
    %cst_68 = arith.constant 5.000000e-01 : f32
    %154 = vector.broadcast %cst_68 : f32 to vector<2x256xf32>
    %155 = arith.addf %153, %154 : vector<2x256xf32>
    %156 = arith.select %13, %151, %155 : vector<2x256xi1>, vector<2x256xf32>
    %157 = vector.extract_strided_slice %156 {offsets = [0, 0], sizes = [2, 64], strides = [1, 1]} : vector<2x256xf32> to vector<2x64xf32>
    %158 = vector.extract_strided_slice %156 {offsets = [0, 64], sizes = [2, 64], strides = [1, 1]} : vector<2x256xf32> to vector<2x64xf32>
    %159 = vector.extract_strided_slice %156 {offsets = [0, 128], sizes = [2, 64], strides = [1, 1]} : vector<2x256xf32> to vector<2x64xf32>
    %160 = vector.extract_strided_slice %156 {offsets = [0, 192], sizes = [2, 64], strides = [1, 1]} : vector<2x256xf32> to vector<2x64xf32>
    %161 = arith.mulf %158, %119 : vector<2x64xf32>
    %162 = arith.mulf %157, %159 : vector<2x64xf32>
    %163 = arith.addf %161, %162 : vector<2x64xf32>
    %164 = math.tanh %163 : vector<2x64xf32>
    %165 = arith.mulf %160, %164 : vector<2x64xf32>
    %c3 = arith.constant 3 : index
    %c0_69 = arith.constant 0 : index
    %c0_70 = arith.constant 0 : index
    %166 = vector.load %arg0[%c3, %c0_69, %c0_70] : memref<8x2x256xf32, #tpu.memory_space<vmem>>, vector<1x2x256xf32>
    %167 = vector.shape_cast %166 : vector<1x2x256xf32> to vector<2x256xf32>
    %cst_71 = arith.constant dense<0.000000e+00> : vector<2x256xf32>
    %168 = tpu.matmul %143, %0, %cst_71 {dimension_numbers = #tpu.dot_dimension_numbers<[1], [0], [0], [1], [0, 0, 1, 1], [], []>} : vector<2x64xf32>, vector<64x256xf32>, vector<2x256xf32> -> vector<2x256xf32>
    %169 = arith.addf %167, %168 : vector<2x256xf32>
    %cst_72 = arith.constant 5.000000e-01 : f32
    %170 = vector.broadcast %cst_72 : f32 to vector<2x256xf32>
    %171 = arith.mulf %170, %169 : vector<2x256xf32>
    %172 = arith.select %13, %169, %171 : vector<2x256xi1>, vector<2x256xf32>
    %173 = math.tanh %172 : vector<2x256xf32>
    %cst_73 = arith.constant 5.000000e-01 : f32
    %174 = vector.broadcast %cst_73 : f32 to vector<2x256xf32>
    %175 = arith.mulf %174, %173 : vector<2x256xf32>
    %cst_74 = arith.constant 5.000000e-01 : f32
    %176 = vector.broadcast %cst_74 : f32 to vector<2x256xf32>
    %177 = arith.addf %175, %176 : vector<2x256xf32>
    %178 = arith.select %13, %173, %177 : vector<2x256xi1>, vector<2x256xf32>
    %179 = vector.extract_strided_slice %178 {offsets = [0, 0], sizes = [2, 64], strides = [1, 1]} : vector<2x256xf32> to vector<2x64xf32>
    %180 = vector.extract_strided_slice %178 {offsets = [0, 64], sizes = [2, 64], strides = [1, 1]} : vector<2x256xf32> to vector<2x64xf32>
    %181 = vector.extract_strided_slice %178 {offsets = [0, 128], sizes = [2, 64], strides = [1, 1]} : vector<2x256xf32> to vector<2x64xf32>
    %182 = vector.extract_strided_slice %178 {offsets = [0, 192], sizes = [2, 64], strides = [1, 1]} : vector<2x256xf32> to vector<2x64xf32>
    %183 = arith.mulf %180, %141 : vector<2x64xf32>
    %184 = arith.mulf %179, %181 : vector<2x64xf32>
    %185 = arith.addf %183, %184 : vector<2x64xf32>
    %186 = math.tanh %185 : vector<2x64xf32>
    %187 = arith.mulf %182, %186 : vector<2x64xf32>
    %188 = tpu.concatenate %187, %165 in 1 : vector<2x64xf32>, vector<2x64xf32> -> vector<2x128xf32>
    %cst_75 = arith.constant dense<0.000000e+00> : vector<2x256xf32>
    %189 = tpu.matmul %188, %1, %cst_75 {dimension_numbers = #tpu.dot_dimension_numbers<[1], [0], [0], [1], [0, 0, 1, 1], [], []>} : vector<2x128xf32>, vector<128x256xf32>, vector<2x256xf32> -> vector<2x256xf32>
    %190 = vector.broadcast %2 : vector<1x256xf32> to vector<2x256xf32>
    %191 = arith.addf %189, %190 : vector<2x256xf32>
    %cst_76 = arith.constant 5.000000e-01 : f32
    %192 = vector.broadcast %cst_76 : f32 to vector<2x256xf32>
    %193 = arith.mulf %192, %191 : vector<2x256xf32>
    %194 = arith.select %13, %191, %193 : vector<2x256xi1>, vector<2x256xf32>
    %195 = math.tanh %194 : vector<2x256xf32>
    %cst_77 = arith.constant 5.000000e-01 : f32
    %196 = vector.broadcast %cst_77 : f32 to vector<2x256xf32>
    %197 = arith.mulf %196, %195 : vector<2x256xf32>
    %cst_78 = arith.constant 5.000000e-01 : f32
    %198 = vector.broadcast %cst_78 : f32 to vector<2x256xf32>
    %199 = arith.addf %197, %198 : vector<2x256xf32>
    %200 = arith.select %13, %195, %199 : vector<2x256xi1>, vector<2x256xf32>
    %201 = vector.extract_strided_slice %200 {offsets = [0, 0], sizes = [2, 64], strides = [1, 1]} : vector<2x256xf32> to vector<2x64xf32>
    %202 = vector.extract_strided_slice %200 {offsets = [0, 64], sizes = [2, 64], strides = [1, 1]} : vector<2x256xf32> to vector<2x64xf32>
    %203 = vector.extract_strided_slice %200 {offsets = [0, 128], sizes = [2, 64], strides = [1, 1]} : vector<2x256xf32> to vector<2x64xf32>
    %204 = vector.extract_strided_slice %200 {offsets = [0, 192], sizes = [2, 64], strides = [1, 1]} : vector<2x256xf32> to vector<2x64xf32>
    %205 = arith.mulf %202, %163 : vector<2x64xf32>
    %206 = arith.mulf %201, %203 : vector<2x64xf32>
    %207 = arith.addf %205, %206 : vector<2x64xf32>
    %208 = math.tanh %207 : vector<2x64xf32>
    %209 = arith.mulf %204, %208 : vector<2x64xf32>
    %c4 = arith.constant 4 : index
    %c0_79 = arith.constant 0 : index
    %c0_80 = arith.constant 0 : index
    %210 = vector.load %arg0[%c4, %c0_79, %c0_80] : memref<8x2x256xf32, #tpu.memory_space<vmem>>, vector<1x2x256xf32>
    %211 = vector.shape_cast %210 : vector<1x2x256xf32> to vector<2x256xf32>
    %cst_81 = arith.constant dense<0.000000e+00> : vector<2x256xf32>
    %212 = tpu.matmul %187, %0, %cst_81 {dimension_numbers = #tpu.dot_dimension_numbers<[1], [0], [0], [1], [0, 0, 1, 1], [], []>} : vector<2x64xf32>, vector<64x256xf32>, vector<2x256xf32> -> vector<2x256xf32>
    %213 = arith.addf %211, %212 : vector<2x256xf32>
    %cst_82 = arith.constant 5.000000e-01 : f32
    %214 = vector.broadcast %cst_82 : f32 to vector<2x256xf32>
    %215 = arith.mulf %214, %213 : vector<2x256xf32>
    %216 = arith.select %13, %213, %215 : vector<2x256xi1>, vector<2x256xf32>
    %217 = math.tanh %216 : vector<2x256xf32>
    %cst_83 = arith.constant 5.000000e-01 : f32
    %218 = vector.broadcast %cst_83 : f32 to vector<2x256xf32>
    %219 = arith.mulf %218, %217 : vector<2x256xf32>
    %cst_84 = arith.constant 5.000000e-01 : f32
    %220 = vector.broadcast %cst_84 : f32 to vector<2x256xf32>
    %221 = arith.addf %219, %220 : vector<2x256xf32>
    %222 = arith.select %13, %217, %221 : vector<2x256xi1>, vector<2x256xf32>
    %223 = vector.extract_strided_slice %222 {offsets = [0, 0], sizes = [2, 64], strides = [1, 1]} : vector<2x256xf32> to vector<2x64xf32>
    %224 = vector.extract_strided_slice %222 {offsets = [0, 64], sizes = [2, 64], strides = [1, 1]} : vector<2x256xf32> to vector<2x64xf32>
    %225 = vector.extract_strided_slice %222 {offsets = [0, 128], sizes = [2, 64], strides = [1, 1]} : vector<2x256xf32> to vector<2x64xf32>
    %226 = vector.extract_strided_slice %222 {offsets = [0, 192], sizes = [2, 64], strides = [1, 1]} : vector<2x256xf32> to vector<2x64xf32>
    %227 = arith.mulf %224, %185 : vector<2x64xf32>
    %228 = arith.mulf %223, %225 : vector<2x64xf32>
    %229 = arith.addf %227, %228 : vector<2x64xf32>
    %230 = math.tanh %229 : vector<2x64xf32>
    %231 = arith.mulf %226, %230 : vector<2x64xf32>
    %232 = tpu.concatenate %231, %209 in 1 : vector<2x64xf32>, vector<2x64xf32> -> vector<2x128xf32>
    %cst_85 = arith.constant dense<0.000000e+00> : vector<2x256xf32>
    %233 = tpu.matmul %232, %1, %cst_85 {dimension_numbers = #tpu.dot_dimension_numbers<[1], [0], [0], [1], [0, 0, 1, 1], [], []>} : vector<2x128xf32>, vector<128x256xf32>, vector<2x256xf32> -> vector<2x256xf32>
    %234 = vector.broadcast %2 : vector<1x256xf32> to vector<2x256xf32>
    %235 = arith.addf %233, %234 : vector<2x256xf32>
    %cst_86 = arith.constant 5.000000e-01 : f32
    %236 = vector.broadcast %cst_86 : f32 to vector<2x256xf32>
    %237 = arith.mulf %236, %235 : vector<2x256xf32>
    %238 = arith.select %13, %235, %237 : vector<2x256xi1>, vector<2x256xf32>
    %239 = math.tanh %238 : vector<2x256xf32>
    %cst_87 = arith.constant 5.000000e-01 : f32
    %240 = vector.broadcast %cst_87 : f32 to vector<2x256xf32>
    %241 = arith.mulf %240, %239 : vector<2x256xf32>
    %cst_88 = arith.constant 5.000000e-01 : f32
    %242 = vector.broadcast %cst_88 : f32 to vector<2x256xf32>
    %243 = arith.addf %241, %242 : vector<2x256xf32>
    %244 = arith.select %13, %239, %243 : vector<2x256xi1>, vector<2x256xf32>
    %245 = vector.extract_strided_slice %244 {offsets = [0, 0], sizes = [2, 64], strides = [1, 1]} : vector<2x256xf32> to vector<2x64xf32>
    %246 = vector.extract_strided_slice %244 {offsets = [0, 64], sizes = [2, 64], strides = [1, 1]} : vector<2x256xf32> to vector<2x64xf32>
    %247 = vector.extract_strided_slice %244 {offsets = [0, 128], sizes = [2, 64], strides = [1, 1]} : vector<2x256xf32> to vector<2x64xf32>
    %248 = vector.extract_strided_slice %244 {offsets = [0, 192], sizes = [2, 64], strides = [1, 1]} : vector<2x256xf32> to vector<2x64xf32>
    %249 = arith.mulf %246, %207 : vector<2x64xf32>
    %250 = arith.mulf %245, %247 : vector<2x64xf32>
    %251 = arith.addf %249, %250 : vector<2x64xf32>
    %252 = math.tanh %251 : vector<2x64xf32>
    %253 = arith.mulf %248, %252 : vector<2x64xf32>
    %c5 = arith.constant 5 : index
    %c0_89 = arith.constant 0 : index
    %c0_90 = arith.constant 0 : index
    %254 = vector.load %arg0[%c5, %c0_89, %c0_90] : memref<8x2x256xf32, #tpu.memory_space<vmem>>, vector<1x2x256xf32>
    %255 = vector.shape_cast %254 : vector<1x2x256xf32> to vector<2x256xf32>
    %cst_91 = arith.constant dense<0.000000e+00> : vector<2x256xf32>
    %256 = tpu.matmul %231, %0, %cst_91 {dimension_numbers = #tpu.dot_dimension_numbers<[1], [0], [0], [1], [0, 0, 1, 1], [], []>} : vector<2x64xf32>, vector<64x256xf32>, vector<2x256xf32> -> vector<2x256xf32>
    %257 = arith.addf %255, %256 : vector<2x256xf32>
    %cst_92 = arith.constant 5.000000e-01 : f32
    %258 = vector.broadcast %cst_92 : f32 to vector<2x256xf32>
    %259 = arith.mulf %258, %257 : vector<2x256xf32>
    %260 = arith.select %13, %257, %259 : vector<2x256xi1>, vector<2x256xf32>
    %261 = math.tanh %260 : vector<2x256xf32>
    %cst_93 = arith.constant 5.000000e-01 : f32
    %262 = vector.broadcast %cst_93 : f32 to vector<2x256xf32>
    %263 = arith.mulf %262, %261 : vector<2x256xf32>
    %cst_94 = arith.constant 5.000000e-01 : f32
    %264 = vector.broadcast %cst_94 : f32 to vector<2x256xf32>
    %265 = arith.addf %263, %264 : vector<2x256xf32>
    %266 = arith.select %13, %261, %265 : vector<2x256xi1>, vector<2x256xf32>
    %267 = vector.extract_strided_slice %266 {offsets = [0, 0], sizes = [2, 64], strides = [1, 1]} : vector<2x256xf32> to vector<2x64xf32>
    %268 = vector.extract_strided_slice %266 {offsets = [0, 64], sizes = [2, 64], strides = [1, 1]} : vector<2x256xf32> to vector<2x64xf32>
    %269 = vector.extract_strided_slice %266 {offsets = [0, 128], sizes = [2, 64], strides = [1, 1]} : vector<2x256xf32> to vector<2x64xf32>
    %270 = vector.extract_strided_slice %266 {offsets = [0, 192], sizes = [2, 64], strides = [1, 1]} : vector<2x256xf32> to vector<2x64xf32>
    %271 = arith.mulf %268, %229 : vector<2x64xf32>
    %272 = arith.mulf %267, %269 : vector<2x64xf32>
    %273 = arith.addf %271, %272 : vector<2x64xf32>
    %274 = math.tanh %273 : vector<2x64xf32>
    %275 = arith.mulf %270, %274 : vector<2x64xf32>
    %276 = tpu.concatenate %275, %253 in 1 : vector<2x64xf32>, vector<2x64xf32> -> vector<2x128xf32>
    %cst_95 = arith.constant dense<0.000000e+00> : vector<2x256xf32>
    %277 = tpu.matmul %276, %1, %cst_95 {dimension_numbers = #tpu.dot_dimension_numbers<[1], [0], [0], [1], [0, 0, 1, 1], [], []>} : vector<2x128xf32>, vector<128x256xf32>, vector<2x256xf32> -> vector<2x256xf32>
    %278 = vector.broadcast %2 : vector<1x256xf32> to vector<2x256xf32>
    %279 = arith.addf %277, %278 : vector<2x256xf32>
    %cst_96 = arith.constant 5.000000e-01 : f32
    %280 = vector.broadcast %cst_96 : f32 to vector<2x256xf32>
    %281 = arith.mulf %280, %279 : vector<2x256xf32>
    %282 = arith.select %13, %279, %281 : vector<2x256xi1>, vector<2x256xf32>
    %283 = math.tanh %282 : vector<2x256xf32>
    %cst_97 = arith.constant 5.000000e-01 : f32
    %284 = vector.broadcast %cst_97 : f32 to vector<2x256xf32>
    %285 = arith.mulf %284, %283 : vector<2x256xf32>
    %cst_98 = arith.constant 5.000000e-01 : f32
    %286 = vector.broadcast %cst_98 : f32 to vector<2x256xf32>
    %287 = arith.addf %285, %286 : vector<2x256xf32>
    %288 = arith.select %13, %283, %287 : vector<2x256xi1>, vector<2x256xf32>
    %289 = vector.extract_strided_slice %288 {offsets = [0, 0], sizes = [2, 64], strides = [1, 1]} : vector<2x256xf32> to vector<2x64xf32>
    %290 = vector.extract_strided_slice %288 {offsets = [0, 64], sizes = [2, 64], strides = [1, 1]} : vector<2x256xf32> to vector<2x64xf32>
    %291 = vector.extract_strided_slice %288 {offsets = [0, 128], sizes = [2, 64], strides = [1, 1]} : vector<2x256xf32> to vector<2x64xf32>
    %292 = vector.extract_strided_slice %288 {offsets = [0, 192], sizes = [2, 64], strides = [1, 1]} : vector<2x256xf32> to vector<2x64xf32>
    %293 = arith.mulf %290, %251 : vector<2x64xf32>
    %294 = arith.mulf %289, %291 : vector<2x64xf32>
    %295 = arith.addf %293, %294 : vector<2x64xf32>
    %296 = math.tanh %295 : vector<2x64xf32>
    %297 = arith.mulf %292, %296 : vector<2x64xf32>
    %c6 = arith.constant 6 : index
    %c0_99 = arith.constant 0 : index
    %c0_100 = arith.constant 0 : index
    %298 = vector.load %arg0[%c6, %c0_99, %c0_100] : memref<8x2x256xf32, #tpu.memory_space<vmem>>, vector<1x2x256xf32>
    %299 = vector.shape_cast %298 : vector<1x2x256xf32> to vector<2x256xf32>
    %cst_101 = arith.constant dense<0.000000e+00> : vector<2x256xf32>
    %300 = tpu.matmul %275, %0, %cst_101 {dimension_numbers = #tpu.dot_dimension_numbers<[1], [0], [0], [1], [0, 0, 1, 1], [], []>} : vector<2x64xf32>, vector<64x256xf32>, vector<2x256xf32> -> vector<2x256xf32>
    %301 = arith.addf %299, %300 : vector<2x256xf32>
    %cst_102 = arith.constant 5.000000e-01 : f32
    %302 = vector.broadcast %cst_102 : f32 to vector<2x256xf32>
    %303 = arith.mulf %302, %301 : vector<2x256xf32>
    %304 = arith.select %13, %301, %303 : vector<2x256xi1>, vector<2x256xf32>
    %305 = math.tanh %304 : vector<2x256xf32>
    %cst_103 = arith.constant 5.000000e-01 : f32
    %306 = vector.broadcast %cst_103 : f32 to vector<2x256xf32>
    %307 = arith.mulf %306, %305 : vector<2x256xf32>
    %cst_104 = arith.constant 5.000000e-01 : f32
    %308 = vector.broadcast %cst_104 : f32 to vector<2x256xf32>
    %309 = arith.addf %307, %308 : vector<2x256xf32>
    %310 = arith.select %13, %305, %309 : vector<2x256xi1>, vector<2x256xf32>
    %311 = vector.extract_strided_slice %310 {offsets = [0, 0], sizes = [2, 64], strides = [1, 1]} : vector<2x256xf32> to vector<2x64xf32>
    %312 = vector.extract_strided_slice %310 {offsets = [0, 64], sizes = [2, 64], strides = [1, 1]} : vector<2x256xf32> to vector<2x64xf32>
    %313 = vector.extract_strided_slice %310 {offsets = [0, 128], sizes = [2, 64], strides = [1, 1]} : vector<2x256xf32> to vector<2x64xf32>
    %314 = vector.extract_strided_slice %310 {offsets = [0, 192], sizes = [2, 64], strides = [1, 1]} : vector<2x256xf32> to vector<2x64xf32>
    %315 = arith.mulf %312, %273 : vector<2x64xf32>
    %316 = arith.mulf %311, %313 : vector<2x64xf32>
    %317 = arith.addf %315, %316 : vector<2x64xf32>
    %318 = math.tanh %317 : vector<2x64xf32>
    %319 = arith.mulf %314, %318 : vector<2x64xf32>
    %320 = tpu.concatenate %319, %297 in 1 : vector<2x64xf32>, vector<2x64xf32> -> vector<2x128xf32>
    %cst_105 = arith.constant dense<0.000000e+00> : vector<2x256xf32>
    %321 = tpu.matmul %320, %1, %cst_105 {dimension_numbers = #tpu.dot_dimension_numbers<[1], [0], [0], [1], [0, 0, 1, 1], [], []>} : vector<2x128xf32>, vector<128x256xf32>, vector<2x256xf32> -> vector<2x256xf32>
    %322 = vector.broadcast %2 : vector<1x256xf32> to vector<2x256xf32>
    %323 = arith.addf %321, %322 : vector<2x256xf32>
    %cst_106 = arith.constant 5.000000e-01 : f32
    %324 = vector.broadcast %cst_106 : f32 to vector<2x256xf32>
    %325 = arith.mulf %324, %323 : vector<2x256xf32>
    %326 = arith.select %13, %323, %325 : vector<2x256xi1>, vector<2x256xf32>
    %327 = math.tanh %326 : vector<2x256xf32>
    %cst_107 = arith.constant 5.000000e-01 : f32
    %328 = vector.broadcast %cst_107 : f32 to vector<2x256xf32>
    %329 = arith.mulf %328, %327 : vector<2x256xf32>
    %cst_108 = arith.constant 5.000000e-01 : f32
    %330 = vector.broadcast %cst_108 : f32 to vector<2x256xf32>
    %331 = arith.addf %329, %330 : vector<2x256xf32>
    %332 = arith.select %13, %327, %331 : vector<2x256xi1>, vector<2x256xf32>
    %333 = vector.extract_strided_slice %332 {offsets = [0, 0], sizes = [2, 64], strides = [1, 1]} : vector<2x256xf32> to vector<2x64xf32>
    %334 = vector.extract_strided_slice %332 {offsets = [0, 64], sizes = [2, 64], strides = [1, 1]} : vector<2x256xf32> to vector<2x64xf32>
    %335 = vector.extract_strided_slice %332 {offsets = [0, 128], sizes = [2, 64], strides = [1, 1]} : vector<2x256xf32> to vector<2x64xf32>
    %336 = vector.extract_strided_slice %332 {offsets = [0, 192], sizes = [2, 64], strides = [1, 1]} : vector<2x256xf32> to vector<2x64xf32>
    %337 = arith.mulf %334, %295 : vector<2x64xf32>
    %338 = arith.mulf %333, %335 : vector<2x64xf32>
    %339 = arith.addf %337, %338 : vector<2x64xf32>
    %340 = math.tanh %339 : vector<2x64xf32>
    %341 = arith.mulf %336, %340 : vector<2x64xf32>
    %c7 = arith.constant 7 : index
    %c0_109 = arith.constant 0 : index
    %c0_110 = arith.constant 0 : index
    %342 = vector.load %arg0[%c7, %c0_109, %c0_110] : memref<8x2x256xf32, #tpu.memory_space<vmem>>, vector<1x2x256xf32>
    %343 = vector.shape_cast %342 : vector<1x2x256xf32> to vector<2x256xf32>
    %cst_111 = arith.constant dense<0.000000e+00> : vector<2x256xf32>
    %344 = tpu.matmul %319, %0, %cst_111 {dimension_numbers = #tpu.dot_dimension_numbers<[1], [0], [0], [1], [0, 0, 1, 1], [], []>} : vector<2x64xf32>, vector<64x256xf32>, vector<2x256xf32> -> vector<2x256xf32>
    %345 = arith.addf %343, %344 : vector<2x256xf32>
    %cst_112 = arith.constant 5.000000e-01 : f32
    %346 = vector.broadcast %cst_112 : f32 to vector<2x256xf32>
    %347 = arith.mulf %346, %345 : vector<2x256xf32>
    %348 = arith.select %13, %345, %347 : vector<2x256xi1>, vector<2x256xf32>
    %349 = math.tanh %348 : vector<2x256xf32>
    %cst_113 = arith.constant 5.000000e-01 : f32
    %350 = vector.broadcast %cst_113 : f32 to vector<2x256xf32>
    %351 = arith.mulf %350, %349 : vector<2x256xf32>
    %cst_114 = arith.constant 5.000000e-01 : f32
    %352 = vector.broadcast %cst_114 : f32 to vector<2x256xf32>
    %353 = arith.addf %351, %352 : vector<2x256xf32>
    %354 = arith.select %13, %349, %353 : vector<2x256xi1>, vector<2x256xf32>
    %355 = vector.extract_strided_slice %354 {offsets = [0, 0], sizes = [2, 64], strides = [1, 1]} : vector<2x256xf32> to vector<2x64xf32>
    %356 = vector.extract_strided_slice %354 {offsets = [0, 64], sizes = [2, 64], strides = [1, 1]} : vector<2x256xf32> to vector<2x64xf32>
    %357 = vector.extract_strided_slice %354 {offsets = [0, 128], sizes = [2, 64], strides = [1, 1]} : vector<2x256xf32> to vector<2x64xf32>
    %358 = vector.extract_strided_slice %354 {offsets = [0, 192], sizes = [2, 64], strides = [1, 1]} : vector<2x256xf32> to vector<2x64xf32>
    %359 = arith.mulf %356, %317 : vector<2x64xf32>
    %360 = arith.mulf %355, %357 : vector<2x64xf32>
    %361 = arith.addf %359, %360 : vector<2x64xf32>
    %362 = math.tanh %361 : vector<2x64xf32>
    %363 = arith.mulf %358, %362 : vector<2x64xf32>
    %364 = tpu.concatenate %363, %341 in 1 : vector<2x64xf32>, vector<2x64xf32> -> vector<2x128xf32>
    %cst_115 = arith.constant dense<0.000000e+00> : vector<2x256xf32>
    %365 = tpu.matmul %364, %1, %cst_115 {dimension_numbers = #tpu.dot_dimension_numbers<[1], [0], [0], [1], [0, 0, 1, 1], [], []>} : vector<2x128xf32>, vector<128x256xf32>, vector<2x256xf32> -> vector<2x256xf32>
    %366 = vector.broadcast %2 : vector<1x256xf32> to vector<2x256xf32>
    %367 = arith.addf %365, %366 : vector<2x256xf32>
    %cst_116 = arith.constant 5.000000e-01 : f32
    %368 = vector.broadcast %cst_116 : f32 to vector<2x256xf32>
    %369 = arith.mulf %368, %367 : vector<2x256xf32>
    %370 = arith.select %13, %367, %369 : vector<2x256xi1>, vector<2x256xf32>
    %371 = math.tanh %370 : vector<2x256xf32>
    %cst_117 = arith.constant 5.000000e-01 : f32
    %372 = vector.broadcast %cst_117 : f32 to vector<2x256xf32>
    %373 = arith.mulf %372, %371 : vector<2x256xf32>
    %cst_118 = arith.constant 5.000000e-01 : f32
    %374 = vector.broadcast %cst_118 : f32 to vector<2x256xf32>
    %375 = arith.addf %373, %374 : vector<2x256xf32>
    %376 = arith.select %13, %371, %375 : vector<2x256xi1>, vector<2x256xf32>
    %377 = vector.extract_strided_slice %376 {offsets = [0, 0], sizes = [2, 64], strides = [1, 1]} : vector<2x256xf32> to vector<2x64xf32>
    %378 = vector.extract_strided_slice %376 {offsets = [0, 64], sizes = [2, 64], strides = [1, 1]} : vector<2x256xf32> to vector<2x64xf32>
    %379 = vector.extract_strided_slice %376 {offsets = [0, 128], sizes = [2, 64], strides = [1, 1]} : vector<2x256xf32> to vector<2x64xf32>
    %380 = vector.extract_strided_slice %376 {offsets = [0, 192], sizes = [2, 64], strides = [1, 1]} : vector<2x256xf32> to vector<2x64xf32>
    %381 = arith.mulf %378, %339 : vector<2x64xf32>
    %382 = arith.mulf %377, %379 : vector<2x64xf32>
    %383 = arith.addf %381, %382 : vector<2x64xf32>
    %384 = math.tanh %383 : vector<2x64xf32>
    %385 = arith.mulf %380, %384 : vector<2x64xf32>
    %386 = vector.extract_strided_slice %363 {offsets = [0, 0], sizes = [2, 32], strides = [1, 1]} : vector<2x64xf32> to vector<2x32xf32>
    %387 = vector.extract_strided_slice %363 {offsets = [0, 0], sizes = [2, 32], strides = [1, 1]} : vector<2x64xf32> to vector<2x32xf32>
    %388 = tpu.concatenate %386, %387 in 1 : vector<2x32xf32>, vector<2x32xf32> -> vector<2x64xf32>
    %389 = vector.extract_strided_slice %385 {offsets = [0, 0], sizes = [2, 32], strides = [1, 1]} : vector<2x64xf32> to vector<2x32xf32>
    %390 = vector.extract_strided_slice %385 {offsets = [0, 0], sizes = [2, 32], strides = [1, 1]} : vector<2x64xf32> to vector<2x32xf32>
    %391 = tpu.concatenate %389, %390 in 1 : vector<2x32xf32>, vector<2x32xf32> -> vector<2x64xf32>
    %392 = vector.extract_strided_slice %361 {offsets = [0, 0], sizes = [2, 32], strides = [1, 1]} : vector<2x64xf32> to vector<2x32xf32>
    %393 = vector.extract_strided_slice %361 {offsets = [0, 0], sizes = [2, 32], strides = [1, 1]} : vector<2x64xf32> to vector<2x32xf32>
    %394 = tpu.concatenate %392, %393 in 1 : vector<2x32xf32>, vector<2x32xf32> -> vector<2x64xf32>
    %395 = vector.extract_strided_slice %383 {offsets = [0, 0], sizes = [2, 32], strides = [1, 1]} : vector<2x64xf32> to vector<2x32xf32>
    %396 = vector.extract_strided_slice %383 {offsets = [0, 0], sizes = [2, 32], strides = [1, 1]} : vector<2x64xf32> to vector<2x32xf32>
    %397 = tpu.concatenate %395, %396 in 1 : vector<2x32xf32>, vector<2x32xf32> -> vector<2x64xf32>
    %c0_119 = arith.constant 0 : index
    %c0_120 = arith.constant 0 : index
    %c0_121 = arith.constant 0 : index
    %398 = vector.load %arg1[%c0_119, %c0_120, %c0_121] : memref<8x2x256xf32, #tpu.memory_space<vmem>>, vector<1x2x256xf32>
    %399 = vector.shape_cast %398 : vector<1x2x256xf32> to vector<2x256xf32>
    %cst_122 = arith.constant dense<0.000000e+00> : vector<2x256xf32>
    %400 = tpu.matmul %388, %0, %cst_122 {dimension_numbers = #tpu.dot_dimension_numbers<[1], [0], [0], [1], [0, 0, 1, 1], [], []>} : vector<2x64xf32>, vector<64x256xf32>, vector<2x256xf32> -> vector<2x256xf32>
    %401 = arith.addf %399, %400 : vector<2x256xf32>
    %cst_123 = arith.constant 5.000000e-01 : f32
    %402 = vector.broadcast %cst_123 : f32 to vector<2x256xf32>
    %403 = arith.mulf %402, %401 : vector<2x256xf32>
    %404 = arith.select %13, %401, %403 : vector<2x256xi1>, vector<2x256xf32>
    %405 = math.tanh %404 : vector<2x256xf32>
    %cst_124 = arith.constant 5.000000e-01 : f32
    %406 = vector.broadcast %cst_124 : f32 to vector<2x256xf32>
    %407 = arith.mulf %406, %405 : vector<2x256xf32>
    %cst_125 = arith.constant 5.000000e-01 : f32
    %408 = vector.broadcast %cst_125 : f32 to vector<2x256xf32>
    %409 = arith.addf %407, %408 : vector<2x256xf32>
    %410 = arith.select %13, %405, %409 : vector<2x256xi1>, vector<2x256xf32>
    %411 = vector.extract_strided_slice %410 {offsets = [0, 0], sizes = [2, 64], strides = [1, 1]} : vector<2x256xf32> to vector<2x64xf32>
    %412 = vector.extract_strided_slice %410 {offsets = [0, 64], sizes = [2, 64], strides = [1, 1]} : vector<2x256xf32> to vector<2x64xf32>
    %413 = vector.extract_strided_slice %410 {offsets = [0, 128], sizes = [2, 64], strides = [1, 1]} : vector<2x256xf32> to vector<2x64xf32>
    %414 = vector.extract_strided_slice %410 {offsets = [0, 192], sizes = [2, 64], strides = [1, 1]} : vector<2x256xf32> to vector<2x64xf32>
    %415 = arith.mulf %412, %394 : vector<2x64xf32>
    %416 = arith.mulf %411, %413 : vector<2x64xf32>
    %417 = arith.addf %415, %416 : vector<2x64xf32>
    %418 = math.tanh %417 : vector<2x64xf32>
    %419 = arith.mulf %414, %418 : vector<2x64xf32>
    %420 = tpu.concatenate %419, %391 in 1 : vector<2x64xf32>, vector<2x64xf32> -> vector<2x128xf32>
    %cst_126 = arith.constant dense<0.000000e+00> : vector<2x256xf32>
    %421 = tpu.matmul %420, %1, %cst_126 {dimension_numbers = #tpu.dot_dimension_numbers<[1], [0], [0], [1], [0, 0, 1, 1], [], []>} : vector<2x128xf32>, vector<128x256xf32>, vector<2x256xf32> -> vector<2x256xf32>
    %422 = vector.broadcast %2 : vector<1x256xf32> to vector<2x256xf32>
    %423 = arith.addf %421, %422 : vector<2x256xf32>
    %cst_127 = arith.constant 5.000000e-01 : f32
    %424 = vector.broadcast %cst_127 : f32 to vector<2x256xf32>
    %425 = arith.mulf %424, %423 : vector<2x256xf32>
    %426 = arith.select %13, %423, %425 : vector<2x256xi1>, vector<2x256xf32>
    %427 = math.tanh %426 : vector<2x256xf32>
    %cst_128 = arith.constant 5.000000e-01 : f32
    %428 = vector.broadcast %cst_128 : f32 to vector<2x256xf32>
    %429 = arith.mulf %428, %427 : vector<2x256xf32>
    %cst_129 = arith.constant 5.000000e-01 : f32
    %430 = vector.broadcast %cst_129 : f32 to vector<2x256xf32>
    %431 = arith.addf %429, %430 : vector<2x256xf32>
    %432 = arith.select %13, %427, %431 : vector<2x256xi1>, vector<2x256xf32>
    %433 = vector.extract_strided_slice %432 {offsets = [0, 0], sizes = [2, 64], strides = [1, 1]} : vector<2x256xf32> to vector<2x64xf32>
    %434 = vector.extract_strided_slice %432 {offsets = [0, 64], sizes = [2, 64], strides = [1, 1]} : vector<2x256xf32> to vector<2x64xf32>
    %435 = vector.extract_strided_slice %432 {offsets = [0, 128], sizes = [2, 64], strides = [1, 1]} : vector<2x256xf32> to vector<2x64xf32>
    %436 = vector.extract_strided_slice %432 {offsets = [0, 192], sizes = [2, 64], strides = [1, 1]} : vector<2x256xf32> to vector<2x64xf32>
    %437 = arith.mulf %434, %397 : vector<2x64xf32>
    %438 = arith.mulf %433, %435 : vector<2x64xf32>
    %439 = arith.addf %437, %438 : vector<2x64xf32>
    %440 = math.tanh %439 : vector<2x64xf32>
    %441 = arith.mulf %436, %440 : vector<2x64xf32>
    %c1_130 = arith.constant 1 : index
    %c0_131 = arith.constant 0 : index
    %c0_132 = arith.constant 0 : index
    %442 = vector.load %arg1[%c1_130, %c0_131, %c0_132] : memref<8x2x256xf32, #tpu.memory_space<vmem>>, vector<1x2x256xf32>
    %443 = vector.shape_cast %442 : vector<1x2x256xf32> to vector<2x256xf32>
    %cst_133 = arith.constant dense<0.000000e+00> : vector<2x256xf32>
    %444 = tpu.matmul %419, %0, %cst_133 {dimension_numbers = #tpu.dot_dimension_numbers<[1], [0], [0], [1], [0, 0, 1, 1], [], []>} : vector<2x64xf32>, vector<64x256xf32>, vector<2x256xf32> -> vector<2x256xf32>
    %445 = arith.addf %443, %444 : vector<2x256xf32>
    %cst_134 = arith.constant 5.000000e-01 : f32
    %446 = vector.broadcast %cst_134 : f32 to vector<2x256xf32>
    %447 = arith.mulf %446, %445 : vector<2x256xf32>
    %448 = arith.select %13, %445, %447 : vector<2x256xi1>, vector<2x256xf32>
    %449 = math.tanh %448 : vector<2x256xf32>
    %cst_135 = arith.constant 5.000000e-01 : f32
    %450 = vector.broadcast %cst_135 : f32 to vector<2x256xf32>
    %451 = arith.mulf %450, %449 : vector<2x256xf32>
    %cst_136 = arith.constant 5.000000e-01 : f32
    %452 = vector.broadcast %cst_136 : f32 to vector<2x256xf32>
    %453 = arith.addf %451, %452 : vector<2x256xf32>
    %454 = arith.select %13, %449, %453 : vector<2x256xi1>, vector<2x256xf32>
    %455 = vector.extract_strided_slice %454 {offsets = [0, 0], sizes = [2, 64], strides = [1, 1]} : vector<2x256xf32> to vector<2x64xf32>
    %456 = vector.extract_strided_slice %454 {offsets = [0, 64], sizes = [2, 64], strides = [1, 1]} : vector<2x256xf32> to vector<2x64xf32>
    %457 = vector.extract_strided_slice %454 {offsets = [0, 128], sizes = [2, 64], strides = [1, 1]} : vector<2x256xf32> to vector<2x64xf32>
    %458 = vector.extract_strided_slice %454 {offsets = [0, 192], sizes = [2, 64], strides = [1, 1]} : vector<2x256xf32> to vector<2x64xf32>
    %459 = arith.mulf %456, %417 : vector<2x64xf32>
    %460 = arith.mulf %455, %457 : vector<2x64xf32>
    %461 = arith.addf %459, %460 : vector<2x64xf32>
    %462 = math.tanh %461 : vector<2x64xf32>
    %463 = arith.mulf %458, %462 : vector<2x64xf32>
    %464 = tpu.concatenate %463, %441 in 1 : vector<2x64xf32>, vector<2x64xf32> -> vector<2x128xf32>
    %cst_137 = arith.constant dense<0.000000e+00> : vector<2x256xf32>
    %465 = tpu.matmul %464, %1, %cst_137 {dimension_numbers = #tpu.dot_dimension_numbers<[1], [0], [0], [1], [0, 0, 1, 1], [], []>} : vector<2x128xf32>, vector<128x256xf32>, vector<2x256xf32> -> vector<2x256xf32>
    %466 = vector.broadcast %2 : vector<1x256xf32> to vector<2x256xf32>
    %467 = arith.addf %465, %466 : vector<2x256xf32>
    %cst_138 = arith.constant 5.000000e-01 : f32
    %468 = vector.broadcast %cst_138 : f32 to vector<2x256xf32>
    %469 = arith.mulf %468, %467 : vector<2x256xf32>
    %470 = arith.select %13, %467, %469 : vector<2x256xi1>, vector<2x256xf32>
    %471 = math.tanh %470 : vector<2x256xf32>
    %cst_139 = arith.constant 5.000000e-01 : f32
    %472 = vector.broadcast %cst_139 : f32 to vector<2x256xf32>
    %473 = arith.mulf %472, %471 : vector<2x256xf32>
    %cst_140 = arith.constant 5.000000e-01 : f32
    %474 = vector.broadcast %cst_140 : f32 to vector<2x256xf32>
    %475 = arith.addf %473, %474 : vector<2x256xf32>
    %476 = arith.select %13, %471, %475 : vector<2x256xi1>, vector<2x256xf32>
    %477 = vector.extract_strided_slice %476 {offsets = [0, 0], sizes = [2, 64], strides = [1, 1]} : vector<2x256xf32> to vector<2x64xf32>
    %478 = vector.extract_strided_slice %476 {offsets = [0, 64], sizes = [2, 64], strides = [1, 1]} : vector<2x256xf32> to vector<2x64xf32>
    %479 = vector.extract_strided_slice %476 {offsets = [0, 128], sizes = [2, 64], strides = [1, 1]} : vector<2x256xf32> to vector<2x64xf32>
    %480 = vector.extract_strided_slice %476 {offsets = [0, 192], sizes = [2, 64], strides = [1, 1]} : vector<2x256xf32> to vector<2x64xf32>
    %481 = arith.mulf %478, %439 : vector<2x64xf32>
    %482 = arith.mulf %477, %479 : vector<2x64xf32>
    %483 = arith.addf %481, %482 : vector<2x64xf32>
    %484 = math.tanh %483 : vector<2x64xf32>
    %485 = arith.mulf %480, %484 : vector<2x64xf32>
    %c2_141 = arith.constant 2 : index
    %c0_142 = arith.constant 0 : index
    %c0_143 = arith.constant 0 : index
    %486 = vector.load %arg1[%c2_141, %c0_142, %c0_143] : memref<8x2x256xf32, #tpu.memory_space<vmem>>, vector<1x2x256xf32>
    %487 = vector.shape_cast %486 : vector<1x2x256xf32> to vector<2x256xf32>
    %cst_144 = arith.constant dense<0.000000e+00> : vector<2x256xf32>
    %488 = tpu.matmul %463, %0, %cst_144 {dimension_numbers = #tpu.dot_dimension_numbers<[1], [0], [0], [1], [0, 0, 1, 1], [], []>} : vector<2x64xf32>, vector<64x256xf32>, vector<2x256xf32> -> vector<2x256xf32>
    %489 = arith.addf %487, %488 : vector<2x256xf32>
    %cst_145 = arith.constant 5.000000e-01 : f32
    %490 = vector.broadcast %cst_145 : f32 to vector<2x256xf32>
    %491 = arith.mulf %490, %489 : vector<2x256xf32>
    %492 = arith.select %13, %489, %491 : vector<2x256xi1>, vector<2x256xf32>
    %493 = math.tanh %492 : vector<2x256xf32>
    %cst_146 = arith.constant 5.000000e-01 : f32
    %494 = vector.broadcast %cst_146 : f32 to vector<2x256xf32>
    %495 = arith.mulf %494, %493 : vector<2x256xf32>
    %cst_147 = arith.constant 5.000000e-01 : f32
    %496 = vector.broadcast %cst_147 : f32 to vector<2x256xf32>
    %497 = arith.addf %495, %496 : vector<2x256xf32>
    %498 = arith.select %13, %493, %497 : vector<2x256xi1>, vector<2x256xf32>
    %499 = vector.extract_strided_slice %498 {offsets = [0, 0], sizes = [2, 64], strides = [1, 1]} : vector<2x256xf32> to vector<2x64xf32>
    %500 = vector.extract_strided_slice %498 {offsets = [0, 64], sizes = [2, 64], strides = [1, 1]} : vector<2x256xf32> to vector<2x64xf32>
    %501 = vector.extract_strided_slice %498 {offsets = [0, 128], sizes = [2, 64], strides = [1, 1]} : vector<2x256xf32> to vector<2x64xf32>
    %502 = vector.extract_strided_slice %498 {offsets = [0, 192], sizes = [2, 64], strides = [1, 1]} : vector<2x256xf32> to vector<2x64xf32>
    %503 = arith.mulf %500, %461 : vector<2x64xf32>
    %504 = arith.mulf %499, %501 : vector<2x64xf32>
    %505 = arith.addf %503, %504 : vector<2x64xf32>
    %506 = math.tanh %505 : vector<2x64xf32>
    %507 = arith.mulf %502, %506 : vector<2x64xf32>
    %508 = tpu.concatenate %507, %485 in 1 : vector<2x64xf32>, vector<2x64xf32> -> vector<2x128xf32>
    %cst_148 = arith.constant dense<0.000000e+00> : vector<2x256xf32>
    %509 = tpu.matmul %508, %1, %cst_148 {dimension_numbers = #tpu.dot_dimension_numbers<[1], [0], [0], [1], [0, 0, 1, 1], [], []>} : vector<2x128xf32>, vector<128x256xf32>, vector<2x256xf32> -> vector<2x256xf32>
    %510 = vector.broadcast %2 : vector<1x256xf32> to vector<2x256xf32>
    %511 = arith.addf %509, %510 : vector<2x256xf32>
    %cst_149 = arith.constant 5.000000e-01 : f32
    %512 = vector.broadcast %cst_149 : f32 to vector<2x256xf32>
    %513 = arith.mulf %512, %511 : vector<2x256xf32>
    %514 = arith.select %13, %511, %513 : vector<2x256xi1>, vector<2x256xf32>
    %515 = math.tanh %514 : vector<2x256xf32>
    %cst_150 = arith.constant 5.000000e-01 : f32
    %516 = vector.broadcast %cst_150 : f32 to vector<2x256xf32>
    %517 = arith.mulf %516, %515 : vector<2x256xf32>
    %cst_151 = arith.constant 5.000000e-01 : f32
    %518 = vector.broadcast %cst_151 : f32 to vector<2x256xf32>
    %519 = arith.addf %517, %518 : vector<2x256xf32>
    %520 = arith.select %13, %515, %519 : vector<2x256xi1>, vector<2x256xf32>
    %521 = vector.extract_strided_slice %520 {offsets = [0, 0], sizes = [2, 64], strides = [1, 1]} : vector<2x256xf32> to vector<2x64xf32>
    %522 = vector.extract_strided_slice %520 {offsets = [0, 64], sizes = [2, 64], strides = [1, 1]} : vector<2x256xf32> to vector<2x64xf32>
    %523 = vector.extract_strided_slice %520 {offsets = [0, 128], sizes = [2, 64], strides = [1, 1]} : vector<2x256xf32> to vector<2x64xf32>
    %524 = vector.extract_strided_slice %520 {offsets = [0, 192], sizes = [2, 64], strides = [1, 1]} : vector<2x256xf32> to vector<2x64xf32>
    %525 = arith.mulf %522, %483 : vector<2x64xf32>
    %526 = arith.mulf %521, %523 : vector<2x64xf32>
    %527 = arith.addf %525, %526 : vector<2x64xf32>
    %528 = math.tanh %527 : vector<2x64xf32>
    %529 = arith.mulf %524, %528 : vector<2x64xf32>
    %c3_152 = arith.constant 3 : index
    %c0_153 = arith.constant 0 : index
    %c0_154 = arith.constant 0 : index
    %530 = vector.load %arg1[%c3_152, %c0_153, %c0_154] : memref<8x2x256xf32, #tpu.memory_space<vmem>>, vector<1x2x256xf32>
    %531 = vector.shape_cast %530 : vector<1x2x256xf32> to vector<2x256xf32>
    %cst_155 = arith.constant dense<0.000000e+00> : vector<2x256xf32>
    %532 = tpu.matmul %507, %0, %cst_155 {dimension_numbers = #tpu.dot_dimension_numbers<[1], [0], [0], [1], [0, 0, 1, 1], [], []>} : vector<2x64xf32>, vector<64x256xf32>, vector<2x256xf32> -> vector<2x256xf32>
    %533 = arith.addf %531, %532 : vector<2x256xf32>
    %cst_156 = arith.constant 5.000000e-01 : f32
    %534 = vector.broadcast %cst_156 : f32 to vector<2x256xf32>
    %535 = arith.mulf %534, %533 : vector<2x256xf32>
    %536 = arith.select %13, %533, %535 : vector<2x256xi1>, vector<2x256xf32>
    %537 = math.tanh %536 : vector<2x256xf32>
    %cst_157 = arith.constant 5.000000e-01 : f32
    %538 = vector.broadcast %cst_157 : f32 to vector<2x256xf32>
    %539 = arith.mulf %538, %537 : vector<2x256xf32>
    %cst_158 = arith.constant 5.000000e-01 : f32
    %540 = vector.broadcast %cst_158 : f32 to vector<2x256xf32>
    %541 = arith.addf %539, %540 : vector<2x256xf32>
    %542 = arith.select %13, %537, %541 : vector<2x256xi1>, vector<2x256xf32>
    %543 = vector.extract_strided_slice %542 {offsets = [0, 0], sizes = [2, 64], strides = [1, 1]} : vector<2x256xf32> to vector<2x64xf32>
    %544 = vector.extract_strided_slice %542 {offsets = [0, 64], sizes = [2, 64], strides = [1, 1]} : vector<2x256xf32> to vector<2x64xf32>
    %545 = vector.extract_strided_slice %542 {offsets = [0, 128], sizes = [2, 64], strides = [1, 1]} : vector<2x256xf32> to vector<2x64xf32>
    %546 = vector.extract_strided_slice %542 {offsets = [0, 192], sizes = [2, 64], strides = [1, 1]} : vector<2x256xf32> to vector<2x64xf32>
    %547 = arith.mulf %544, %505 : vector<2x64xf32>
    %548 = arith.mulf %543, %545 : vector<2x64xf32>
    %549 = arith.addf %547, %548 : vector<2x64xf32>
    %550 = math.tanh %549 : vector<2x64xf32>
    %551 = arith.mulf %546, %550 : vector<2x64xf32>
    %552 = tpu.concatenate %551, %529 in 1 : vector<2x64xf32>, vector<2x64xf32> -> vector<2x128xf32>
    %cst_159 = arith.constant dense<0.000000e+00> : vector<2x256xf32>
    %553 = tpu.matmul %552, %1, %cst_159 {dimension_numbers = #tpu.dot_dimension_numbers<[1], [0], [0], [1], [0, 0, 1, 1], [], []>} : vector<2x128xf32>, vector<128x256xf32>, vector<2x256xf32> -> vector<2x256xf32>
    %554 = vector.broadcast %2 : vector<1x256xf32> to vector<2x256xf32>
    %555 = arith.addf %553, %554 : vector<2x256xf32>
    %cst_160 = arith.constant 5.000000e-01 : f32
    %556 = vector.broadcast %cst_160 : f32 to vector<2x256xf32>
    %557 = arith.mulf %556, %555 : vector<2x256xf32>
    %558 = arith.select %13, %555, %557 : vector<2x256xi1>, vector<2x256xf32>
    %559 = math.tanh %558 : vector<2x256xf32>
    %cst_161 = arith.constant 5.000000e-01 : f32
    %560 = vector.broadcast %cst_161 : f32 to vector<2x256xf32>
    %561 = arith.mulf %560, %559 : vector<2x256xf32>
    %cst_162 = arith.constant 5.000000e-01 : f32
    %562 = vector.broadcast %cst_162 : f32 to vector<2x256xf32>
    %563 = arith.addf %561, %562 : vector<2x256xf32>
    %564 = arith.select %13, %559, %563 : vector<2x256xi1>, vector<2x256xf32>
    %565 = vector.extract_strided_slice %564 {offsets = [0, 0], sizes = [2, 64], strides = [1, 1]} : vector<2x256xf32> to vector<2x64xf32>
    %566 = vector.extract_strided_slice %564 {offsets = [0, 64], sizes = [2, 64], strides = [1, 1]} : vector<2x256xf32> to vector<2x64xf32>
    %567 = vector.extract_strided_slice %564 {offsets = [0, 128], sizes = [2, 64], strides = [1, 1]} : vector<2x256xf32> to vector<2x64xf32>
    %568 = vector.extract_strided_slice %564 {offsets = [0, 192], sizes = [2, 64], strides = [1, 1]} : vector<2x256xf32> to vector<2x64xf32>
    %569 = arith.mulf %566, %527 : vector<2x64xf32>
    %570 = arith.mulf %565, %567 : vector<2x64xf32>
    %571 = arith.addf %569, %570 : vector<2x64xf32>
    %572 = math.tanh %571 : vector<2x64xf32>
    %573 = arith.mulf %568, %572 : vector<2x64xf32>
    %c4_163 = arith.constant 4 : index
    %c0_164 = arith.constant 0 : index
    %c0_165 = arith.constant 0 : index
    %574 = vector.load %arg1[%c4_163, %c0_164, %c0_165] : memref<8x2x256xf32, #tpu.memory_space<vmem>>, vector<1x2x256xf32>
    %575 = vector.shape_cast %574 : vector<1x2x256xf32> to vector<2x256xf32>
    %cst_166 = arith.constant dense<0.000000e+00> : vector<2x256xf32>
    %576 = tpu.matmul %551, %0, %cst_166 {dimension_numbers = #tpu.dot_dimension_numbers<[1], [0], [0], [1], [0, 0, 1, 1], [], []>} : vector<2x64xf32>, vector<64x256xf32>, vector<2x256xf32> -> vector<2x256xf32>
    %577 = arith.addf %575, %576 : vector<2x256xf32>
    %cst_167 = arith.constant 5.000000e-01 : f32
    %578 = vector.broadcast %cst_167 : f32 to vector<2x256xf32>
    %579 = arith.mulf %578, %577 : vector<2x256xf32>
    %580 = arith.select %13, %577, %579 : vector<2x256xi1>, vector<2x256xf32>
    %581 = math.tanh %580 : vector<2x256xf32>
    %cst_168 = arith.constant 5.000000e-01 : f32
    %582 = vector.broadcast %cst_168 : f32 to vector<2x256xf32>
    %583 = arith.mulf %582, %581 : vector<2x256xf32>
    %cst_169 = arith.constant 5.000000e-01 : f32
    %584 = vector.broadcast %cst_169 : f32 to vector<2x256xf32>
    %585 = arith.addf %583, %584 : vector<2x256xf32>
    %586 = arith.select %13, %581, %585 : vector<2x256xi1>, vector<2x256xf32>
    %587 = vector.extract_strided_slice %586 {offsets = [0, 0], sizes = [2, 64], strides = [1, 1]} : vector<2x256xf32> to vector<2x64xf32>
    %588 = vector.extract_strided_slice %586 {offsets = [0, 64], sizes = [2, 64], strides = [1, 1]} : vector<2x256xf32> to vector<2x64xf32>
    %589 = vector.extract_strided_slice %586 {offsets = [0, 128], sizes = [2, 64], strides = [1, 1]} : vector<2x256xf32> to vector<2x64xf32>
    %590 = vector.extract_strided_slice %586 {offsets = [0, 192], sizes = [2, 64], strides = [1, 1]} : vector<2x256xf32> to vector<2x64xf32>
    %591 = arith.mulf %588, %549 : vector<2x64xf32>
    %592 = arith.mulf %587, %589 : vector<2x64xf32>
    %593 = arith.addf %591, %592 : vector<2x64xf32>
    %594 = math.tanh %593 : vector<2x64xf32>
    %595 = arith.mulf %590, %594 : vector<2x64xf32>
    %596 = tpu.concatenate %595, %573 in 1 : vector<2x64xf32>, vector<2x64xf32> -> vector<2x128xf32>
    %cst_170 = arith.constant dense<0.000000e+00> : vector<2x256xf32>
    %597 = tpu.matmul %596, %1, %cst_170 {dimension_numbers = #tpu.dot_dimension_numbers<[1], [0], [0], [1], [0, 0, 1, 1], [], []>} : vector<2x128xf32>, vector<128x256xf32>, vector<2x256xf32> -> vector<2x256xf32>
    %598 = vector.broadcast %2 : vector<1x256xf32> to vector<2x256xf32>
    %599 = arith.addf %597, %598 : vector<2x256xf32>
    %cst_171 = arith.constant 5.000000e-01 : f32
    %600 = vector.broadcast %cst_171 : f32 to vector<2x256xf32>
    %601 = arith.mulf %600, %599 : vector<2x256xf32>
    %602 = arith.select %13, %599, %601 : vector<2x256xi1>, vector<2x256xf32>
    %603 = math.tanh %602 : vector<2x256xf32>
    %cst_172 = arith.constant 5.000000e-01 : f32
    %604 = vector.broadcast %cst_172 : f32 to vector<2x256xf32>
    %605 = arith.mulf %604, %603 : vector<2x256xf32>
    %cst_173 = arith.constant 5.000000e-01 : f32
    %606 = vector.broadcast %cst_173 : f32 to vector<2x256xf32>
    %607 = arith.addf %605, %606 : vector<2x256xf32>
    %608 = arith.select %13, %603, %607 : vector<2x256xi1>, vector<2x256xf32>
    %609 = vector.extract_strided_slice %608 {offsets = [0, 0], sizes = [2, 64], strides = [1, 1]} : vector<2x256xf32> to vector<2x64xf32>
    %610 = vector.extract_strided_slice %608 {offsets = [0, 64], sizes = [2, 64], strides = [1, 1]} : vector<2x256xf32> to vector<2x64xf32>
    %611 = vector.extract_strided_slice %608 {offsets = [0, 128], sizes = [2, 64], strides = [1, 1]} : vector<2x256xf32> to vector<2x64xf32>
    %612 = vector.extract_strided_slice %608 {offsets = [0, 192], sizes = [2, 64], strides = [1, 1]} : vector<2x256xf32> to vector<2x64xf32>
    %613 = arith.mulf %610, %571 : vector<2x64xf32>
    %614 = arith.mulf %609, %611 : vector<2x64xf32>
    %615 = arith.addf %613, %614 : vector<2x64xf32>
    %616 = math.tanh %615 : vector<2x64xf32>
    %617 = arith.mulf %612, %616 : vector<2x64xf32>
    %c5_174 = arith.constant 5 : index
    %c0_175 = arith.constant 0 : index
    %c0_176 = arith.constant 0 : index
    %618 = vector.load %arg1[%c5_174, %c0_175, %c0_176] : memref<8x2x256xf32, #tpu.memory_space<vmem>>, vector<1x2x256xf32>
    %619 = vector.shape_cast %618 : vector<1x2x256xf32> to vector<2x256xf32>
    %cst_177 = arith.constant dense<0.000000e+00> : vector<2x256xf32>
    %620 = tpu.matmul %595, %0, %cst_177 {dimension_numbers = #tpu.dot_dimension_numbers<[1], [0], [0], [1], [0, 0, 1, 1], [], []>} : vector<2x64xf32>, vector<64x256xf32>, vector<2x256xf32> -> vector<2x256xf32>
    %621 = arith.addf %619, %620 : vector<2x256xf32>
    %cst_178 = arith.constant 5.000000e-01 : f32
    %622 = vector.broadcast %cst_178 : f32 to vector<2x256xf32>
    %623 = arith.mulf %622, %621 : vector<2x256xf32>
    %624 = arith.select %13, %621, %623 : vector<2x256xi1>, vector<2x256xf32>
    %625 = math.tanh %624 : vector<2x256xf32>
    %cst_179 = arith.constant 5.000000e-01 : f32
    %626 = vector.broadcast %cst_179 : f32 to vector<2x256xf32>
    %627 = arith.mulf %626, %625 : vector<2x256xf32>
    %cst_180 = arith.constant 5.000000e-01 : f32
    %628 = vector.broadcast %cst_180 : f32 to vector<2x256xf32>
    %629 = arith.addf %627, %628 : vector<2x256xf32>
    %630 = arith.select %13, %625, %629 : vector<2x256xi1>, vector<2x256xf32>
    %631 = vector.extract_strided_slice %630 {offsets = [0, 0], sizes = [2, 64], strides = [1, 1]} : vector<2x256xf32> to vector<2x64xf32>
    %632 = vector.extract_strided_slice %630 {offsets = [0, 64], sizes = [2, 64], strides = [1, 1]} : vector<2x256xf32> to vector<2x64xf32>
    %633 = vector.extract_strided_slice %630 {offsets = [0, 128], sizes = [2, 64], strides = [1, 1]} : vector<2x256xf32> to vector<2x64xf32>
    %634 = vector.extract_strided_slice %630 {offsets = [0, 192], sizes = [2, 64], strides = [1, 1]} : vector<2x256xf32> to vector<2x64xf32>
    %635 = arith.mulf %632, %593 : vector<2x64xf32>
    %636 = arith.mulf %631, %633 : vector<2x64xf32>
    %637 = arith.addf %635, %636 : vector<2x64xf32>
    %638 = math.tanh %637 : vector<2x64xf32>
    %639 = arith.mulf %634, %638 : vector<2x64xf32>
    %640 = tpu.concatenate %639, %617 in 1 : vector<2x64xf32>, vector<2x64xf32> -> vector<2x128xf32>
    %cst_181 = arith.constant dense<0.000000e+00> : vector<2x256xf32>
    %641 = tpu.matmul %640, %1, %cst_181 {dimension_numbers = #tpu.dot_dimension_numbers<[1], [0], [0], [1], [0, 0, 1, 1], [], []>} : vector<2x128xf32>, vector<128x256xf32>, vector<2x256xf32> -> vector<2x256xf32>
    %642 = vector.broadcast %2 : vector<1x256xf32> to vector<2x256xf32>
    %643 = arith.addf %641, %642 : vector<2x256xf32>
    %cst_182 = arith.constant 5.000000e-01 : f32
    %644 = vector.broadcast %cst_182 : f32 to vector<2x256xf32>
    %645 = arith.mulf %644, %643 : vector<2x256xf32>
    %646 = arith.select %13, %643, %645 : vector<2x256xi1>, vector<2x256xf32>
    %647 = math.tanh %646 : vector<2x256xf32>
    %cst_183 = arith.constant 5.000000e-01 : f32
    %648 = vector.broadcast %cst_183 : f32 to vector<2x256xf32>
    %649 = arith.mulf %648, %647 : vector<2x256xf32>
    %cst_184 = arith.constant 5.000000e-01 : f32
    %650 = vector.broadcast %cst_184 : f32 to vector<2x256xf32>
    %651 = arith.addf %649, %650 : vector<2x256xf32>
    %652 = arith.select %13, %647, %651 : vector<2x256xi1>, vector<2x256xf32>
    %653 = vector.extract_strided_slice %652 {offsets = [0, 0], sizes = [2, 64], strides = [1, 1]} : vector<2x256xf32> to vector<2x64xf32>
    %654 = vector.extract_strided_slice %652 {offsets = [0, 64], sizes = [2, 64], strides = [1, 1]} : vector<2x256xf32> to vector<2x64xf32>
    %655 = vector.extract_strided_slice %652 {offsets = [0, 128], sizes = [2, 64], strides = [1, 1]} : vector<2x256xf32> to vector<2x64xf32>
    %656 = vector.extract_strided_slice %652 {offsets = [0, 192], sizes = [2, 64], strides = [1, 1]} : vector<2x256xf32> to vector<2x64xf32>
    %657 = arith.mulf %654, %615 : vector<2x64xf32>
    %658 = arith.mulf %653, %655 : vector<2x64xf32>
    %659 = arith.addf %657, %658 : vector<2x64xf32>
    %660 = math.tanh %659 : vector<2x64xf32>
    %661 = arith.mulf %656, %660 : vector<2x64xf32>
    %c6_185 = arith.constant 6 : index
    %c0_186 = arith.constant 0 : index
    %c0_187 = arith.constant 0 : index
    %662 = vector.load %arg1[%c6_185, %c0_186, %c0_187] : memref<8x2x256xf32, #tpu.memory_space<vmem>>, vector<1x2x256xf32>
    %663 = vector.shape_cast %662 : vector<1x2x256xf32> to vector<2x256xf32>
    %cst_188 = arith.constant dense<0.000000e+00> : vector<2x256xf32>
    %664 = tpu.matmul %639, %0, %cst_188 {dimension_numbers = #tpu.dot_dimension_numbers<[1], [0], [0], [1], [0, 0, 1, 1], [], []>} : vector<2x64xf32>, vector<64x256xf32>, vector<2x256xf32> -> vector<2x256xf32>
    %665 = arith.addf %663, %664 : vector<2x256xf32>
    %cst_189 = arith.constant 5.000000e-01 : f32
    %666 = vector.broadcast %cst_189 : f32 to vector<2x256xf32>
    %667 = arith.mulf %666, %665 : vector<2x256xf32>
    %668 = arith.select %13, %665, %667 : vector<2x256xi1>, vector<2x256xf32>
    %669 = math.tanh %668 : vector<2x256xf32>
    %cst_190 = arith.constant 5.000000e-01 : f32
    %670 = vector.broadcast %cst_190 : f32 to vector<2x256xf32>
    %671 = arith.mulf %670, %669 : vector<2x256xf32>
    %cst_191 = arith.constant 5.000000e-01 : f32
    %672 = vector.broadcast %cst_191 : f32 to vector<2x256xf32>
    %673 = arith.addf %671, %672 : vector<2x256xf32>
    %674 = arith.select %13, %669, %673 : vector<2x256xi1>, vector<2x256xf32>
    %675 = vector.extract_strided_slice %674 {offsets = [0, 0], sizes = [2, 64], strides = [1, 1]} : vector<2x256xf32> to vector<2x64xf32>
    %676 = vector.extract_strided_slice %674 {offsets = [0, 64], sizes = [2, 64], strides = [1, 1]} : vector<2x256xf32> to vector<2x64xf32>
    %677 = vector.extract_strided_slice %674 {offsets = [0, 128], sizes = [2, 64], strides = [1, 1]} : vector<2x256xf32> to vector<2x64xf32>
    %678 = vector.extract_strided_slice %674 {offsets = [0, 192], sizes = [2, 64], strides = [1, 1]} : vector<2x256xf32> to vector<2x64xf32>
    %679 = arith.mulf %676, %637 : vector<2x64xf32>
    %680 = arith.mulf %675, %677 : vector<2x64xf32>
    %681 = arith.addf %679, %680 : vector<2x64xf32>
    %682 = math.tanh %681 : vector<2x64xf32>
    %683 = arith.mulf %678, %682 : vector<2x64xf32>
    %684 = tpu.concatenate %683, %661 in 1 : vector<2x64xf32>, vector<2x64xf32> -> vector<2x128xf32>
    %cst_192 = arith.constant dense<0.000000e+00> : vector<2x256xf32>
    %685 = tpu.matmul %684, %1, %cst_192 {dimension_numbers = #tpu.dot_dimension_numbers<[1], [0], [0], [1], [0, 0, 1, 1], [], []>} : vector<2x128xf32>, vector<128x256xf32>, vector<2x256xf32> -> vector<2x256xf32>
    %686 = vector.broadcast %2 : vector<1x256xf32> to vector<2x256xf32>
    %687 = arith.addf %685, %686 : vector<2x256xf32>
    %cst_193 = arith.constant 5.000000e-01 : f32
    %688 = vector.broadcast %cst_193 : f32 to vector<2x256xf32>
    %689 = arith.mulf %688, %687 : vector<2x256xf32>
    %690 = arith.select %13, %687, %689 : vector<2x256xi1>, vector<2x256xf32>
    %691 = math.tanh %690 : vector<2x256xf32>
    %cst_194 = arith.constant 5.000000e-01 : f32
    %692 = vector.broadcast %cst_194 : f32 to vector<2x256xf32>
    %693 = arith.mulf %692, %691 : vector<2x256xf32>
    %cst_195 = arith.constant 5.000000e-01 : f32
    %694 = vector.broadcast %cst_195 : f32 to vector<2x256xf32>
    %695 = arith.addf %693, %694 : vector<2x256xf32>
    %696 = arith.select %13, %691, %695 : vector<2x256xi1>, vector<2x256xf32>
    %697 = vector.extract_strided_slice %696 {offsets = [0, 0], sizes = [2, 64], strides = [1, 1]} : vector<2x256xf32> to vector<2x64xf32>
    %698 = vector.extract_strided_slice %696 {offsets = [0, 64], sizes = [2, 64], strides = [1, 1]} : vector<2x256xf32> to vector<2x64xf32>
    %699 = vector.extract_strided_slice %696 {offsets = [0, 128], sizes = [2, 64], strides = [1, 1]} : vector<2x256xf32> to vector<2x64xf32>
    %700 = vector.extract_strided_slice %696 {offsets = [0, 192], sizes = [2, 64], strides = [1, 1]} : vector<2x256xf32> to vector<2x64xf32>
    %701 = arith.mulf %698, %659 : vector<2x64xf32>
    %702 = arith.mulf %697, %699 : vector<2x64xf32>
    %703 = arith.addf %701, %702 : vector<2x64xf32>
    %704 = math.tanh %703 : vector<2x64xf32>
    %705 = arith.mulf %700, %704 : vector<2x64xf32>
    %c7_196 = arith.constant 7 : index
    %c0_197 = arith.constant 0 : index
    %c0_198 = arith.constant 0 : index
    %706 = vector.load %arg1[%c7_196, %c0_197, %c0_198] : memref<8x2x256xf32, #tpu.memory_space<vmem>>, vector<1x2x256xf32>
    %707 = vector.shape_cast %706 : vector<1x2x256xf32> to vector<2x256xf32>
    %cst_199 = arith.constant dense<0.000000e+00> : vector<2x256xf32>
    %708 = tpu.matmul %683, %0, %cst_199 {dimension_numbers = #tpu.dot_dimension_numbers<[1], [0], [0], [1], [0, 0, 1, 1], [], []>} : vector<2x64xf32>, vector<64x256xf32>, vector<2x256xf32> -> vector<2x256xf32>
    %709 = arith.addf %707, %708 : vector<2x256xf32>
    %cst_200 = arith.constant 5.000000e-01 : f32
    %710 = vector.broadcast %cst_200 : f32 to vector<2x256xf32>
    %711 = arith.mulf %710, %709 : vector<2x256xf32>
    %712 = arith.select %13, %709, %711 : vector<2x256xi1>, vector<2x256xf32>
    %713 = math.tanh %712 : vector<2x256xf32>
    %cst_201 = arith.constant 5.000000e-01 : f32
    %714 = vector.broadcast %cst_201 : f32 to vector<2x256xf32>
    %715 = arith.mulf %714, %713 : vector<2x256xf32>
    %cst_202 = arith.constant 5.000000e-01 : f32
    %716 = vector.broadcast %cst_202 : f32 to vector<2x256xf32>
    %717 = arith.addf %715, %716 : vector<2x256xf32>
    %718 = arith.select %13, %713, %717 : vector<2x256xi1>, vector<2x256xf32>
    %719 = vector.extract_strided_slice %718 {offsets = [0, 0], sizes = [2, 64], strides = [1, 1]} : vector<2x256xf32> to vector<2x64xf32>
    %720 = vector.extract_strided_slice %718 {offsets = [0, 64], sizes = [2, 64], strides = [1, 1]} : vector<2x256xf32> to vector<2x64xf32>
    %721 = vector.extract_strided_slice %718 {offsets = [0, 128], sizes = [2, 64], strides = [1, 1]} : vector<2x256xf32> to vector<2x64xf32>
    %722 = vector.extract_strided_slice %718 {offsets = [0, 192], sizes = [2, 64], strides = [1, 1]} : vector<2x256xf32> to vector<2x64xf32>
    %723 = arith.mulf %720, %681 : vector<2x64xf32>
    %724 = arith.mulf %719, %721 : vector<2x64xf32>
    %725 = arith.addf %723, %724 : vector<2x64xf32>
    %726 = math.tanh %725 : vector<2x64xf32>
    %727 = arith.mulf %722, %726 : vector<2x64xf32>
    %728 = tpu.concatenate %727, %705 in 1 : vector<2x64xf32>, vector<2x64xf32> -> vector<2x128xf32>
    %cst_203 = arith.constant dense<0.000000e+00> : vector<2x256xf32>
    %729 = tpu.matmul %728, %1, %cst_203 {dimension_numbers = #tpu.dot_dimension_numbers<[1], [0], [0], [1], [0, 0, 1, 1], [], []>} : vector<2x128xf32>, vector<128x256xf32>, vector<2x256xf32> -> vector<2x256xf32>
    %730 = vector.broadcast %2 : vector<1x256xf32> to vector<2x256xf32>
    %731 = arith.addf %729, %730 : vector<2x256xf32>
    %cst_204 = arith.constant 5.000000e-01 : f32
    %732 = vector.broadcast %cst_204 : f32 to vector<2x256xf32>
    %733 = arith.mulf %732, %731 : vector<2x256xf32>
    %734 = arith.select %13, %731, %733 : vector<2x256xi1>, vector<2x256xf32>
    %735 = math.tanh %734 : vector<2x256xf32>
    %cst_205 = arith.constant 5.000000e-01 : f32
    %736 = vector.broadcast %cst_205 : f32 to vector<2x256xf32>
    %737 = arith.mulf %736, %735 : vector<2x256xf32>
    %cst_206 = arith.constant 5.000000e-01 : f32
    %738 = vector.broadcast %cst_206 : f32 to vector<2x256xf32>
    %739 = arith.addf %737, %738 : vector<2x256xf32>
    %740 = arith.select %13, %735, %739 : vector<2x256xi1>, vector<2x256xf32>
    %741 = vector.extract_strided_slice %740 {offsets = [0, 0], sizes = [2, 64], strides = [1, 1]} : vector<2x256xf32> to vector<2x64xf32>
    %742 = vector.extract_strided_slice %740 {offsets = [0, 64], sizes = [2, 64], strides = [1, 1]} : vector<2x256xf32> to vector<2x64xf32>
    %743 = vector.extract_strided_slice %740 {offsets = [0, 128], sizes = [2, 64], strides = [1, 1]} : vector<2x256xf32> to vector<2x64xf32>
    %744 = vector.extract_strided_slice %740 {offsets = [0, 192], sizes = [2, 64], strides = [1, 1]} : vector<2x256xf32> to vector<2x64xf32>
    %745 = arith.mulf %742, %703 : vector<2x64xf32>
    %746 = arith.mulf %741, %743 : vector<2x64xf32>
    %747 = arith.addf %745, %746 : vector<2x64xf32>
    %748 = math.tanh %747 : vector<2x64xf32>
    %749 = arith.mulf %744, %748 : vector<2x64xf32>
    %750 = tpu.concatenate %441, %485, %529, %573, %617, %661, %705, %749 in 0 : vector<2x64xf32>, vector<2x64xf32>, vector<2x64xf32>, vector<2x64xf32>, vector<2x64xf32>, vector<2x64xf32>, vector<2x64xf32>, vector<2x64xf32> -> vector<16x64xf32>
    %751 = vector.extract_strided_slice %750 {offsets = [0, 0], sizes = [16, 32], strides = [1, 1]} : vector<16x64xf32> to vector<16x32xf32>
    %752 = vector.extract_strided_slice %750 {offsets = [0, 32], sizes = [16, 32], strides = [1, 1]} : vector<16x64xf32> to vector<16x32xf32>
    %cst_207 = arith.constant dense<0.000000e+00> : vector<16x32xf32>
    %753 = tpu.matmul %751, %6, %cst_207 {dimension_numbers = #tpu.dot_dimension_numbers<[1], [0], [0], [1], [0, 0, 1, 1], [], []>} : vector<16x32xf32>, vector<32x32xf32>, vector<16x32xf32> -> vector<16x32xf32>
    %754 = vector.broadcast %7 : vector<1x32xf32> to vector<16x32xf32>
    %755 = arith.addf %753, %754 : vector<16x32xf32>
    %756 = tpu.concatenate %755, %752 in 1 : vector<16x32xf32>, vector<16x32xf32> -> vector<16x64xf32>
    %c0_208 = arith.constant 0 : index
    %c0_209 = arith.constant 0 : index
    %757 = vector.load %arg12[%c0_208, %c0_209] : memref<16x64xf32, #tpu.memory_space<vmem>>, vector<16x64xf32>
    tpu.vector_store %arg12[%c0_208, %c0_209], %756 {strides = array<i32>} : memref<16x64xf32, #tpu.memory_space<vmem>>, vector<16x64xf32>,
    %758 = vector.extract_strided_slice %3 {offsets = [0, 0], sizes = [1, 32], strides = [1, 1]} : vector<1x64xf32> to vector<1x32xf32>
    %759 = vector.broadcast %758 : vector<1x32xf32> to vector<16x32xf32>
    %760 = arith.mulf %751, %759 : vector<16x32xf32>
    %cst_210 = arith.constant dense<0.000000e+00> : vector<16xf32>
    %761 = vector.multi_reduction <add>, %760, %cst_210 [1] : vector<16x32xf32> to vector<16xf32>
    %762 = vector.shape_cast %761 : vector<16xf32> to vector<16x1xf32>
    %763 = vector.broadcast %4 : vector<1x1xf32> to vector<16x1xf32>
    %764 = arith.addf %762, %763 : vector<16x1xf32>
    %765 = vector.extract_strided_slice %3 {offsets = [0, 32], sizes = [1, 32], strides = [1, 1]} : vector<1x64xf32> to vector<1x32xf32>
    %766 = vector.broadcast %765 : vector<1x32xf32> to vector<16x32xf32>
    %767 = arith.mulf %752, %766 : vector<16x32xf32>
    %cst_211 = arith.constant dense<0.000000e+00> : vector<16xf32>
    %768 = vector.multi_reduction <add>, %767, %cst_211 [1] : vector<16x32xf32> to vector<16xf32>
    %769 = vector.shape_cast %768 : vector<16xf32> to vector<16x1xf32>
    %770 = vector.broadcast %5 : vector<1x1xf32> to vector<16x1xf32>
    %771 = arith.addf %769, %770 : vector<16x1xf32>
    %772 = tpu.concatenate %764, %771 in 1 : vector<16x1xf32>, vector<16x1xf32> -> vector<16x2xf32>
    %773 = arith.negf %772 : vector<16x2xf32>
    %774 = math.exp %773 : vector<16x2xf32>
    %cst_212 = arith.constant 1.000000e+00 : f32
    %775 = vector.broadcast %cst_212 : f32 to vector<16x2xf32>
    %776 = arith.addf %775, %774 : vector<16x2xf32>
    %777 = arith.divf %775, %776 : vector<16x2xf32>
    %c0_213 = arith.constant 0 : index
    %c0_214 = arith.constant 0 : index
    %778 = vector.load %arg13[%c0_213, %c0_214] : memref<16x2xf32, #tpu.memory_space<vmem>>, vector<16x2xf32>
    tpu.vector_store %arg13[%c0_213, %c0_214], %777 {strides = array<i32>} : memref<16x2xf32, #tpu.memory_space<vmem>>, vector<16x2xf32>,
    return
  }
}

</mosaic_0001>

<llo_original>
// kernel: squeeze.18
$region0: #{squeeze.18}
  %s0 = inlined_call_operand.vmem [shape: f32[16], index: 0, kind: input, shape index: {}]
  %s1 = inlined_call_operand.vmem [shape: f32[8,2], index: 1, kind: output, shape index: {}]
  $region1: #{squeeze.18} parent=0
    #allocation0 [shape = 'u8[4096]{0}', space=vmem, size = 0x1000, scoped, tag = 'scoped mem for input reshape']
    %s3 = sshllo.u32 0, 1
    %v4 = vld [vmem:[%s0] sm:%s3]
    %5 = vst [vmem:[#allocation0] sm:%s3] %v4
    %v6 = vld [vmem:[#allocation0] sm:$0x1]
    %vm7 = vcmask 15360
    %8 = vst.msk [vmem:[%s1] sm:$0x1] %vm7, %v6
    %v9 = vld [vmem:[#allocation0] sm:$0x1]
    %10 = vrot.lane.b32.xlu0 %v9, 126
    %v11 = vpop.permute.xlu0 %10
    %vm12 = vcmask 15360
    %s13 = scalar_lea.vmem %s1, 1
    %14 = vst.msk [vmem:[%s13] sm:$0x1] %vm12, %v11
    %v15 = vld [vmem:[#allocation0] sm:$0x1]
    %16 = vrot.lane.b32.xlu0 %v15, 124
    %v17 = vpop.permute.xlu0 %16
    %vm18 = vcmask 15360
    %s19 = scalar_lea.vmem %s1, 2
    %20 = vst.msk [vmem:[%s19] sm:$0x1] %vm18, %v17
    %v21 = vld [vmem:[#allocation0] sm:$0x1]
    %22 = vrot.lane.b32.xlu0 %v21, 122
    %v23 = vpop.permute.xlu0 %22
    %vm24 = vcmask 15360
    %s25 = scalar_lea.vmem %s1, 3
    %26 = vst.msk [vmem:[%s25] sm:$0x1] %vm24, %v23
    %v27 = vld [vmem:[#allocation0] sm:$0x1]
    %28 = vrot.lane.b32.xlu0 %v27, 120
    %v29 = vpop.permute.xlu0 %28
    %vm30 = vcmask 15360
    %s31 = scalar_lea.vmem %s1, 4
    %32 = vst.msk [vmem:[%s31] sm:$0x1] %vm30, %v29
    %v33 = vld [vmem:[#allocation0] sm:$0x1]
    %34 = vrot.lane.b32.xlu0 %v33, 118
    %v35 = vpop.permute.xlu0 %34
    %vm36 = vcmask 15360
    %s37 = scalar_lea.vmem %s1, 5
    %38 = vst.msk [vmem:[%s37] sm:$0x1] %vm36, %v35
    %v39 = vld [vmem:[#allocation0] sm:$0x1]
    %40 = vrot.lane.b32.xlu0 %v39, 116
    %v41 = vpop.permute.xlu0 %40
    %vm42 = vcmask 15360
    %s43 = scalar_lea.vmem %s1, 6
    %44 = vst.msk [vmem:[%s43] sm:$0x1] %vm42, %v41
    %v45 = vld [vmem:[#allocation0] sm:$0x1]
    %46 = vrot.lane.b32.xlu0 %v45, 114
    %v47 = vpop.permute.xlu0 %46
    %vm48 = vcmask 15360
    %s49 = scalar_lea.vmem %s1, 7
    %50 = vst.msk [vmem:[%s49] sm:$0x1] %vm48, %v47

// kernel: model_forward_impl.1
$region0: #{model_forward_impl.1}
  #allocation0 [shape = 'u32[]', space=smem, size = 0x4, offset = 0x4, fixed_abs, tag = 'smem constant byte address 0x4 - core index']
  #allocation1 [shape = 'u32[144,128]{1,0:T(1,128)}', space=vmem, size = 0x12000, scoped, tag = 'internal scratch']
  #allocation2 [shape = 'f32[1,1]{1,0:T(1,128)S(1)}', space=vmem, size = 0x200, scoped, tag = 'scoped memory for model_forward_impl.1']
  #allocation3 [shape = 'f32[1,1]{1,0:T(1,128)S(1)}', space=vmem, size = 0x200, scoped, tag = 'scoped memory for model_forward_impl.1']
  %s0 = inlined_call_operand.vmem [shape: f32[8,2,256], index: 0, kind: input, shape index: {}]
  %s1 = inlined_call_operand.vmem [shape: f32[8,2,256], index: 1, kind: input, shape index: {}]
  %s2 = inlined_call_operand.vmem [shape: f32[2,2,32], index: 2, kind: input, shape index: {}]
  %s3 = inlined_call_operand.vmem [shape: f32[2,2,32], index: 3, kind: input, shape index: {}]
  %s4 = inlined_call_operand.vmem [shape: f32[64,256], index: 4, kind: input, shape index: {}]
  %s5 = inlined_call_operand.vmem [shape: f32[128,256], index: 5, kind: input, shape index: {}]
  %s6 = inlined_call_operand.vmem [shape: f32[1,256], index: 6, kind: input, shape index: {}]
  %s7 = inlined_call_operand.vmem [shape: f32[1,64], index: 7, kind: input, shape index: {}]
  %s8 = inlined_call_operand.<no memory space> [shape: f32[1,1], index: 8, kind: input, shape index: {}]
  %s9 = inlined_call_operand.<no memory space> [shape: f32[1,1], index: 9, kind: input, shape index: {}]
  %s10 = inlined_call_operand.vmem [shape: f32[32,32], index: 10, kind: input, shape index: {}]
  %s11 = inlined_call_operand.vmem [shape: f32[1,32], index: 11, kind: input, shape index: {}]
  %s12 = inlined_call_operand.vmem [shape: f32[16,64], index: 12, kind: output, shape index: {0}]
  %s13 = inlined_call_operand.vmem [shape: f32[16,2], index: 13, kind: output, shape index: {1}]
  %14 = xla_tuple %s12, %s13
  %s15 = sld [smem:[#allocation0]]
  $region66: #{model_forward_impl.1} parent=0
    _
  %s17 = ssub.s32 1, %s15
  %s18 = scalar_select 0, %s17, %s15
  %v19 = vstv %s8
  %20 = vst [vmem:[#allocation2] sm:$0x1] %v19
  %v21 = vstv %s9
  %22 = vst [vmem:[#allocation3] sm:$0x1] %v21
  // Predicated region
  $region2: #{model_forward_impl.1} parent=0 // pred_check
    _
  $region3: #{model_forward_impl.1} parent=0 // pred_check_branch
    %24 = sbr.rel (0) target = $region5
  $region4: #{model_forward_impl.1} parent=0 // pred_region
    _
  $region5: #{model_forward_impl.1} parent=0 // pred_fallthru
    _
  // Predicated region
  $region6: #{model_forward_impl.1} parent=0 // pred_check
    _
  $region7: #{model_forward_impl.1} parent=0 // pred_check_branch
    %26 = sbr.rel (0) target = $region9
  $region8: #{model_forward_impl.1} parent=0 // pred_region
    _
  $region9: #{model_forward_impl.1} parent=0 // pred_fallthru
    _
  // Predicated region
  $region10: #{model_forward_impl.1} parent=0 // pred_check
    _
  $region11: #{model_forward_impl.1} parent=0 // pred_check_branch
    %28 = sbr.rel (0) target = $region13
  $region12: #{model_forward_impl.1} parent=0 // pred_region
    _
  $region13: #{model_forward_impl.1} parent=0 // pred_fallthru
    _
  // Predicated region
  $region14: #{model_forward_impl.1} parent=0 // pred_check
    _
  $region15: #{model_forward_impl.1} parent=0 // pred_check_branch
    %30 = sbr.rel (0) target = $region17
  $region16: #{model_forward_impl.1} parent=0 // pred_region
    _
  $region17: #{model_forward_impl.1} parent=0 // pred_fallthru
    _
  // Predicated region
  $region18: #{model_forward_impl.1} parent=0 // pred_check
    _
  $region19: #{model_forward_impl.1} parent=0 // pred_check_branch
    %32 = sbr.rel (0) target = $region21
  $region20: #{model_forward_impl.1} parent=0 // pred_region
    _
  $region21: #{model_forward_impl.1} parent=0 // pred_fallthru
    _
  // Predicated region
  $region22: #{model_forward_impl.1} parent=0 // pred_check
    _
  $region23: #{model_forward_impl.1} parent=0 // pred_check_branch
    %34 = sbr.rel (0) target = $region25
  $region24: #{model_forward_impl.1} parent=0 // pred_region
    _
  $region25: #{model_forward_impl.1} parent=0 // pred_fallthru
    _
  // Predicated region
  $region26: #{model_forward_impl.1} parent=0 // pred_check
    _
  $region27: #{model_forward_impl.1} parent=0 // pred_check_branch
    %36 = sbr.rel (0) target = $region29
  $region28: #{model_forward_impl.1} parent=0 // pred_region
    _
  $region29: #{model_forward_impl.1} parent=0 // pred_fallthru
    _
  // Predicated region
  $region30: #{model_forward_impl.1} parent=0 // pred_check
    _
  $region31: #{model_forward_impl.1} parent=0 // pred_check_branch
    %38 = sbr.rel (0) target = $region33
  $region32: #{model_forward_impl.1} parent=0 // pred_region
    _
  $region33: #{model_forward_impl.1} parent=0 // pred_fallthru
    _
  // Predicated region
  $region34: #{model_forward_impl.1} parent=0 // pred_check
    _
  $region35: #{model_forward_impl.1} parent=0 // pred_check_branch
    %40 = sbr.rel (0) target = $region37
  $region36: #{model_forward_impl.1} parent=0 // pred_region
    _
  $region37: #{model_forward_impl.1} parent=0 // pred_fallthru
    _
  // Predicated region
  $region38: #{model_forward_impl.1} parent=0 // pred_check
    _
  $region39: #{model_forward_impl.1} parent=0 // pred_check_branch
    %42 = sbr.rel (0) target = $region41
  $region40: #{model_forward_impl.1} parent=0 // pred_region
    _
  $region41: #{model_forward_impl.1} parent=0 // pred_fallthru
    _
  // Predicated region
  $region42: #{model_forward_impl.1} parent=0 // pred_check
    _
  $region43: #{model_forward_impl.1} parent=0 // pred_check_branch
    %44 = sbr.rel (0) target = $region45
  $region44: #{model_forward_impl.1} parent=0 // pred_region
    _
  $region45: #{model_forward_impl.1} parent=0 // pred_fallthru
    _
  // Predicated region
  $region46: #{model_forward_impl.1} parent=0 // pred_check
    _
  $region47: #{model_forward_impl.1} parent=0 // pred_check_branch
    %46 = sbr.rel (0) target = $region49
  $region48: #{model_forward_impl.1} parent=0 // pred_region
    _
  $region49: #{model_forward_impl.1} parent=0 // pred_fallthru
    _
  %v47 = vld [vmem:[%s4] sm:$0xff]
  %v48 = vld [vmem:[%s4 + $0x8] sm:$0xff]
  %v49 = vld [vmem:[%s4 + $0x10] sm:$0xff]
  %v50 = vld [vmem:[%s4 + $0x18] sm:$0xff]
  %v51 = vld [vmem:[%s4 + $0x20] sm:$0xff]
  %v52 = vld [vmem:[%s4 + $0x28] sm:$0xff]
  %v53 = vld [vmem:[%s4 + $0x30] sm:$0xff]
  %v54 = vld [vmem:[%s4 + $0x38] sm:$0xff]
  %v55 = vld [vmem:[%s4 + $0x40] sm:$0xff]
  %v56 = vld [vmem:[%s4 + $0x48] sm:$0xff]
  %v57 = vld [vmem:[%s4 + $0x50] sm:$0xff]
  %v58 = vld [vmem:[%s4 + $0x58] sm:$0xff]
  %v59 = vld [vmem:[%s4 + $0x60] sm:$0xff]
  %v60 = vld [vmem:[%s4 + $0x68] sm:$0xff]
  %v61 = vld [vmem:[%s4 + $0x70] sm:$0xff]
  %v62 = vld [vmem:[%s4 + $0x78] sm:$0xff]
  %v63 = vld [vmem:[%s5] sm:$0xff]
  %v64 = vld [vmem:[%s5 + $0x8] sm:$0xff]
  %v65 = vld [vmem:[%s5 + $0x10] sm:$0xff]
  %v66 = vld [vmem:[%s5 + $0x18] sm:$0xff]
  %v67 = vld [vmem:[%s5 + $0x20] sm:$0xff]
  %v68 = vld [vmem:[%s5 + $0x28] sm:$0xff]
  %v69 = vld [vmem:[%s5 + $0x30] sm:$0xff]
  %v70 = vld [vmem:[%s5 + $0x38] sm:$0xff]
  %v71 = vld [vmem:[%s5 + $0x40] sm:$0xff]
  %v72 = vld [vmem:[%s5 + $0x48] sm:$0xff]
  %v73 = vld [vmem:[%s5 + $0x50] sm:$0xff]
  %v74 = vld [vmem:[%s5 + $0x58] sm:$0xff]
  %v75 = vld [vmem:[%s5 + $0x60] sm:$0xff]
  %v76 = vld [vmem:[%s5 + $0x68] sm:$0xff]
  %v77 = vld [vmem:[%s5 + $0x70] sm:$0xff]
  %v78 = vld [vmem:[%s5 + $0x78] sm:$0xff]
  %v79 = vld [vmem:[%s5 + $0x80] sm:$0xff]
  %v80 = vld [vmem:[%s5 + $0x88] sm:$0xff]
  %v81 = vld [vmem:[%s5 + $0x90] sm:$0xff]
  %v82 = vld [vmem:[%s5 + $0x98] sm:$0xff]
  %v83 = vld [vmem:[%s5 + $0xa0] sm:$0xff]
  %v84 = vld [vmem:[%s5 + $0xa8] sm:$0xff]
  %v85 = vld [vmem:[%s5 + $0xb0] sm:$0xff]
  %v86 = vld [vmem:[%s5 + $0xb8] sm:$0xff]
  %v87 = vld [vmem:[%s5 + $0xc0] sm:$0xff]
  %v88 = vld [vmem:[%s5 + $0xc8] sm:$0xff]
  %v89 = vld [vmem:[%s5 + $0xd0] sm:$0xff]
  %v90 = vld [vmem:[%s5 + $0xd8] sm:$0xff]
  %v91 = vld [vmem:[%s5 + $0xe0] sm:$0xff]
  %v92 = vld [vmem:[%s5 + $0xe8] sm:$0xff]
  %v93 = vld [vmem:[%s5 + $0xf0] sm:$0xff]
  %v94 = vld [vmem:[%s5 + $0xf8] sm:$0xff]
  %v95 = vld [vmem:[%s6] sm:$0x3]
  %v96 = vld [vmem:[%s7] sm:$0x1]
  %v97 = vld [vmem:[#allocation2] sm:$0x1]
  %v98 = vld [vmem:[#allocation3] sm:$0x1]
  %v99 = vld [vmem:[%s10] sm:$0xff]
  %v100 = vld [vmem:[%s10 + $0x8] sm:$0xff]
  %v101 = vld [vmem:[%s10 + $0x10] sm:$0xff]
  %v102 = vld [vmem:[%s10 + $0x18] sm:$0xff]
  %v103 = vld [vmem:[%s11] sm:$0x1]
  %v104 = vlaneseq
  %v105 = vand.u32 %v104, 127
  %v106 = vadd.s32 %v105, 128
  %vm107 = vcmp.ge.s32.totalorder %v105, 128
  %vm108 = vcmp.ge.s32.totalorder %v106, 128
  %vm109 = vcmp.lt.s32.totalorder %v105, 192
  %vm110 = vcmp.lt.s32.totalorder %v106, 192
  %vm111 = vmand %vm107, %vm109
  %vm112 = vmand %vm108, %vm110
  %v113 = vld [vmem:[%s2] sm:$0x3]
  %115 = vrot.lane.b32.xlu0 %v113, 32
  %v116 = vpop.permute.xlu0 %115
  %vm118 = vcmask 261120
  %v119 = vsel %vm118, %v113, %v116
  %s120 = scalar_lea.vmem %s2, 2
  %v121 = vld [vmem:[%s120] sm:$0x3]
  %123 = vrot.lane.b32.xlu0 %v121, 32
  %v124 = vpop.permute.xlu0 %123
  %v126 = vsel %vm118, %v121, %v124
  %v127 = vld [vmem:[%s3] sm:$0x3]
  %129 = vrot.lane.b32.xlu0 %v127, 32
  %v130 = vpop.permute.xlu0 %129
  %v132 = vsel %vm118, %v127, %v130
  %s133 = scalar_lea.vmem %s3, 2
  %v134 = vld [vmem:[%s133] sm:$0x3]
  %136 = vrot.lane.b32.xlu0 %v134, 32
  %v137 = vpop.permute.xlu0 %136
  %v139 = vsel %vm118, %v134, %v137
  %v140 = vld [vmem:[%s0] sm:$0xf]
  %vm141 = vcmask 523264
  %v143 = vsel %vm141, %v119, 0
  %145 = vmatprep.subr.mxu0 %v48
  %146 = vmatpush1.msra.mxu0 %v47
  %147 = vmatprep.subr.mxu0 %v50
  %148 = vmatpush1.msra.mxu0 %v49
  %149 = vmatprep.subr.mxu0 %v52
  %150 = vmatpush1.msra.mxu0 %v51
  %151 = vmatprep.subr.mxu0 %v54
  %152 = vmatpush1.msra.mxu0 %v53
  %153 = vmatprep.subr.mxu0 %v56
  %154 = vmatpush1.msra.mxu0 %v55
  %155 = vmatprep.subr.mxu0 %v58
  %156 = vmatpush1.msra.mxu0 %v57
  %157 = vmatprep.subr.mxu0 %v60
  %158 = vmatpush1.msra.mxu0 %v59
  %159 = vmatprep.subr.mxu0 %v62
  %160 = vmatpush1.msra.mxu0 %v61
  %161 = vmatprep.subr.mxu0 0.0
  %162 = vmatpush1.msra.mxu0 0.0
  %163 = vmatprep.subr.mxu0 0.0
  %164 = vmatpush1.msra.mxu0 0.0
  %165 = vmatprep.subr.mxu0 0.0
  %166 = vmatpush1.msra.mxu0 0.0
  %167 = vmatprep.subr.mxu0 0.0
  %168 = vmatpush1.msra.mxu0 0.0
  %169 = vmatprep.subr.mxu0 0.0
  %170 = vmatpush1.msra.mxu0 0.0
  %171 = vmatprep.subr.mxu0 0.0
  %172 = vmatpush1.msra.mxu0 0.0
  %173 = vmatprep.subr.mxu0 0.0
  %174 = vmatpush1.msra.mxu0 0.0
  %175 = vmatprep.subr.mxu0 0.0
  %176 = vmatpush1.msra.mxu0 0.0
  %177 = vmatprep.subr.mxu0 0.0
  %178 = vmatpush1.msra.mxu0 0.0
  %179 = vmatprep.subr.mxu0 0.0
  %180 = vmatpush1.msra.mxu0 0.0
  %181 = vmatprep.subr.mxu0 0.0
  %182 = vmatpush1.msra.mxu0 0.0
  %183 = vmatprep.subr.mxu0 0.0
  %184 = vmatpush1.msra.mxu0 0.0
  %185 = vmatprep.subr.mxu0 0.0
  %186 = vmatpush1.msra.mxu0 0.0
  %187 = vmatprep.subr.mxu0 0.0
  %188 = vmatpush1.msra.mxu0 0.0
  %189 = vmatprep.subr.mxu0 0.0
  %190 = vmatpush1.msra.mxu0 0.0
  %191 = vmatprep.subr.mxu0 0.0
  %192 = vmatpush1.msra.mxu0 0.0
  %193 = vmatprep.subr.mxu0 0.0
  %194 = vmatpush1.msra.mxu0 0.0
  %195 = vmatprep.subr.mxu0 0.0
  %196 = vmatpush1.msra.mxu0 0.0
  %197 = vmatprep.subr.mxu0 0.0
  %198 = vmatpush1.msra.mxu0 0.0
  %199 = vmatprep.subr.mxu0 0.0
  %200 = vmatpush1.msra.mxu0 0.0
  %201 = vmatprep.subr.mxu0 0.0
  %202 = vmatpush1.msra.mxu0 0.0
  %203 = vmatprep.subr.mxu0 0.0
  %204 = vmatpush1.msra.mxu0 0.0
  %205 = vmatprep.subr.mxu0 0.0
  %206 = vmatpush1.msra.mxu0 0.0
  %207 = vmatprep.subr.mxu0 0.0
  %208 = vmatpush1.msra.mxu0 0.0
  %209 = vmatprep.mubr.f32.mxu0 0.0
  %210 = vmatmul.mubr.f32.gmra.mrb[0].mxu0 %v143
  %v211 = vpop.f32.mrb[0].mxu0
  %v212 = vadd.f32 0.0, %v211
  %v213 = vpop.f32.mrb[0].mxu0
  %v214 = vadd.f32 0.0, %v213
  %215 = vdwg.mxu0
  %v218 = vcombine.low %v212, %v214
  %v220 = vunpack.c.l.s4 1983009808
  %v221 = vunpack.c.0.s8 %v220
  %v222 = vlaneseq
  %v223 = vshrl.u32 %v222, 7
  %v224 = vsub.s32 %v221, %v223
  %v225 = vrot.slane %v218, %v224
  %v227 = vadd.f32 %v140, %v225
  %v228 = vmul.f32 %v227, 0.5
  %v231 = vunpack.c.l.s4 1983009808
  %v232 = vunpack.c.0.s8 %v231
  %v233 = vlaneseq
  %v234 = vshrl.u32 %v233, 7
  %v235 = vsub.s32 %v232, %v234
  %v236 = vrot.slane %v227, %v235
  %v237 = vcombine.high %v236, %v236
  %v242 = vunpack.c.l.s4 1983009808
  %v243 = vunpack.c.0.s8 %v242
  %v244 = vlaneseq
  %v245 = vshrl.u32 %v244, 7
  %v246 = vsub.s32 %v243, %v245
  %v247 = vrot.slane %v228, %v246
  %v248 = vcombine.high %v247, %v247
  %v251 = vsel %vm111, %v236, %v247
  %v252 = vsel %vm112, %v237, %v248
  %v253 = vtanh.pop %v251
  %v254 = vtanh.pop %v252
  %v255 = vmul.f32 %v253, 0.5
  %v256 = vmul.f32 %v254, 0.5
  %v257 = vadd.f32 %v255, 0.5
  %v258 = vadd.f32 %v256, 0.5
  %v259 = vsel %vm111, %v253, %v257
  %v260 = vsel %vm112, %v254, %v258
  %262 = vrot.lane.b32.xlu0 %v132, 64
  %v263 = vpop.permute.xlu0 %262
  %v265 = vmul.f32 %v259, %v263
  %v266 = vmul.f32 %v259, %v260
  %268 = vrot.lane.b32.xlu0 %v266, 64
  %v269 = vpop.permute.xlu0 %268
  %v271 = vadd.f32 %v265, %v269
  %v272 = vtanh.pop %v271
  %v273 = vmul.f32 %v260, %v272
  %275 = vrot.lane.b32.xlu0 %v273, 64
  %v276 = vpop.permute.xlu0 %275
  %279 = vrot.lane.b32.xlu0 %v126, 64
  %v280 = vpop.permute.xlu0 %279
  %v282 = vsel %vm141, %v276, %v280
  %v284 = vlaneseq
  %v285 = vshrl.u32 %v284, 7
  %v286 = vsub.s32 0, %v285
  %v287 = vrot.slane %v95, %v286
  %v288 = vlaneseq
  %v289 = vshrl.u32 %v288, 7
  %v290 = vsub.s32 1, %v289
  %v291 = vrot.slane %v95, %v290
  %294 = vmatprep.subr.mxu0 %v64
  %295 = vmatpush1.msra.mxu0 %v63
  %296 = vmatprep.subr.mxu0 %v66
  %297 = vmatpush1.msra.mxu0 %v65
  %298 = vmatprep.subr.mxu0 %v68
  %299 = vmatpush1.msra.mxu0 %v67
  %300 = vmatprep.subr.mxu0 %v70
  %301 = vmatpush1.msra.mxu0 %v69
  %302 = vmatprep.subr.mxu0 %v72
  %303 = vmatpush1.msra.mxu0 %v71
  %304 = vmatprep.subr.mxu0 %v74
  %305 = vmatpush1.msra.mxu0 %v73
  %306 = vmatprep.subr.mxu0 %v76
  %307 = vmatpush1.msra.mxu0 %v75
  %308 = vmatprep.subr.mxu0 %v78
  %309 = vmatpush1.msra.mxu0 %v77
  %310 = vmatprep.subr.mxu0 %v80
  %311 = vmatpush1.msra.mxu0 %v79
  %312 = vmatprep.subr.mxu0 %v82
  %313 = vmatpush1.msra.mxu0 %v81
  %314 = vmatprep.subr.mxu0 %v84
  %315 = vmatpush1.msra.mxu0 %v83
  %316 = vmatprep.subr.mxu0 %v86
  %317 = vmatpush1.msra.mxu0 %v85
  %318 = vmatprep.subr.mxu0 %v88
  %319 = vmatpush1.msra.mxu0 %v87
  %320 = vmatprep.subr.mxu0 %v90
  %321 = vmatpush1.msra.mxu0 %v89
  %322 = vmatprep.subr.mxu0 %v92
  %323 = vmatpush1.msra.mxu0 %v91
  %324 = vmatprep.subr.mxu0 %v94
  %325 = vmatpush1.msra.mxu0 %v93
  %326 = vmatprep.subr.mxu0 0.0
  %327 = vmatpush1.msra.mxu0 0.0
  %328 = vmatprep.subr.mxu0 0.0
  %329 = vmatpush1.msra.mxu0 0.0
  %330 = vmatprep.subr.mxu0 0.0
  %331 = vmatpush1.msra.mxu0 0.0
  %332 = vmatprep.subr.mxu0 0.0
  %333 = vmatpush1.msra.mxu0 0.0
  %334 = vmatprep.subr.mxu0 0.0
  %335 = vmatpush1.msra.mxu0 0.0
  %336 = vmatprep.subr.mxu0 0.0
  %337 = vmatpush1.msra.mxu0 0.0
  %338 = vmatprep.subr.mxu0 0.0
  %339 = vmatpush1.msra.mxu0 0.0
  %340 = vmatprep.subr.mxu0 0.0
  %341 = vmatpush1.msra.mxu0 0.0
  %342 = vmatprep.subr.mxu0 0.0
  %343 = vmatpush1.msra.mxu0 0.0
  %344 = vmatprep.subr.mxu0 0.0
  %345 = vmatpush1.msra.mxu0 0.0
  %346 = vmatprep.subr.mxu0 0.0
  %347 = vmatpush1.msra.mxu0 0.0
  %348 = vmatprep.subr.mxu0 0.0
  %349 = vmatpush1.msra.mxu0 0.0
  %350 = vmatprep.subr.mxu0 0.0
  %351 = vmatpush1.msra.mxu0 0.0
  %352 = vmatprep.subr.mxu0 0.0
  %353 = vmatpush1.msra.mxu0 0.0
  %354 = vmatprep.subr.mxu0 0.0
  %355 = vmatpush1.msra.mxu0 0.0
  %356 = vmatprep.subr.mxu0 0.0
  %357 = vmatpush1.msra.mxu0 0.0
  %358 = vmatprep.mubr.f32.mxu0 0.0
  %359 = vmatmul.mubr.f32.gmra.mrb[0].mxu0 %v282
  %v360 = vpop.f32.mrb[0].mxu0
  %v361 = vadd.f32 %v287, %v360
  %v362 = vpop.f32.mrb[0].mxu0
  %v363 = vadd.f32 %v291, %v362
  %364 = vdwg.mxu0
  %v365 = vmul.f32 %v361, 0.5
  %v366 = vmul.f32 %v363, 0.5
  %v367 = vsel %vm111, %v361, %v365
  %v368 = vsel %vm112, %v363, %v366
  %v369 = vtanh.pop %v367
  %v370 = vtanh.pop %v368
  %v371 = vmul.f32 %v369, 0.5
  %v372 = vmul.f32 %v370, 0.5
  %v373 = vadd.f32 %v371, 0.5
  %v374 = vadd.f32 %v372, 0.5
  %v375 = vsel %vm111, %v369, %v373
  %v376 = vsel %vm112, %v370, %v374
  %378 = vrot.lane.b32.xlu0 %v139, 64
  %v379 = vpop.permute.xlu0 %378
  %v381 = vmul.f32 %v375, %v379
  %v382 = vmul.f32 %v375, %v376
  %384 = vrot.lane.b32.xlu0 %v382, 64
  %v385 = vpop.permute.xlu0 %384
  %v387 = vadd.f32 %v381, %v385
  %v388 = vtanh.pop %v387
  %v389 = vmul.f32 %v376, %v388
  %s390 = scalar_lea.vmem %s0, 4
  %v391 = vld [vmem:[%s390] sm:$0xf]
  %v392 = vsel %vm141, %v276, 0
  %394 = vmatprep.subr.mxu0 %v48
  %395 = vmatpush1.msra.mxu0 %v47
  %396 = vmatprep.subr.mxu0 %v50
  %397 = vmatpush1.msra.mxu0 %v49
  %398 = vmatprep.subr.mxu0 %v52
  %399 = vmatpush1.msra.mxu0 %v51
  %400 = vmatprep.subr.mxu0 %v54
  %401 = vmatpush1.msra.mxu0 %v53
  %402 = vmatprep.subr.mxu0 %v56
  %403 = vmatpush1.msra.mxu0 %v55
  %404 = vmatprep.subr.mxu0 %v58
  %405 = vmatpush1.msra.mxu0 %v57
  %406 = vmatprep.subr.mxu0 %v60
  %407 = vmatpush1.msra.mxu0 %v59
  %408 = vmatprep.subr.mxu0 %v62
  %409 = vmatpush1.msra.mxu0 %v61
  %410 = vmatprep.subr.mxu0 0.0
  %411 = vmatpush1.msra.mxu0 0.0
  %412 = vmatprep.subr.mxu0 0.0
  %413 = vmatpush1.msra.mxu0 0.0
  %414 = vmatprep.subr.mxu0 0.0
  %415 = vmatpush1.msra.mxu0 0.0
  %416 = vmatprep.subr.mxu0 0.0
  %417 = vmatpush1.msra.mxu0 0.0
  %418 = vmatprep.subr.mxu0 0.0
  %419 = vmatpush1.msra.mxu0 0.0
  %420 = vmatprep.subr.mxu0 0.0
  %421 = vmatpush1.msra.mxu0 0.0
  %422 = vmatprep.subr.mxu0 0.0
  %423 = vmatpush1.msra.mxu0 0.0
  %424 = vmatprep.subr.mxu0 0.0
  %425 = vmatpush1.msra.mxu0 0.0
  %426 = vmatprep.subr.mxu0 0.0
  %427 = vmatpush1.msra.mxu0 0.0
  %428 = vmatprep.subr.mxu0 0.0
  %429 = vmatpush1.msra.mxu0 0.0
  %430 = vmatprep.subr.mxu0 0.0
  %431 = vmatpush1.msra.mxu0 0.0
  %432 = vmatprep.subr.mxu0 0.0
  %433 = vmatpush1.msra.mxu0 0.0
  %434 = vmatprep.subr.mxu0 0.0
  %435 = vmatpush1.msra.mxu0 0.0
  %436 = vmatprep.subr.mxu0 0.0
  %437 = vmatpush1.msra.mxu0 0.0
  %438 = vmatprep.subr.mxu0 0.0
  %439 = vmatpush1.msra.mxu0 0.0
  %440 = vmatprep.subr.mxu0 0.0
  %441 = vmatpush1.msra.mxu0 0.0
  %442 = vmatprep.subr.mxu0 0.0
  %443 = vmatpush1.msra.mxu0 0.0
  %444 = vmatprep.subr.mxu0 0.0
  %445 = vmatpush1.msra.mxu0 0.0
  %446 = vmatprep.subr.mxu0 0.0
  %447 = vmatpush1.msra.mxu0 0.0
  %448 = vmatprep.subr.mxu0 0.0
  %449 = vmatpush1.msra.mxu0 0.0
  %450 = vmatprep.subr.mxu0 0.0
  %451 = vmatpush1.msra.mxu0 0.0
  %452 = vmatprep.subr.mxu0 0.0
  %453 = vmatpush1.msra.mxu0 0.0
  %454 = vmatprep.subr.mxu0 0.0
  %455 = vmatpush1.msra.mxu0 0.0
  %456 = vmatprep.subr.mxu0 0.0
  %457 = vmatpush1.msra.mxu0 0.0
  %458 = vmatprep.mubr.f32.mxu0 0.0
  %459 = vmatmul.mubr.f32.gmra.mrb[0].mxu0 %v392
  %v460 = vpop.f32.mrb[0].mxu0
  %v461 = vadd.f32 0.0, %v460
  %v462 = vpop.f32.mrb[0].mxu0
  %v463 = vadd.f32 0.0, %v462
  %464 = vdwg.mxu0
  %v467 = vcombine.low %v461, %v463
  %v469 = vunpack.c.l.s4 1983009808
  %v470 = vunpack.c.0.s8 %v469
  %v471 = vlaneseq
  %v472 = vshrl.u32 %v471, 7
  %v473 = vsub.s32 %v470, %v472
  %v474 = vrot.slane %v467, %v473
  %v476 = vadd.f32 %v391, %v474
  %v477 = vmul.f32 %v476, 0.5
  %v480 = vunpack.c.l.s4 1983009808
  %v481 = vunpack.c.0.s8 %v480
  %v482 = vlaneseq
  %v483 = vshrl.u32 %v482, 7
  %v484 = vsub.s32 %v481, %v483
  %v485 = vrot.slane %v476, %v484
  %v486 = vcombine.high %v485, %v485
  %v491 = vunpack.c.l.s4 1983009808
  %v492 = vunpack.c.0.s8 %v491
  %v493 = vlaneseq
  %v494 = vshrl.u32 %v493, 7
  %v495 = vsub.s32 %v492, %v494
  %v496 = vrot.slane %v477, %v495
  %v497 = vcombine.high %v496, %v496
  %v500 = vsel %vm111, %v485, %v496
  %v501 = vsel %vm112, %v486, %v497
  %v502 = vtanh.pop %v500
  %v503 = vtanh.pop %v501
  %v504 = vmul.f32 %v502, 0.5
  %v505 = vmul.f32 %v503, 0.5
  %v506 = vadd.f32 %v504, 0.5
  %v507 = vadd.f32 %v505, 0.5
  %v508 = vsel %vm111, %v502, %v506
  %v509 = vsel %vm112, %v503, %v507
  %v510 = vmul.f32 %v508, %v271
  %v511 = vmul.f32 %v508, %v509
  %513 = vrot.lane.b32.xlu0 %v511, 64
  %v514 = vpop.permute.xlu0 %513
  %v516 = vadd.f32 %v510, %v514
  %v517 = vtanh.pop %v516
  %v518 = vmul.f32 %v509, %v517
  %520 = vrot.lane.b32.xlu0 %v518, 64
  %v521 = vpop.permute.xlu0 %520
  %v523 = vsel %vm141, %v521, %v389
  %524 = vmatprep.subr.mxu0 %v64
  %525 = vmatpush1.msra.mxu0 %v63
  %526 = vmatprep.subr.mxu0 %v66
  %527 = vmatpush1.msra.mxu0 %v65
  %528 = vmatprep.subr.mxu0 %v68
  %529 = vmatpush1.msra.mxu0 %v67
  %530 = vmatprep.subr.mxu0 %v70
  %531 = vmatpush1.msra.mxu0 %v69
  %532 = vmatprep.subr.mxu0 %v72
  %533 = vmatpush1.msra.mxu0 %v71
  %534 = vmatprep.subr.mxu0 %v74
  %535 = vmatpush1.msra.mxu0 %v73
  %536 = vmatprep.subr.mxu0 %v76
  %537 = vmatpush1.msra.mxu0 %v75
  %538 = vmatprep.subr.mxu0 %v78
  %539 = vmatpush1.msra.mxu0 %v77
  %540 = vmatprep.subr.mxu0 %v80
  %541 = vmatpush1.msra.mxu0 %v79
  %542 = vmatprep.subr.mxu0 %v82
  %543 = vmatpush1.msra.mxu0 %v81
  %544 = vmatprep.subr.mxu0 %v84
  %545 = vmatpush1.msra.mxu0 %v83
  %546 = vmatprep.subr.mxu0 %v86
  %547 = vmatpush1.msra.mxu0 %v85
  %548 = vmatprep.subr.mxu0 %v88
  %549 = vmatpush1.msra.mxu0 %v87
  %550 = vmatprep.subr.mxu0 %v90
  %551 = vmatpush1.msra.mxu0 %v89
  %552 = vmatprep.subr.mxu0 %v92
  %553 = vmatpush1.msra.mxu0 %v91
  %554 = vmatprep.subr.mxu0 %v94
  %555 = vmatpush1.msra.mxu0 %v93
  %556 = vmatprep.subr.mxu0 0.0
  %557 = vmatpush1.msra.mxu0 0.0
  %558 = vmatprep.subr.mxu0 0.0
  %559 = vmatpush1.msra.mxu0 0.0
  %560 = vmatprep.subr.mxu0 0.0
  %561 = vmatpush1.msra.mxu0 0.0
  %562 = vmatprep.subr.mxu0 0.0
  %563 = vmatpush1.msra.mxu0 0.0
  %564 = vmatprep.subr.mxu0 0.0
  %565 = vmatpush1.msra.mxu0 0.0
  %566 = vmatprep.subr.mxu0 0.0
  %567 = vmatpush1.msra.mxu0 0.0
  %568 = vmatprep.subr.mxu0 0.0
  %569 = vmatpush1.msra.mxu0 0.0
  %570 = vmatprep.subr.mxu0 0.0
  %571 = vmatpush1.msra.mxu0 0.0
  %572 = vmatprep.subr.mxu0 0.0
  %573 = vmatpush1.msra.mxu0 0.0
  %574 = vmatprep.subr.mxu0 0.0
  %575 = vmatpush1.msra.mxu0 0.0
  %576 = vmatprep.subr.mxu0 0.0
  %577 = vmatpush1.msra.mxu0 0.0
  %578 = vmatprep.subr.mxu0 0.0
  %579 = vmatpush1.msra.mxu0 0.0
  %580 = vmatprep.subr.mxu0 0.0
  %581 = vmatpush1.msra.mxu0 0.0
  %582 = vmatprep.subr.mxu0 0.0
  %583 = vmatpush1.msra.mxu0 0.0
  %584 = vmatprep.subr.mxu0 0.0
  %585 = vmatpush1.msra.mxu0 0.0
  %586 = vmatprep.subr.mxu0 0.0
  %587 = vmatpush1.msra.mxu0 0.0
  %588 = vmatprep.mubr.f32.mxu0 0.0
  %589 = vmatmul.mubr.f32.gmra.mrb[0].mxu0 %v523
  %v590 = vpop.f32.mrb[0].mxu0
  %v591 = vadd.f32 %v287, %v590
  %v592 = vpop.f32.mrb[0].mxu0
  %v593 = vadd.f32 %v291, %v592
  %594 = vdwg.mxu0
  %v595 = vmul.f32 %v591, 0.5
  %v596 = vmul.f32 %v593, 0.5
  %v597 = vsel %vm111, %v591, %v595
  %v598 = vsel %vm112, %v593, %v596
  %v599 = vtanh.pop %v597
  %v600 = vtanh.pop %v598
  %v601 = vmul.f32 %v599, 0.5
  %v602 = vmul.f32 %v600, 0.5
  %v603 = vadd.f32 %v601, 0.5
  %v604 = vadd.f32 %v602, 0.5
  %v605 = vsel %vm111, %v599, %v603
  %v606 = vsel %vm112, %v600, %v604
  %v607 = vmul.f32 %v605, %v387
  %v608 = vmul.f32 %v605, %v606
  %610 = vrot.lane.b32.xlu0 %v608, 64
  %v611 = vpop.permute.xlu0 %610
  %v613 = vadd.f32 %v607, %v611
  %v614 = vtanh.pop %v613
  %v615 = vmul.f32 %v606, %v614
  %s616 = scalar_lea.vmem %s0, 8
  %v617 = vld [vmem:[%s616] sm:$0xf]
  %v618 = vsel %vm141, %v521, 0
  %620 = vmatprep.subr.mxu0 %v48
  %621 = vmatpush1.msra.mxu0 %v47
  %622 = vmatprep.subr.mxu0 %v50
  %623 = vmatpush1.msra.mxu0 %v49
  %624 = vmatprep.subr.mxu0 %v52
  %625 = vmatpush1.msra.mxu0 %v51
  %626 = vmatprep.subr.mxu0 %v54
  %627 = vmatpush1.msra.mxu0 %v53
  %628 = vmatprep.subr.mxu0 %v56
  %629 = vmatpush1.msra.mxu0 %v55
  %630 = vmatprep.subr.mxu0 %v58
  %631 = vmatpush1.msra.mxu0 %v57
  %632 = vmatprep.subr.mxu0 %v60
  %633 = vmatpush1.msra.mxu0 %v59
  %634 = vmatprep.subr.mxu0 %v62
  %635 = vmatpush1.msra.mxu0 %v61
  %636 = vmatprep.subr.mxu0 0.0
  %637 = vmatpush1.msra.mxu0 0.0
  %638 = vmatprep.subr.mxu0 0.0
  %639 = vmatpush1.msra.mxu0 0.0
  %640 = vmatprep.subr.mxu0 0.0
  %641 = vmatpush1.msra.mxu0 0.0
  %642 = vmatprep.subr.mxu0 0.0
  %643 = vmatpush1.msra.mxu0 0.0
  %644 = vmatprep.subr.mxu0 0.0
  %645 = vmatpush1.msra.mxu0 0.0
  %646 = vmatprep.subr.mxu0 0.0
  %647 = vmatpush1.msra.mxu0 0.0
  %648 = vmatprep.subr.mxu0 0.0
  %649 = vmatpush1.msra.mxu0 0.0
  %650 = vmatprep.subr.mxu0 0.0
  %651 = vmatpush1.msra.mxu0 0.0
  %652 = vmatprep.subr.mxu0 0.0
  %653 = vmatpush1.msra.mxu0 0.0
  %654 = vmatprep.subr.mxu0 0.0
  %655 = vmatpush1.msra.mxu0 0.0
  %656 = vmatprep.subr.mxu0 0.0
  %657 = vmatpush1.msra.mxu0 0.0
  %658 = vmatprep.subr.mxu0 0.0
  %659 = vmatpush1.msra.mxu0 0.0
  %660 = vmatprep.subr.mxu0 0.0
  %661 = vmatpush1.msra.mxu0 0.0
  %662 = vmatprep.subr.mxu0 0.0
  %663 = vmatpush1.msra.mxu0 0.0
  %664 = vmatprep.subr.mxu0 0.0
  %665 = vmatpush1.msra.mxu0 0.0
  %666 = vmatprep.subr.mxu0 0.0
  %667 = vmatpush1.msra.mxu0 0.0
  %668 = vmatprep.subr.mxu0 0.0
  %669 = vmatpush1.msra.mxu0 0.0
  %670 = vmatprep.subr.mxu0 0.0
  %671 = vmatpush1.msra.mxu0 0.0
  %672 = vmatprep.subr.mxu0 0.0
  %673 = vmatpush1.msra.mxu0 0.0
  %674 = vmatprep.subr.mxu0 0.0
  %675 = vmatpush1.msra.mxu0 0.0
  %676 = vmatprep.subr.mxu0 0.0
  %677 = vmatpush1.msra.mxu0 0.0
  %678 = vmatprep.subr.mxu0 0.0
  %679 = vmatpush1.msra.mxu0 0.0
  %680 = vmatprep.subr.mxu0 0.0
  %681 = vmatpush1.msra.mxu0 0.0
  %682 = vmatprep.subr.mxu0 0.0
  %683 = vmatpush1.msra.mxu0 0.0
  %684 = vmatprep.mubr.f32.mxu0 0.0
  %685 = vmatmul.mubr.f32.gmra.mrb[0].mxu0 %v618
  %v686 = vpop.f32.mrb[0].mxu0
  %v687 = vadd.f32 0.0, %v686
  %v688 = vpop.f32.mrb[0].mxu0
  %v689 = vadd.f32 0.0, %v688
  %690 = vdwg.mxu0
  %v693 = vcombine.low %v687, %v689
  %v695 = vunpack.c.l.s4 1983009808
  %v696 = vunpack.c.0.s8 %v695
  %v697 = vlaneseq
  %v698 = vshrl.u32 %v697, 7
  %v699 = vsub.s32 %v696, %v698
  %v700 = vrot.slane %v693, %v699
  %v702 = vadd.f32 %v617, %v700
  %v703 = vmul.f32 %v702, 0.5
  %v706 = vunpack.c.l.s4 1983009808
  %v707 = vunpack.c.0.s8 %v706
  %v708 = vlaneseq
  %v709 = vshrl.u32 %v708, 7
  %v710 = vsub.s32 %v707, %v709
  %v711 = vrot.slane %v702, %v710
  %v712 = vcombine.high %v711, %v711
  %v717 = vunpack.c.l.s4 1983009808
  %v718 = vunpack.c.0.s8 %v717
  %v719 = vlaneseq
  %v720 = vshrl.u32 %v719, 7
  %v721 = vsub.s32 %v718, %v720
  %v722 = vrot.slane %v703, %v721
  %v723 = vcombine.high %v722, %v722
  %v726 = vsel %vm111, %v711, %v722
  %v727 = vsel %vm112, %v712, %v723
  %v728 = vtanh.pop %v726
  %v729 = vtanh.pop %v727
  %v730 = vmul.f32 %v728, 0.5
  %v731 = vmul.f32 %v729, 0.5
  %v732 = vadd.f32 %v730, 0.5
  %v733 = vadd.f32 %v731, 0.5
  %v734 = vsel %vm111, %v728, %v732
  %v735 = vsel %vm112, %v729, %v733
  %v736 = vmul.f32 %v734, %v516
  %v737 = vmul.f32 %v734, %v735
  %739 = vrot.lane.b32.xlu0 %v737, 64
  %v740 = vpop.permute.xlu0 %739
  %v742 = vadd.f32 %v736, %v740
  %v743 = vtanh.pop %v742
  %v744 = vmul.f32 %v735, %v743
  %746 = vrot.lane.b32.xlu0 %v744, 64
  %v747 = vpop.permute.xlu0 %746
  %v749 = vsel %vm141, %v747, %v615
  %750 = vmatprep.subr.mxu0 %v64
  %751 = vmatpush1.msra.mxu0 %v63
  %752 = vmatprep.subr.mxu0 %v66
  %753 = vmatpush1.msra.mxu0 %v65
  %754 = vmatprep.subr.mxu0 %v68
  %755 = vmatpush1.msra.mxu0 %v67
  %756 = vmatprep.subr.mxu0 %v70
  %757 = vmatpush1.msra.mxu0 %v69
  %758 = vmatprep.subr.mxu0 %v72
  %759 = vmatpush1.msra.mxu0 %v71
  %760 = vmatprep.subr.mxu0 %v74
  %761 = vmatpush1.msra.mxu0 %v73
  %762 = vmatprep.subr.mxu0 %v76
  %763 = vmatpush1.msra.mxu0 %v75
  %764 = vmatprep.subr.mxu0 %v78
  %765 = vmatpush1.msra.mxu0 %v77
  %766 = vmatprep.subr.mxu0 %v80
  %767 = vmatpush1.msra.mxu0 %v79
  %768 = vmatprep.subr.mxu0 %v82
  %769 = vmatpush1.msra.mxu0 %v81
  %770 = vmatprep.subr.mxu0 %v84
  %771 = vmatpush1.msra.mxu0 %v83
  %772 = vmatprep.subr.mxu0 %v86
  %773 = vmatpush1.msra.mxu0 %v85
  %774 = vmatprep.subr.mxu0 %v88
  %775 = vmatpush1.msra.mxu0 %v87
  %776 = vmatprep.subr.mxu0 %v90
  %777 = vmatpush1.msra.mxu0 %v89
  %778 = vmatprep.subr.mxu0 %v92
  %779 = vmatpush1.msra.mxu0 %v91
  %780 = vmatprep.subr.mxu0 %v94
  %781 = vmatpush1.msra.mxu0 %v93
  %782 = vmatprep.subr.mxu0 0.0
  %783 = vmatpush1.msra.mxu0 0.0
  %784 = vmatprep.subr.mxu0 0.0
  %785 = vmatpush1.msra.mxu0 0.0
  %786 = vmatprep.subr.mxu0 0.0
  %787 = vmatpush1.msra.mxu0 0.0
  %788 = vmatprep.subr.mxu0 0.0
  %789 = vmatpush1.msra.mxu0 0.0
  %790 = vmatprep.subr.mxu0 0.0
  %791 = vmatpush1.msra.mxu0 0.0
  %792 = vmatprep.subr.mxu0 0.0
  %793 = vmatpush1.msra.mxu0 0.0
  %794 = vmatprep.subr.mxu0 0.0
  %795 = vmatpush1.msra.mxu0 0.0
  %796 = vmatprep.subr.mxu0 0.0
  %797 = vmatpush1.msra.mxu0 0.0
  %798 = vmatprep.subr.mxu0 0.0
  %799 = vmatpush1.msra.mxu0 0.0
  %800 = vmatprep.subr.mxu0 0.0
  %801 = vmatpush1.msra.mxu0 0.0
  %802 = vmatprep.subr.mxu0 0.0
  %803 = vmatpush1.msra.mxu0 0.0
  %804 = vmatprep.subr.mxu0 0.0
  %805 = vmatpush1.msra.mxu0 0.0
  %806 = vmatprep.subr.mxu0 0.0
  %807 = vmatpush1.msra.mxu0 0.0
  %808 = vmatprep.subr.mxu0 0.0
  %809 = vmatpush1.msra.mxu0 0.0
  %810 = vmatprep.subr.mxu0 0.0
  %811 = vmatpush1.msra.mxu0 0.0
  %812 = vmatprep.subr.mxu0 0.0
  %813 = vmatpush1.msra.mxu0 0.0
  %814 = vmatprep.mubr.f32.mxu0 0.0
  %815 = vmatmul.mubr.f32.gmra.mrb[0].mxu0 %v749
  %v816 = vpop.f32.mrb[0].mxu0
  %v817 = vadd.f32 %v287, %v816
  %v818 = vpop.f32.mrb[0].mxu0
  %v819 = vadd.f32 %v291, %v818
  %820 = vdwg.mxu0
  %v821 = vmul.f32 %v817, 0.5
  %v822 = vmul.f32 %v819, 0.5
  %v823 = vsel %vm111, %v817, %v821
  %v824 = vsel %vm112, %v819, %v822
  %v825 = vtanh.pop %v823
  %v826 = vtanh.pop %v824
  %v827 = vmul.f32 %v825, 0.5
  %v828 = vmul.f32 %v826, 0.5
  %v829 = vadd.f32 %v827, 0.5
  %v830 = vadd.f32 %v828, 0.5
  %v831 = vsel %vm111, %v825, %v829
  %v832 = vsel %vm112, %v826, %v830
  %v833 = vmul.f32 %v831, %v613
  %v834 = vmul.f32 %v831, %v832
  %836 = vrot.lane.b32.xlu0 %v834, 64
  %v837 = vpop.permute.xlu0 %836
  %v839 = vadd.f32 %v833, %v837
  %v840 = vtanh.pop %v839
  %v841 = vmul.f32 %v832, %v840
  %s842 = scalar_lea.vmem %s0, 12
  %v843 = vld [vmem:[%s842] sm:$0xf]
  %v844 = vsel %vm141, %v747, 0
  %846 = vmatprep.subr.mxu0 %v48
  %847 = vmatpush1.msra.mxu0 %v47
  %848 = vmatprep.subr.mxu0 %v50
  %849 = vmatpush1.msra.mxu0 %v49
  %850 = vmatprep.subr.mxu0 %v52
  %851 = vmatpush1.msra.mxu0 %v51
  %852 = vmatprep.subr.mxu0 %v54
  %853 = vmatpush1.msra.mxu0 %v53
  %854 = vmatprep.subr.mxu0 %v56
  %855 = vmatpush1.msra.mxu0 %v55
  %856 = vmatprep.subr.mxu0 %v58
  %857 = vmatpush1.msra.mxu0 %v57
  %858 = vmatprep.subr.mxu0 %v60
  %859 = vmatpush1.msra.mxu0 %v59
  %860 = vmatprep.subr.mxu0 %v62
  %861 = vmatpush1.msra.mxu0 %v61
  %862 = vmatprep.subr.mxu0 0.0
  %863 = vmatpush1.msra.mxu0 0.0
  %864 = vmatprep.subr.mxu0 0.0
  %865 = vmatpush1.msra.mxu0 0.0
  %866 = vmatprep.subr.mxu0 0.0
  %867 = vmatpush1.msra.mxu0 0.0
  %868 = vmatprep.subr.mxu0 0.0
  %869 = vmatpush1.msra.mxu0 0.0
  %870 = vmatprep.subr.mxu0 0.0
  %871 = vmatpush1.msra.mxu0 0.0
  %872 = vmatprep.subr.mxu0 0.0
  %873 = vmatpush1.msra.mxu0 0.0
  %874 = vmatprep.subr.mxu0 0.0
  %875 = vmatpush1.msra.mxu0 0.0
  %876 = vmatprep.subr.mxu0 0.0
  %877 = vmatpush1.msra.mxu0 0.0
  %878 = vmatprep.subr.mxu0 0.0
  %879 = vmatpush1.msra.mxu0 0.0
  %880 = vmatprep.subr.mxu0 0.0
  %881 = vmatpush1.msra.mxu0 0.0
  %882 = vmatprep.subr.mxu0 0.0
  %883 = vmatpush1.msra.mxu0 0.0
  %884 = vmatprep.subr.mxu0 0.0
  %885 = vmatpush1.msra.mxu0 0.0
  %886 = vmatprep.subr.mxu0 0.0
  %887 = vmatpush1.msra.mxu0 0.0
  %888 = vmatprep.subr.mxu0 0.0
  %889 = vmatpush1.msra.mxu0 0.0
  %890 = vmatprep.subr.mxu0 0.0
  %891 = vmatpush1.msra.mxu0 0.0
  %892 = vmatprep.subr.mxu0 0.0
  %893 = vmatpush1.msra.mxu0 0.0
  %894 = vmatprep.subr.mxu0 0.0
  %895 = vmatpush1.msra.mxu0 0.0
  %896 = vmatprep.subr.mxu0 0.0
  %897 = vmatpush1.msra.mxu0 0.0
  %898 = vmatprep.subr.mxu0 0.0
  %899 = vmatpush1.msra.mxu0 0.0
  %900 = vmatprep.subr.mxu0 0.0
  %901 = vmatpush1.msra.mxu0 0.0
  %902 = vmatprep.subr.mxu0 0.0
  %903 = vmatpush1.msra.mxu0 0.0
  %904 = vmatprep.subr.mxu0 0.0
  %905 = vmatpush1.msra.mxu0 0.0
  %906 = vmatprep.subr.mxu0 0.0
  %907 = vmatpush1.msra.mxu0 0.0
  %908 = vmatprep.subr.mxu0 0.0
  %909 = vmatpush1.msra.mxu0 0.0
  %910 = vmatprep.mubr.f32.mxu0 0.0
  %911 = vmatmul.mubr.f32.gmra.mrb[0].mxu0 %v844
  %v912 = vpop.f32.mrb[0].mxu0
  %v913 = vadd.f32 0.0, %v912
  %v914 = vpop.f32.mrb[0].mxu0
  %v915 = vadd.f32 0.0, %v914
  %916 = vdwg.mxu0
  %v919 = vcombine.low %v913, %v915
  %v921 = vunpack.c.l.s4 1983009808
  %v922 = vunpack.c.0.s8 %v921
  %v923 = vlaneseq
  %v924 = vshrl.u32 %v923, 7
  %v925 = vsub.s32 %v922, %v924
  %v926 = vrot.slane %v919, %v925
  %v928 = vadd.f32 %v843, %v926
  %v929 = vmul.f32 %v928, 0.5
  %v932 = vunpack.c.l.s4 1983009808
  %v933 = vunpack.c.0.s8 %v932
  %v934 = vlaneseq
  %v935 = vshrl.u32 %v934, 7
  %v936 = vsub.s32 %v933, %v935
  %v937 = vrot.slane %v928, %v936
  %v938 = vcombine.high %v937, %v937
  %v943 = vunpack.c.l.s4 1983009808
  %v944 = vunpack.c.0.s8 %v943
  %v945 = vlaneseq
  %v946 = vshrl.u32 %v945, 7
  %v947 = vsub.s32 %v944, %v946
  %v948 = vrot.slane %v929, %v947
  %v949 = vcombine.high %v948, %v948
  %v952 = vsel %vm111, %v937, %v948
  %v953 = vsel %vm112, %v938, %v949
  %v954 = vtanh.pop %v952
  %v955 = vtanh.pop %v953
  %v956 = vmul.f32 %v954, 0.5
  %v957 = vmul.f32 %v955, 0.5
  %v958 = vadd.f32 %v956, 0.5
  %v959 = vadd.f32 %v957, 0.5
  %v960 = vsel %vm111, %v954, %v958
  %v961 = vsel %vm112, %v955, %v959
  %v962 = vmul.f32 %v960, %v742
  %v963 = vmul.f32 %v960, %v961
  %965 = vrot.lane.b32.xlu0 %v963, 64
  %v966 = vpop.permute.xlu0 %965
  %v968 = vadd.f32 %v962, %v966
  %v969 = vtanh.pop %v968
  %v970 = vmul.f32 %v961, %v969
  %972 = vrot.lane.b32.xlu0 %v970, 64
  %v973 = vpop.permute.xlu0 %972
  %v975 = vsel %vm141, %v973, %v841
  %976 = vmatprep.subr.mxu0 %v64
  %977 = vmatpush1.msra.mxu0 %v63
  %978 = vmatprep.subr.mxu0 %v66
  %979 = vmatpush1.msra.mxu0 %v65
  %980 = vmatprep.subr.mxu0 %v68
  %981 = vmatpush1.msra.mxu0 %v67
  %982 = vmatprep.subr.mxu0 %v70
  %983 = vmatpush1.msra.mxu0 %v69
  %984 = vmatprep.subr.mxu0 %v72
  %985 = vmatpush1.msra.mxu0 %v71
  %986 = vmatprep.subr.mxu0 %v74
  %987 = vmatpush1.msra.mxu0 %v73
  %988 = vmatprep.subr.mxu0 %v76
  %989 = vmatpush1.msra.mxu0 %v75
  %990 = vmatprep.subr.mxu0 %v78
  %991 = vmatpush1.msra.mxu0 %v77
  %992 = vmatprep.subr.mxu0 %v80
  %993 = vmatpush1.msra.mxu0 %v79
  %994 = vmatprep.subr.mxu0 %v82
  %995 = vmatpush1.msra.mxu0 %v81
  %996 = vmatprep.subr.mxu0 %v84
  %997 = vmatpush1.msra.mxu0 %v83
  %998 = vmatprep.subr.mxu0 %v86
  %999 = vmatpush1.msra.mxu0 %v85
  %1000 = vmatprep.subr.mxu0 %v88
  %1001 = vmatpush1.msra.mxu0 %v87
  %1002 = vmatprep.subr.mxu0 %v90
  %1003 = vmatpush1.msra.mxu0 %v89
  %1004 = vmatprep.subr.mxu0 %v92
  %1005 = vmatpush1.msra.mxu0 %v91
  %1006 = vmatprep.subr.mxu0 %v94
  %1007 = vmatpush1.msra.mxu0 %v93
  %1008 = vmatprep.subr.mxu0 0.0
  %1009 = vmatpush1.msra.mxu0 0.0
  %1010 = vmatprep.subr.mxu0 0.0
  %1011 = vmatpush1.msra.mxu0 0.0
  %1012 = vmatprep.subr.mxu0 0.0
  %1013 = vmatpush1.msra.mxu0 0.0
  %1014 = vmatprep.subr.mxu0 0.0
  %1015 = vmatpush1.msra.mxu0 0.0
  %1016 = vmatprep.subr.mxu0 0.0
  %1017 = vmatpush1.msra.mxu0 0.0
  %1018 = vmatprep.subr.mxu0 0.0
  %1019 = vmatpush1.msra.mxu0 0.0
  %1020 = vmatprep.subr.mxu0 0.0
  %1021 = vmatpush1.msra.mxu0 0.0
  %1022 = vmatprep.subr.mxu0 0.0
  %1023 = vmatpush1.msra.mxu0 0.0
  %1024 = vmatprep.subr.mxu0 0.0
  %1025 = vmatpush1.msra.mxu0 0.0
  %1026 = vmatprep.subr.mxu0 0.0
  %1027 = vmatpush1.msra.mxu0 0.0
  %1028 = vmatprep.subr.mxu0 0.0
  %1029 = vmatpush1.msra.mxu0 0.0
  %1030 = vmatprep.subr.mxu0 0.0
  %1031 = vmatpush1.msra.mxu0 0.0
  %1032 = vmatprep.subr.mxu0 0.0
  %1033 = vmatpush1.msra.mxu0 0.0
  %1034 = vmatprep.subr.mxu0 0.0
  %1035 = vmatpush1.msra.mxu0 0.0
  %1036 = vmatprep.subr.mxu0 0.0
  %1037 = vmatpush1.msra.mxu0 0.0
  %1038 = vmatprep.subr.mxu0 0.0
  %1039 = vmatpush1.msra.mxu0 0.0
  %1040 = vmatprep.mubr.f32.mxu0 0.0
  %1041 = vmatmul.mubr.f32.gmra.mrb[0].mxu0 %v975
  %v1042 = vpop.f32.mrb[0].mxu0
  %v1043 = vadd.f32 %v287, %v1042
  %v1044 = vpop.f32.mrb[0].mxu0
  %v1045 = vadd.f32 %v291, %v1044
  %1046 = vdwg.mxu0
  %v1047 = vmul.f32 %v1043, 0.5
  %v1048 = vmul.f32 %v1045, 0.5
  %v1049 = vsel %vm111, %v1043, %v1047
  %v1050 = vsel %vm112, %v1045, %v1048
  %v1051 = vtanh.pop %v1049
  %v1052 = vtanh.pop %v1050
  %v1053 = vmul.f32 %v1051, 0.5
  %v1054 = vmul.f32 %v1052, 0.5
  %v1055 = vadd.f32 %v1053, 0.5
  %v1056 = vadd.f32 %v1054, 0.5
  %v1057 = vsel %vm111, %v1051, %v1055
  %v1058 = vsel %vm112, %v1052, %v1056
  %v1059 = vmul.f32 %v1057, %v839
  %v1060 = vmul.f32 %v1057, %v1058
  %1062 = vrot.lane.b32.xlu0 %v1060, 64
  %v1063 = vpop.permute.xlu0 %1062
  %v1065 = vadd.f32 %v1059, %v1063
  %v1066 = vtanh.pop %v1065
  %v1067 = vmul.f32 %v1058, %v1066
  %s1068 = scalar_lea.vmem %s0, 16
  %v1069 = vld [vmem:[%s1068] sm:$0xf]
  %v1070 = vsel %vm141, %v973, 0
  %1072 = vmatprep.subr.mxu0 %v48
  %1073 = vmatpush1.msra.mxu0 %v47
  %1074 = vmatprep.subr.mxu0 %v50
  %1075 = vmatpush1.msra.mxu0 %v49
  %1076 = vmatprep.subr.mxu0 %v52
  %1077 = vmatpush1.msra.mxu0 %v51
  %1078 = vmatprep.subr.mxu0 %v54
  %1079 = vmatpush1.msra.mxu0 %v53
  %1080 = vmatprep.subr.mxu0 %v56
  %1081 = vmatpush1.msra.mxu0 %v55
  %1082 = vmatprep.subr.mxu0 %v58
  %1083 = vmatpush1.msra.mxu0 %v57
  %1084 = vmatprep.subr.mxu0 %v60
  %1085 = vmatpush1.msra.mxu0 %v59
  %1086 = vmatprep.subr.mxu0 %v62
  %1087 = vmatpush1.msra.mxu0 %v61
  %1088 = vmatprep.subr.mxu0 0.0
  %1089 = vmatpush1.msra.mxu0 0.0
  %1090 = vmatprep.subr.mxu0 0.0
  %1091 = vmatpush1.msra.mxu0 0.0
  %1092 = vmatprep.subr.mxu0 0.0
  %1093 = vmatpush1.msra.mxu0 0.0
  %1094 = vmatprep.subr.mxu0 0.0
  %1095 = vmatpush1.msra.mxu0 0.0
  %1096 = vmatprep.subr.mxu0 0.0
  %1097 = vmatpush1.msra.mxu0 0.0
  %1098 = vmatprep.subr.mxu0 0.0
  %1099 = vmatpush1.msra.mxu0 0.0
  %1100 = vmatprep.subr.mxu0 0.0
  %1101 = vmatpush1.msra.mxu0 0.0
  %1102 = vmatprep.subr.mxu0 0.0
  %1103 = vmatpush1.msra.mxu0 0.0
  %1104 = vmatprep.subr.mxu0 0.0
  %1105 = vmatpush1.msra.mxu0 0.0
  %1106 = vmatprep.subr.mxu0 0.0
  %1107 = vmatpush1.msra.mxu0 0.0
  %1108 = vmatprep.subr.mxu0 0.0
  %1109 = vmatpush1.msra.mxu0 0.0
  %1110 = vmatprep.subr.mxu0 0.0
  %1111 = vmatpush1.msra.mxu0 0.0
  %1112 = vmatprep.subr.mxu0 0.0
  %1113 = vmatpush1.msra.mxu0 0.0
  %1114 = vmatprep.subr.mxu0 0.0
  %1115 = vmatpush1.msra.mxu0 0.0
  %1116 = vmatprep.subr.mxu0 0.0
  %1117 = vmatpush1.msra.mxu0 0.0
  %1118 = vmatprep.subr.mxu0 0.0
  %1119 = vmatpush1.msra.mxu0 0.0
  %1120 = vmatprep.subr.mxu0 0.0
  %1121 = vmatpush1.msra.mxu0 0.0
  %1122 = vmatprep.subr.mxu0 0.0
  %1123 = vmatpush1.msra.mxu0 0.0
  %1124 = vmatprep.subr.mxu0 0.0
  %1125 = vmatpush1.msra.mxu0 0.0
  %1126 = vmatprep.subr.mxu0 0.0
  %1127 = vmatpush1.msra.mxu0 0.0
  %1128 = vmatprep.subr.mxu0 0.0
  %1129 = vmatpush1.msra.mxu0 0.0
  %1130 = vmatprep.subr.mxu0 0.0
  %1131 = vmatpush1.msra.mxu0 0.0
  %1132 = vmatprep.subr.mxu0 0.0
  %1133 = vmatpush1.msra.mxu0 0.0
  %1134 = vmatprep.subr.mxu0 0.0
  %1135 = vmatpush1.msra.mxu0 0.0
  %1136 = vmatprep.mubr.f32.mxu0 0.0
  %1137 = vmatmul.mubr.f32.gmra.mrb[0].mxu0 %v1070
  %v1138 = vpop.f32.mrb[0].mxu0
  %v1139 = vadd.f32 0.0, %v1138
  %v1140 = vpop.f32.mrb[0].mxu0
  %v1141 = vadd.f32 0.0, %v1140
  %1142 = vdwg.mxu0
  %v1145 = vcombine.low %v1139, %v1141
  %v1147 = vunpack.c.l.s4 1983009808
  %v1148 = vunpack.c.0.s8 %v1147
  %v1149 = vlaneseq
  %v1150 = vshrl.u32 %v1149, 7
  %v1151 = vsub.s32 %v1148, %v1150
  %v1152 = vrot.slane %v1145, %v1151
  %v1154 = vadd.f32 %v1069, %v1152
  %v1155 = vmul.f32 %v1154, 0.5
  %v1158 = vunpack.c.l.s4 1983009808
  %v1159 = vunpack.c.0.s8 %v1158
  %v1160 = vlaneseq
  %v1161 = vshrl.u32 %v1160, 7
  %v1162 = vsub.s32 %v1159, %v1161
  %v1163 = vrot.slane %v1154, %v1162
  %v1164 = vcombine.high %v1163, %v1163
  %v1169 = vunpack.c.l.s4 1983009808
  %v1170 = vunpack.c.0.s8 %v1169
  %v1171 = vlaneseq
  %v1172 = vshrl.u32 %v1171, 7
  %v1173 = vsub.s32 %v1170, %v1172
  %v1174 = vrot.slane %v1155, %v1173
  %v1175 = vcombine.high %v1174, %v1174
  %v1178 = vsel %vm111, %v1163, %v1174
  %v1179 = vsel %vm112, %v1164, %v1175
  %v1180 = vtanh.pop %v1178
  %v1181 = vtanh.pop %v1179
  %v1182 = vmul.f32 %v1180, 0.5
  %v1183 = vmul.f32 %v1181, 0.5
  %v1184 = vadd.f32 %v1182, 0.5
  %v1185 = vadd.f32 %v1183, 0.5
  %v1186 = vsel %vm111, %v1180, %v1184
  %v1187 = vsel %vm112, %v1181, %v1185
  %v1188 = vmul.f32 %v1186, %v968
  %v1189 = vmul.f32 %v1186, %v1187
  %1191 = vrot.lane.b32.xlu0 %v1189, 64
  %v1192 = vpop.permute.xlu0 %1191
  %v1194 = vadd.f32 %v1188, %v1192
  %v1195 = vtanh.pop %v1194
  %v1196 = vmul.f32 %v1187, %v1195
  %1198 = vrot.lane.b32.xlu0 %v1196, 64
  %v1199 = vpop.permute.xlu0 %1198
  %v1201 = vsel %vm141, %v1199, %v1067
  %1202 = vmatprep.subr.mxu0 %v64
  %1203 = vmatpush1.msra.mxu0 %v63
  %1204 = vmatprep.subr.mxu0 %v66
  %1205 = vmatpush1.msra.mxu0 %v65
  %1206 = vmatprep.subr.mxu0 %v68
  %1207 = vmatpush1.msra.mxu0 %v67
  %1208 = vmatprep.subr.mxu0 %v70
  %1209 = vmatpush1.msra.mxu0 %v69
  %1210 = vmatprep.subr.mxu0 %v72
  %1211 = vmatpush1.msra.mxu0 %v71
  %1212 = vmatprep.subr.mxu0 %v74
  %1213 = vmatpush1.msra.mxu0 %v73
  %1214 = vmatprep.subr.mxu0 %v76
  %1215 = vmatpush1.msra.mxu0 %v75
  %1216 = vmatprep.subr.mxu0 %v78
  %1217 = vmatpush1.msra.mxu0 %v77
  %1218 = vmatprep.subr.mxu0 %v80
  %1219 = vmatpush1.msra.mxu0 %v79
  %1220 = vmatprep.subr.mxu0 %v82
  %1221 = vmatpush1.msra.mxu0 %v81
  %1222 = vmatprep.subr.mxu0 %v84
  %1223 = vmatpush1.msra.mxu0 %v83
  %1224 = vmatprep.subr.mxu0 %v86
  %1225 = vmatpush1.msra.mxu0 %v85
  %1226 = vmatprep.subr.mxu0 %v88
  %1227 = vmatpush1.msra.mxu0 %v87
  %1228 = vmatprep.subr.mxu0 %v90
  %1229 = vmatpush1.msra.mxu0 %v89
  %1230 = vmatprep.subr.mxu0 %v92
  %1231 = vmatpush1.msra.mxu0 %v91
  %1232 = vmatprep.subr.mxu0 %v94
  %1233 = vmatpush1.msra.mxu0 %v93
  %1234 = vmatprep.subr.mxu0 0.0
  %1235 = vmatpush1.msra.mxu0 0.0
  %1236 = vmatprep.subr.mxu0 0.0
  %1237 = vmatpush1.msra.mxu0 0.0
  %1238 = vmatprep.subr.mxu0 0.0
  %1239 = vmatpush1.msra.mxu0 0.0
  %1240 = vmatprep.subr.mxu0 0.0
  %1241 = vmatpush1.msra.mxu0 0.0
  %1242 = vmatprep.subr.mxu0 0.0
  %1243 = vmatpush1.msra.mxu0 0.0
  %1244 = vmatprep.subr.mxu0 0.0
  %1245 = vmatpush1.msra.mxu0 0.0
  %1246 = vmatprep.subr.mxu0 0.0
  %1247 = vmatpush1.msra.mxu0 0.0
  %1248 = vmatprep.subr.mxu0 0.0
  %1249 = vmatpush1.msra.mxu0 0.0
  %1250 = vmatprep.subr.mxu0 0.0
  %1251 = vmatpush1.msra.mxu0 0.0
  %1252 = vmatprep.subr.mxu0 0.0
  %1253 = vmatpush1.msra.mxu0 0.0
  %1254 = vmatprep.subr.mxu0 0.0
  %1255 = vmatpush1.msra.mxu0 0.0
  %1256 = vmatprep.subr.mxu0 0.0
  %1257 = vmatpush1.msra.mxu0 0.0
  %1258 = vmatprep.subr.mxu0 0.0
  %1259 = vmatpush1.msra.mxu0 0.0
  %1260 = vmatprep.subr.mxu0 0.0
  %1261 = vmatpush1.msra.mxu0 0.0
  %1262 = vmatprep.subr.mxu0 0.0
  %1263 = vmatpush1.msra.mxu0 0.0
  %1264 = vmatprep.subr.mxu0 0.0
  %1265 = vmatpush1.msra.mxu0 0.0
  %1266 = vmatprep.mubr.f32.mxu0 0.0
  %1267 = vmatmul.mubr.f32.gmra.mrb[0].mxu0 %v1201
  %v1268 = vpop.f32.mrb[0].mxu0
  %v1269 = vadd.f32 %v287, %v1268
  %v1270 = vpop.f32.mrb[0].mxu0
  %v1271 = vadd.f32 %v291, %v1270
  %1272 = vdwg.mxu0
  %v1273 = vmul.f32 %v1269, 0.5
  %v1274 = vmul.f32 %v1271, 0.5
  %v1275 = vsel %vm111, %v1269, %v1273
  %v1276 = vsel %vm112, %v1271, %v1274
  %v1277 = vtanh.pop %v1275
  %v1278 = vtanh.pop %v1276
  %v1279 = vmul.f32 %v1277, 0.5
  %v1280 = vmul.f32 %v1278, 0.5
  %v1281 = vadd.f32 %v1279, 0.5
  %v1282 = vadd.f32 %v1280, 0.5
  %v1283 = vsel %vm111, %v1277, %v1281
  %v1284 = vsel %vm112, %v1278, %v1282
  %v1285 = vmul.f32 %v1283, %v1065
  %v1286 = vmul.f32 %v1283, %v1284
  %1288 = vrot.lane.b32.xlu0 %v1286, 64
  %v1289 = vpop.permute.xlu0 %1288
  %v1291 = vadd.f32 %v1285, %v1289
  %v1292 = vtanh.pop %v1291
  %v1293 = vmul.f32 %v1284, %v1292
  %s1294 = scalar_lea.vmem %s0, 20
  %v1295 = vld [vmem:[%s1294] sm:$0xf]
  %v1296 = vsel %vm141, %v1199, 0
  %1298 = vmatprep.subr.mxu0 %v48
  %1299 = vmatpush1.msra.mxu0 %v47
  %1300 = vmatprep.subr.mxu0 %v50
  %1301 = vmatpush1.msra.mxu0 %v49
  %1302 = vmatprep.subr.mxu0 %v52
  %1303 = vmatpush1.msra.mxu0 %v51
  %1304 = vmatprep.subr.mxu0 %v54
  %1305 = vmatpush1.msra.mxu0 %v53
  %1306 = vmatprep.subr.mxu0 %v56
  %1307 = vmatpush1.msra.mxu0 %v55
  %1308 = vmatprep.subr.mxu0 %v58
  %1309 = vmatpush1.msra.mxu0 %v57
  %1310 = vmatprep.subr.mxu0 %v60
  %1311 = vmatpush1.msra.mxu0 %v59
  %1312 = vmatprep.subr.mxu0 %v62
  %1313 = vmatpush1.msra.mxu0 %v61
  %1314 = vmatprep.subr.mxu0 0.0
  %1315 = vmatpush1.msra.mxu0 0.0
  %1316 = vmatprep.subr.mxu0 0.0
  %1317 = vmatpush1.msra.mxu0 0.0
  %1318 = vmatprep.subr.mxu0 0.0
  %1319 = vmatpush1.msra.mxu0 0.0
  %1320 = vmatprep.subr.mxu0 0.0
  %1321 = vmatpush1.msra.mxu0 0.0
  %1322 = vmatprep.subr.mxu0 0.0
  %1323 = vmatpush1.msra.mxu0 0.0
  %1324 = vmatprep.subr.mxu0 0.0
  %1325 = vmatpush1.msra.mxu0 0.0
  %1326 = vmatprep.subr.mxu0 0.0
  %1327 = vmatpush1.msra.mxu0 0.0
  %1328 = vmatprep.subr.mxu0 0.0
  %1329 = vmatpush1.msra.mxu0 0.0
  %1330 = vmatprep.subr.mxu0 0.0
  %1331 = vmatpush1.msra.mxu0 0.0
  %1332 = vmatprep.subr.mxu0 0.0
  %1333 = vmatpush1.msra.mxu0 0.0
  %1334 = vmatprep.subr.mxu0 0.0
  %1335 = vmatpush1.msra.mxu0 0.0
  %1336 = vmatprep.subr.mxu0 0.0
  %1337 = vmatpush1.msra.mxu0 0.0
  %1338 = vmatprep.subr.mxu0 0.0
  %1339 = vmatpush1.msra.mxu0 0.0
  %1340 = vmatprep.subr.mxu0 0.0
  %1341 = vmatpush1.msra.mxu0 0.0
  %1342 = vmatprep.subr.mxu0 0.0
  %1343 = vmatpush1.msra.mxu0 0.0
  %1344 = vmatprep.subr.mxu0 0.0
  %1345 = vmatpush1.msra.mxu0 0.0
  %1346 = vmatprep.subr.mxu0 0.0
  %1347 = vmatpush1.msra.mxu0 0.0
  %1348 = vmatprep.subr.mxu0 0.0
  %1349 = vmatpush1.msra.mxu0 0.0
  %1350 = vmatprep.subr.mxu0 0.0
  %1351 = vmatpush1.msra.mxu0 0.0
  %1352 = vmatprep.subr.mxu0 0.0
  %1353 = vmatpush1.msra.mxu0 0.0
  %1354 = vmatprep.subr.mxu0 0.0
  %1355 = vmatpush1.msra.mxu0 0.0
  %1356 = vmatprep.subr.mxu0 0.0
  %1357 = vmatpush1.msra.mxu0 0.0
  %1358 = vmatprep.subr.mxu0 0.0
  %1359 = vmatpush1.msra.mxu0 0.0
  %1360 = vmatprep.subr.mxu0 0.0
  %1361 = vmatpush1.msra.mxu0 0.0
  %1362 = vmatprep.mubr.f32.mxu0 0.0
  %1363 = vmatmul.mubr.f32.gmra.mrb[0].mxu0 %v1296
  %v1364 = vpop.f32.mrb[0].mxu0
  %v1365 = vadd.f32 0.0, %v1364
  %v1366 = vpop.f32.mrb[0].mxu0
  %v1367 = vadd.f32 0.0, %v1366
  %1368 = vdwg.mxu0
  %v1371 = vcombine.low %v1365, %v1367
  %v1373 = vunpack.c.l.s4 1983009808
  %v1374 = vunpack.c.0.s8 %v1373
  %v1375 = vlaneseq
  %v1376 = vshrl.u32 %v1375, 7
  %v1377 = vsub.s32 %v1374, %v1376
  %v1378 = vrot.slane %v1371, %v1377
  %v1380 = vadd.f32 %v1295, %v1378
  %v1381 = vmul.f32 %v1380, 0.5
  %v1384 = vunpack.c.l.s4 1983009808
  %v1385 = vunpack.c.0.s8 %v1384
  %v1386 = vlaneseq
  %v1387 = vshrl.u32 %v1386, 7
  %v1388 = vsub.s32 %v1385, %v1387
  %v1389 = vrot.slane %v1380, %v1388
  %v1390 = vcombine.high %v1389, %v1389
  %v1395 = vunpack.c.l.s4 1983009808
  %v1396 = vunpack.c.0.s8 %v1395
  %v1397 = vlaneseq
  %v1398 = vshrl.u32 %v1397, 7
  %v1399 = vsub.s32 %v1396, %v1398
  %v1400 = vrot.slane %v1381, %v1399
  %v1401 = vcombine.high %v1400, %v1400
  %v1404 = vsel %vm111, %v1389, %v1400
  %v1405 = vsel %vm112, %v1390, %v1401
  %v1406 = vtanh.pop %v1404
  %v1407 = vtanh.pop %v1405
  %v1408 = vmul.f32 %v1406, 0.5
  %v1409 = vmul.f32 %v1407, 0.5
  %v1410 = vadd.f32 %v1408, 0.5
  %v1411 = vadd.f32 %v1409, 0.5
  %v1412 = vsel %vm111, %v1406, %v1410
  %v1413 = vsel %vm112, %v1407, %v1411
  %v1414 = vmul.f32 %v1412, %v1194
  %v1415 = vmul.f32 %v1412, %v1413
  %1417 = vrot.lane.b32.xlu0 %v1415, 64
  %v1418 = vpop.permute.xlu0 %1417
  %v1420 = vadd.f32 %v1414, %v1418
  %v1421 = vtanh.pop %v1420
  %v1422 = vmul.f32 %v1413, %v1421
  %1424 = vrot.lane.b32.xlu0 %v1422, 64
  %v1425 = vpop.permute.xlu0 %1424
  %v1427 = vsel %vm141, %v1425, %v1293
  %1428 = vmatprep.subr.mxu0 %v64
  %1429 = vmatpush1.msra.mxu0 %v63
  %1430 = vmatprep.subr.mxu0 %v66
  %1431 = vmatpush1.msra.mxu0 %v65
  %1432 = vmatprep.subr.mxu0 %v68
  %1433 = vmatpush1.msra.mxu0 %v67
  %1434 = vmatprep.subr.mxu0 %v70
  %1435 = vmatpush1.msra.mxu0 %v69
  %1436 = vmatprep.subr.mxu0 %v72
  %1437 = vmatpush1.msra.mxu0 %v71
  %1438 = vmatprep.subr.mxu0 %v74
  %1439 = vmatpush1.msra.mxu0 %v73
  %1440 = vmatprep.subr.mxu0 %v76
  %1441 = vmatpush1.msra.mxu0 %v75
  %1442 = vmatprep.subr.mxu0 %v78
  %1443 = vmatpush1.msra.mxu0 %v77
  %1444 = vmatprep.subr.mxu0 %v80
  %1445 = vmatpush1.msra.mxu0 %v79
  %1446 = vmatprep.subr.mxu0 %v82
  %1447 = vmatpush1.msra.mxu0 %v81
  %1448 = vmatprep.subr.mxu0 %v84
  %1449 = vmatpush1.msra.mxu0 %v83
  %1450 = vmatprep.subr.mxu0 %v86
  %1451 = vmatpush1.msra.mxu0 %v85
  %1452 = vmatprep.subr.mxu0 %v88
  %1453 = vmatpush1.msra.mxu0 %v87
  %1454 = vmatprep.subr.mxu0 %v90
  %1455 = vmatpush1.msra.mxu0 %v89
  %1456 = vmatprep.subr.mxu0 %v92
  %1457 = vmatpush1.msra.mxu0 %v91
  %1458 = vmatprep.subr.mxu0 %v94
  %1459 = vmatpush1.msra.mxu0 %v93
  %1460 = vmatprep.subr.mxu0 0.0
  %1461 = vmatpush1.msra.mxu0 0.0
  %1462 = vmatprep.subr.mxu0 0.0
  %1463 = vmatpush1.msra.mxu0 0.0
  %1464 = vmatprep.subr.mxu0 0.0
  %1465 = vmatpush1.msra.mxu0 0.0
  %1466 = vmatprep.subr.mxu0 0.0
  %1467 = vmatpush1.msra.mxu0 0.0
  %1468 = vmatprep.subr.mxu0 0.0
  %1469 = vmatpush1.msra.mxu0 0.0
  %1470 = vmatprep.subr.mxu0 0.0
  %1471 = vmatpush1.msra.mxu0 0.0
  %1472 = vmatprep.subr.mxu0 0.0
  %1473 = vmatpush1.msra.mxu0 0.0
  %1474 = vmatprep.subr.mxu0 0.0
  %1475 = vmatpush1.msra.mxu0 0.0
  %1476 = vmatprep.subr.mxu0 0.0
  %1477 = vmatpush1.msra.mxu0 0.0
  %1478 = vmatprep.subr.mxu0 0.0
  %1479 = vmatpush1.msra.mxu0 0.0
  %1480 = vmatprep.subr.mxu0 0.0
  %1481 = vmatpush1.msra.mxu0 0.0
  %1482 = vmatprep.subr.mxu0 0.0
  %1483 = vmatpush1.msra.mxu0 0.0
  %1484 = vmatprep.subr.mxu0 0.0
  %1485 = vmatpush1.msra.mxu0 0.0
  %1486 = vmatprep.subr.mxu0 0.0
  %1487 = vmatpush1.msra.mxu0 0.0
  %1488 = vmatprep.subr.mxu0 0.0
  %1489 = vmatpush1.msra.mxu0 0.0
  %1490 = vmatprep.subr.mxu0 0.0
  %1491 = vmatpush1.msra.mxu0 0.0
  %1492 = vmatprep.mubr.f32.mxu0 0.0
  %1493 = vmatmul.mubr.f32.gmra.mrb[0].mxu0 %v1427
  %v1494 = vpop.f32.mrb[0].mxu0
  %v1495 = vadd.f32 %v287, %v1494
  %v1496 = vpop.f32.mrb[0].mxu0
  %v1497 = vadd.f32 %v291, %v1496
  %1498 = vdwg.mxu0
  %v1499 = vmul.f32 %v1495, 0.5
  %v1500 = vmul.f32 %v1497, 0.5
  %v1501 = vsel %vm111, %v1495, %v1499
  %v1502 = vsel %vm112, %v1497, %v1500
  %v1503 = vtanh.pop %v1501
  %v1504 = vtanh.pop %v1502
  %v1505 = vmul.f32 %v1503, 0.5
  %v1506 = vmul.f32 %v1504, 0.5
  %v1507 = vadd.f32 %v1505, 0.5
  %v1508 = vadd.f32 %v1506, 0.5
  %v1509 = vsel %vm111, %v1503, %v1507
  %v1510 = vsel %vm112, %v1504, %v1508
  %v1511 = vmul.f32 %v1509, %v1291
  %v1512 = vmul.f32 %v1509, %v1510
  %1514 = vrot.lane.b32.xlu0 %v1512, 64
  %v1515 = vpop.permute.xlu0 %1514
  %v1517 = vadd.f32 %v1511, %v1515
  %v1518 = vtanh.pop %v1517
  %v1519 = vmul.f32 %v1510, %v1518
  %s1520 = scalar_lea.vmem %s0, 24
  %v1521 = vld [vmem:[%s1520] sm:$0xf]
  %v1522 = vsel %vm141, %v1425, 0
  %1524 = vmatprep.subr.mxu0 %v48
  %1525 = vmatpush1.msra.mxu0 %v47
  %1526 = vmatprep.subr.mxu0 %v50
  %1527 = vmatpush1.msra.mxu0 %v49
  %1528 = vmatprep.subr.mxu0 %v52
  %1529 = vmatpush1.msra.mxu0 %v51
  %1530 = vmatprep.subr.mxu0 %v54
  %1531 = vmatpush1.msra.mxu0 %v53
  %1532 = vmatprep.subr.mxu0 %v56
  %1533 = vmatpush1.msra.mxu0 %v55
  %1534 = vmatprep.subr.mxu0 %v58
  %1535 = vmatpush1.msra.mxu0 %v57
  %1536 = vmatprep.subr.mxu0 %v60
  %1537 = vmatpush1.msra.mxu0 %v59
  %1538 = vmatprep.subr.mxu0 %v62
  %1539 = vmatpush1.msra.mxu0 %v61
  %1540 = vmatprep.subr.mxu0 0.0
  %1541 = vmatpush1.msra.mxu0 0.0
  %1542 = vmatprep.subr.mxu0 0.0
  %1543 = vmatpush1.msra.mxu0 0.0
  %1544 = vmatprep.subr.mxu0 0.0
  %1545 = vmatpush1.msra.mxu0 0.0
  %1546 = vmatprep.subr.mxu0 0.0
  %1547 = vmatpush1.msra.mxu0 0.0
  %1548 = vmatprep.subr.mxu0 0.0
  %1549 = vmatpush1.msra.mxu0 0.0
  %1550 = vmatprep.subr.mxu0 0.0
  %1551 = vmatpush1.msra.mxu0 0.0
  %1552 = vmatprep.subr.mxu0 0.0
  %1553 = vmatpush1.msra.mxu0 0.0
  %1554 = vmatprep.subr.mxu0 0.0
  %1555 = vmatpush1.msra.mxu0 0.0
  %1556 = vmatprep.subr.mxu0 0.0
  %1557 = vmatpush1.msra.mxu0 0.0
  %1558 = vmatprep.subr.mxu0 0.0
  %1559 = vmatpush1.msra.mxu0 0.0
  %1560 = vmatprep.subr.mxu0 0.0
  %1561 = vmatpush1.msra.mxu0 0.0
  %1562 = vmatprep.subr.mxu0 0.0
  %1563 = vmatpush1.msra.mxu0 0.0
  %1564 = vmatprep.subr.mxu0 0.0
  %1565 = vmatpush1.msra.mxu0 0.0
  %1566 = vmatprep.subr.mxu0 0.0
  %1567 = vmatpush1.msra.mxu0 0.0
  %1568 = vmatprep.subr.mxu0 0.0
  %1569 = vmatpush1.msra.mxu0 0.0
  %1570 = vmatprep.subr.mxu0 0.0
  %1571 = vmatpush1.msra.mxu0 0.0
  %1572 = vmatprep.subr.mxu0 0.0
  %1573 = vmatpush1.msra.mxu0 0.0
  %1574 = vmatprep.subr.mxu0 0.0
  %1575 = vmatpush1.msra.mxu0 0.0
  %1576 = vmatprep.subr.mxu0 0.0
  %1577 = vmatpush1.msra.mxu0 0.0
  %1578 = vmatprep.subr.mxu0 0.0
  %1579 = vmatpush1.msra.mxu0 0.0
  %1580 = vmatprep.subr.mxu0 0.0
  %1581 = vmatpush1.msra.mxu0 0.0
  %1582 = vmatprep.subr.mxu0 0.0
  %1583 = vmatpush1.msra.mxu0 0.0
  %1584 = vmatprep.subr.mxu0 0.0
  %1585 = vmatpush1.msra.mxu0 0.0
  %1586 = vmatprep.subr.mxu0 0.0
  %1587 = vmatpush1.msra.mxu0 0.0
  %1588 = vmatprep.mubr.f32.mxu0 0.0
  %1589 = vmatmul.mubr.f32.gmra.mrb[0].mxu0 %v1522
  %v1590 = vpop.f32.mrb[0].mxu0
  %v1591 = vadd.f32 0.0, %v1590
  %v1592 = vpop.f32.mrb[0].mxu0
  %v1593 = vadd.f32 0.0, %v1592
  %1594 = vdwg.mxu0
  %v1597 = vcombine.low %v1591, %v1593
  %v1599 = vunpack.c.l.s4 1983009808
  %v1600 = vunpack.c.0.s8 %v1599
  %v1601 = vlaneseq
  %v1602 = vshrl.u32 %v1601, 7
  %v1603 = vsub.s32 %v1600, %v1602
  %v1604 = vrot.slane %v1597, %v1603
  %v1606 = vadd.f32 %v1521, %v1604
  %v1607 = vmul.f32 %v1606, 0.5
  %v1610 = vunpack.c.l.s4 1983009808
  %v1611 = vunpack.c.0.s8 %v1610
  %v1612 = vlaneseq
  %v1613 = vshrl.u32 %v1612, 7
  %v1614 = vsub.s32 %v1611, %v1613
  %v1615 = vrot.slane %v1606, %v1614
  %v1616 = vcombine.high %v1615, %v1615
  %v1621 = vunpack.c.l.s4 1983009808
  %v1622 = vunpack.c.0.s8 %v1621
  %v1623 = vlaneseq
  %v1624 = vshrl.u32 %v1623, 7
  %v1625 = vsub.s32 %v1622, %v1624
  %v1626 = vrot.slane %v1607, %v1625
  %v1627 = vcombine.high %v1626, %v1626
  %v1630 = vsel %vm111, %v1615, %v1626
  %v1631 = vsel %vm112, %v1616, %v1627
  %v1632 = vtanh.pop %v1630
  %v1633 = vtanh.pop %v1631
  %v1634 = vmul.f32 %v1632, 0.5
  %v1635 = vmul.f32 %v1633, 0.5
  %v1636 = vadd.f32 %v1634, 0.5
  %v1637 = vadd.f32 %v1635, 0.5
  %v1638 = vsel %vm111, %v1632, %v1636
  %v1639 = vsel %vm112, %v1633, %v1637
  %v1640 = vmul.f32 %v1638, %v1420
  %v1641 = vmul.f32 %v1638, %v1639
  %1643 = vrot.lane.b32.xlu0 %v1641, 64
  %v1644 = vpop.permute.xlu0 %1643
  %v1646 = vadd.f32 %v1640, %v1644
  %v1647 = vtanh.pop %v1646
  %v1648 = vmul.f32 %v1639, %v1647
  %1650 = vrot.lane.b32.xlu0 %v1648, 64
  %v1651 = vpop.permute.xlu0 %1650
  %v1653 = vsel %vm141, %v1651, %v1519
  %1654 = vmatprep.subr.mxu0 %v64
  %1655 = vmatpush1.msra.mxu0 %v63
  %1656 = vmatprep.subr.mxu0 %v66
  %1657 = vmatpush1.msra.mxu0 %v65
  %1658 = vmatprep.subr.mxu0 %v68
  %1659 = vmatpush1.msra.mxu0 %v67
  %1660 = vmatprep.subr.mxu0 %v70
  %1661 = vmatpush1.msra.mxu0 %v69
  %1662 = vmatprep.subr.mxu0 %v72
  %1663 = vmatpush1.msra.mxu0 %v71
  %1664 = vmatprep.subr.mxu0 %v74
  %1665 = vmatpush1.msra.mxu0 %v73
  %1666 = vmatprep.subr.mxu0 %v76
  %1667 = vmatpush1.msra.mxu0 %v75
  %1668 = vmatprep.subr.mxu0 %v78
  %1669 = vmatpush1.msra.mxu0 %v77
  %1670 = vmatprep.subr.mxu0 %v80
  %1671 = vmatpush1.msra.mxu0 %v79
  %1672 = vmatprep.subr.mxu0 %v82
  %1673 = vmatpush1.msra.mxu0 %v81
  %1674 = vmatprep.subr.mxu0 %v84
  %1675 = vmatpush1.msra.mxu0 %v83
  %1676 = vmatprep.subr.mxu0 %v86
  %1677 = vmatpush1.msra.mxu0 %v85
  %1678 = vmatprep.subr.mxu0 %v88
  %1679 = vmatpush1.msra.mxu0 %v87
  %1680 = vmatprep.subr.mxu0 %v90
  %1681 = vmatpush1.msra.mxu0 %v89
  %1682 = vmatprep.subr.mxu0 %v92
  %1683 = vmatpush1.msra.mxu0 %v91
  %1684 = vmatprep.subr.mxu0 %v94
  %1685 = vmatpush1.msra.mxu0 %v93
  %1686 = vmatprep.subr.mxu0 0.0
  %1687 = vmatpush1.msra.mxu0 0.0
  %1688 = vmatprep.subr.mxu0 0.0
  %1689 = vmatpush1.msra.mxu0 0.0
  %1690 = vmatprep.subr.mxu0 0.0
  %1691 = vmatpush1.msra.mxu0 0.0
  %1692 = vmatprep.subr.mxu0 0.0
  %1693 = vmatpush1.msra.mxu0 0.0
  %1694 = vmatprep.subr.mxu0 0.0
  %1695 = vmatpush1.msra.mxu0 0.0
  %1696 = vmatprep.subr.mxu0 0.0
  %1697 = vmatpush1.msra.mxu0 0.0
  %1698 = vmatprep.subr.mxu0 0.0
  %1699 = vmatpush1.msra.mxu0 0.0
  %1700 = vmatprep.subr.mxu0 0.0
  %1701 = vmatpush1.msra.mxu0 0.0
  %1702 = vmatprep.subr.mxu0 0.0
  %1703 = vmatpush1.msra.mxu0 0.0
  %1704 = vmatprep.subr.mxu0 0.0
  %1705 = vmatpush1.msra.mxu0 0.0
  %1706 = vmatprep.subr.mxu0 0.0
  %1707 = vmatpush1.msra.mxu0 0.0
  %1708 = vmatprep.subr.mxu0 0.0
  %1709 = vmatpush1.msra.mxu0 0.0
  %1710 = vmatprep.subr.mxu0 0.0
  %1711 = vmatpush1.msra.mxu0 0.0
  %1712 = vmatprep.subr.mxu0 0.0
  %1713 = vmatpush1.msra.mxu0 0.0
  %1714 = vmatprep.subr.mxu0 0.0
  %1715 = vmatpush1.msra.mxu0 0.0
  %1716 = vmatprep.subr.mxu0 0.0
  %1717 = vmatpush1.msra.mxu0 0.0
  %1718 = vmatprep.mubr.f32.mxu0 0.0
  %1719 = vmatmul.mubr.f32.gmra.mrb[0].mxu0 %v1653
  %v1720 = vpop.f32.mrb[0].mxu0
  %v1721 = vadd.f32 %v287, %v1720
  %v1722 = vpop.f32.mrb[0].mxu0
  %v1723 = vadd.f32 %v291, %v1722
  %1724 = vdwg.mxu0
  %v1725 = vmul.f32 %v1721, 0.5
  %v1726 = vmul.f32 %v1723, 0.5
  %v1727 = vsel %vm111, %v1721, %v1725
  %v1728 = vsel %vm112, %v1723, %v1726
  %v1729 = vtanh.pop %v1727
  %v1730 = vtanh.pop %v1728
  %v1731 = vmul.f32 %v1729, 0.5
  %v1732 = vmul.f32 %v1730, 0.5
  %v1733 = vadd.f32 %v1731, 0.5
  %v1734 = vadd.f32 %v1732, 0.5
  %v1735 = vsel %vm111, %v1729, %v1733
  %v1736 = vsel %vm112, %v1730, %v1734
  %v1737 = vmul.f32 %v1735, %v1517
  %v1738 = vmul.f32 %v1735, %v1736
  %1740 = vrot.lane.b32.xlu0 %v1738, 64
  %v1741 = vpop.permute.xlu0 %1740
  %v1743 = vadd.f32 %v1737, %v1741
  %v1744 = vtanh.pop %v1743
  %v1745 = vmul.f32 %v1736, %v1744
  %s1746 = scalar_lea.vmem %s0, 28
  %v1747 = vld [vmem:[%s1746] sm:$0xf]
  %v1748 = vsel %vm141, %v1651, 0
  %1750 = vmatprep.subr.mxu0 %v48
  %1751 = vmatpush1.msra.mxu0 %v47
  %1752 = vmatprep.subr.mxu0 %v50
  %1753 = vmatpush1.msra.mxu0 %v49
  %1754 = vmatprep.subr.mxu0 %v52
  %1755 = vmatpush1.msra.mxu0 %v51
  %1756 = vmatprep.subr.mxu0 %v54
  %1757 = vmatpush1.msra.mxu0 %v53
  %1758 = vmatprep.subr.mxu0 %v56
  %1759 = vmatpush1.msra.mxu0 %v55
  %1760 = vmatprep.subr.mxu0 %v58
  %1761 = vmatpush1.msra.mxu0 %v57
  %1762 = vmatprep.subr.mxu0 %v60
  %1763 = vmatpush1.msra.mxu0 %v59
  %1764 = vmatprep.subr.mxu0 %v62
  %1765 = vmatpush1.msra.mxu0 %v61
  %1766 = vmatprep.subr.mxu0 0.0
  %1767 = vmatpush1.msra.mxu0 0.0
  %1768 = vmatprep.subr.mxu0 0.0
  %1769 = vmatpush1.msra.mxu0 0.0
  %1770 = vmatprep.subr.mxu0 0.0
  %1771 = vmatpush1.msra.mxu0 0.0
  %1772 = vmatprep.subr.mxu0 0.0
  %1773 = vmatpush1.msra.mxu0 0.0
  %1774 = vmatprep.subr.mxu0 0.0
  %1775 = vmatpush1.msra.mxu0 0.0
  %1776 = vmatprep.subr.mxu0 0.0
  %1777 = vmatpush1.msra.mxu0 0.0
  %1778 = vmatprep.subr.mxu0 0.0
  %1779 = vmatpush1.msra.mxu0 0.0
  %1780 = vmatprep.subr.mxu0 0.0
  %1781 = vmatpush1.msra.mxu0 0.0
  %1782 = vmatprep.subr.mxu0 0.0
  %1783 = vmatpush1.msra.mxu0 0.0
  %1784 = vmatprep.subr.mxu0 0.0
  %1785 = vmatpush1.msra.mxu0 0.0
  %1786 = vmatprep.subr.mxu0 0.0
  %1787 = vmatpush1.msra.mxu0 0.0
  %1788 = vmatprep.subr.mxu0 0.0
  %1789 = vmatpush1.msra.mxu0 0.0
  %1790 = vmatprep.subr.mxu0 0.0
  %1791 = vmatpush1.msra.mxu0 0.0
  %1792 = vmatprep.subr.mxu0 0.0
  %1793 = vmatpush1.msra.mxu0 0.0
  %1794 = vmatprep.subr.mxu0 0.0
  %1795 = vmatpush1.msra.mxu0 0.0
  %1796 = vmatprep.subr.mxu0 0.0
  %1797 = vmatpush1.msra.mxu0 0.0
  %1798 = vmatprep.subr.mxu0 0.0
  %1799 = vmatpush1.msra.mxu0 0.0
  %1800 = vmatprep.subr.mxu0 0.0
  %1801 = vmatpush1.msra.mxu0 0.0
  %1802 = vmatprep.subr.mxu0 0.0
  %1803 = vmatpush1.msra.mxu0 0.0
  %1804 = vmatprep.subr.mxu0 0.0
  %1805 = vmatpush1.msra.mxu0 0.0
  %1806 = vmatprep.subr.mxu0 0.0
  %1807 = vmatpush1.msra.mxu0 0.0
  %1808 = vmatprep.subr.mxu0 0.0
  %1809 = vmatpush1.msra.mxu0 0.0
  %1810 = vmatprep.subr.mxu0 0.0
  %1811 = vmatpush1.msra.mxu0 0.0
  %1812 = vmatprep.subr.mxu0 0.0
  %1813 = vmatpush1.msra.mxu0 0.0
  %1814 = vmatprep.mubr.f32.mxu0 0.0
  %1815 = vmatmul.mubr.f32.gmra.mrb[0].mxu0 %v1748
  %v1816 = vpop.f32.mrb[0].mxu0
  %v1817 = vadd.f32 0.0, %v1816
  %v1818 = vpop.f32.mrb[0].mxu0
  %v1819 = vadd.f32 0.0, %v1818
  %1820 = vdwg.mxu0
  %v1823 = vcombine.low %v1817, %v1819
  %v1825 = vunpack.c.l.s4 1983009808
  %v1826 = vunpack.c.0.s8 %v1825
  %v1827 = vlaneseq
  %v1828 = vshrl.u32 %v1827, 7
  %v1829 = vsub.s32 %v1826, %v1828
  %v1830 = vrot.slane %v1823, %v1829
  %v1832 = vadd.f32 %v1747, %v1830
  %v1833 = vmul.f32 %v1832, 0.5
  %v1836 = vunpack.c.l.s4 1983009808
  %v1837 = vunpack.c.0.s8 %v1836
  %v1838 = vlaneseq
  %v1839 = vshrl.u32 %v1838, 7
  %v1840 = vsub.s32 %v1837, %v1839
  %v1841 = vrot.slane %v1832, %v1840
  %v1842 = vcombine.high %v1841, %v1841
  %v1847 = vunpack.c.l.s4 1983009808
  %v1848 = vunpack.c.0.s8 %v1847
  %v1849 = vlaneseq
  %v1850 = vshrl.u32 %v1849, 7
  %v1851 = vsub.s32 %v1848, %v1850
  %v1852 = vrot.slane %v1833, %v1851
  %v1853 = vcombine.high %v1852, %v1852
  %v1856 = vsel %vm111, %v1841, %v1852
  %v1857 = vsel %vm112, %v1842, %v1853
  %v1858 = vtanh.pop %v1856
  %v1859 = vtanh.pop %v1857
  %v1860 = vmul.f32 %v1858, 0.5
  %v1861 = vmul.f32 %v1859, 0.5
  %v1862 = vadd.f32 %v1860, 0.5
  %v1863 = vadd.f32 %v1861, 0.5
  %v1864 = vsel %vm111, %v1858, %v1862
  %v1865 = vsel %vm112, %v1859, %v1863
  %v1866 = vmul.f32 %v1864, %v1646
  %v1867 = vmul.f32 %v1864, %v1865
  %1869 = vrot.lane.b32.xlu0 %v1867, 64
  %v1870 = vpop.permute.xlu0 %1869
  %v1872 = vadd.f32 %v1866, %v1870
  %v1873 = vtanh.pop %v1872
  %v1874 = vmul.f32 %v1865, %v1873
  %1876 = vrot.lane.b32.xlu0 %v1874, 64
  %v1877 = vpop.permute.xlu0 %1876
  %v1879 = vsel %vm141, %v1877, %v1745
  %1880 = vmatprep.subr.mxu0 %v64
  %1881 = vmatpush1.msra.mxu0 %v63
  %1882 = vmatprep.subr.mxu0 %v66
  %1883 = vmatpush1.msra.mxu0 %v65
  %1884 = vmatprep.subr.mxu0 %v68
  %1885 = vmatpush1.msra.mxu0 %v67
  %1886 = vmatprep.subr.mxu0 %v70
  %1887 = vmatpush1.msra.mxu0 %v69
  %1888 = vmatprep.subr.mxu0 %v72
  %1889 = vmatpush1.msra.mxu0 %v71
  %1890 = vmatprep.subr.mxu0 %v74
  %1891 = vmatpush1.msra.mxu0 %v73
  %1892 = vmatprep.subr.mxu0 %v76
  %1893 = vmatpush1.msra.mxu0 %v75
  %1894 = vmatprep.subr.mxu0 %v78
  %1895 = vmatpush1.msra.mxu0 %v77
  %1896 = vmatprep.subr.mxu0 %v80
  %1897 = vmatpush1.msra.mxu0 %v79
  %1898 = vmatprep.subr.mxu0 %v82
  %1899 = vmatpush1.msra.mxu0 %v81
  %1900 = vmatprep.subr.mxu0 %v84
  %1901 = vmatpush1.msra.mxu0 %v83
  %1902 = vmatprep.subr.mxu0 %v86
  %1903 = vmatpush1.msra.mxu0 %v85
  %1904 = vmatprep.subr.mxu0 %v88
  %1905 = vmatpush1.msra.mxu0 %v87
  %1906 = vmatprep.subr.mxu0 %v90
  %1907 = vmatpush1.msra.mxu0 %v89
  %1908 = vmatprep.subr.mxu0 %v92
  %1909 = vmatpush1.msra.mxu0 %v91
  %1910 = vmatprep.subr.mxu0 %v94
  %1911 = vmatpush1.msra.mxu0 %v93
  %1912 = vmatprep.subr.mxu0 0.0
  %1913 = vmatpush1.msra.mxu0 0.0
  %1914 = vmatprep.subr.mxu0 0.0
  %1915 = vmatpush1.msra.mxu0 0.0
  %1916 = vmatprep.subr.mxu0 0.0
  %1917 = vmatpush1.msra.mxu0 0.0
  %1918 = vmatprep.subr.mxu0 0.0
  %1919 = vmatpush1.msra.mxu0 0.0
  %1920 = vmatprep.subr.mxu0 0.0
  %1921 = vmatpush1.msra.mxu0 0.0
  %1922 = vmatprep.subr.mxu0 0.0
  %1923 = vmatpush1.msra.mxu0 0.0
  %1924 = vmatprep.subr.mxu0 0.0
  %1925 = vmatpush1.msra.mxu0 0.0
  %1926 = vmatprep.subr.mxu0 0.0
  %1927 = vmatpush1.msra.mxu0 0.0
  %1928 = vmatprep.subr.mxu0 0.0
  %1929 = vmatpush1.msra.mxu0 0.0
  %1930 = vmatprep.subr.mxu0 0.0
  %1931 = vmatpush1.msra.mxu0 0.0
  %1932 = vmatprep.subr.mxu0 0.0
  %1933 = vmatpush1.msra.mxu0 0.0
  %1934 = vmatprep.subr.mxu0 0.0
  %1935 = vmatpush1.msra.mxu0 0.0
  %1936 = vmatprep.subr.mxu0 0.0
  %1937 = vmatpush1.msra.mxu0 0.0
  %1938 = vmatprep.subr.mxu0 0.0
  %1939 = vmatpush1.msra.mxu0 0.0
  %1940 = vmatprep.subr.mxu0 0.0
  %1941 = vmatpush1.msra.mxu0 0.0
  %1942 = vmatprep.subr.mxu0 0.0
  %1943 = vmatpush1.msra.mxu0 0.0
  %1944 = vmatprep.mubr.f32.mxu0 0.0
  %1945 = vmatmul.mubr.f32.gmra.mrb[0].mxu0 %v1879
  %v1946 = vpop.f32.mrb[0].mxu0
  %v1947 = vadd.f32 %v287, %v1946
  %v1948 = vpop.f32.mrb[0].mxu0
  %v1949 = vadd.f32 %v291, %v1948
  %1950 = vdwg.mxu0
  %v1951 = vmul.f32 %v1947, 0.5
  %v1952 = vmul.f32 %v1949, 0.5
  %v1953 = vsel %vm111, %v1947, %v1951
  %v1954 = vsel %vm112, %v1949, %v1952
  %v1955 = vtanh.pop %v1953
  %v1956 = vtanh.pop %v1954
  %v1957 = vmul.f32 %v1955, 0.5
  %v1958 = vmul.f32 %v1956, 0.5
  %v1959 = vadd.f32 %v1957, 0.5
  %v1960 = vadd.f32 %v1958, 0.5
  %v1961 = vsel %vm111, %v1955, %v1959
  %v1962 = vsel %vm112, %v1956, %v1960
  %v1963 = vmul.f32 %v1961, %v1743
  %v1964 = vmul.f32 %v1961, %v1962
  %1966 = vrot.lane.b32.xlu0 %v1964, 64
  %v1967 = vpop.permute.xlu0 %1966
  %v1969 = vadd.f32 %v1963, %v1967
  %v1970 = vtanh.pop %v1969
  %v1971 = vmul.f32 %v1962, %v1970
  %1972 = vrot.lane.b32.xlu0 %v1874, 96
  %v1973 = vpop.permute.xlu0 %1972
  %v1975 = vsel %vm118, %v1877, %v1973
  %1977 = vrot.lane.b32.xlu0 %v1971, 64
  %v1978 = vpop.permute.xlu0 %1977
  %1980 = vrot.lane.b32.xlu0 %v1971, 96
  %v1981 = vpop.permute.xlu0 %1980
  %v1983 = vsel %vm118, %v1978, %v1981
  %1985 = vrot.lane.b32.xlu0 %v1872, 64
  %v1986 = vpop.permute.xlu0 %1985
  %1988 = vrot.lane.b32.xlu0 %v1872, 96
  %v1989 = vpop.permute.xlu0 %1988
  %v1991 = vsel %vm118, %v1986, %v1989
  %1993 = vrot.lane.b32.xlu0 %v1969, 64
  %v1994 = vpop.permute.xlu0 %1993
  %1996 = vrot.lane.b32.xlu0 %v1969, 96
  %v1997 = vpop.permute.xlu0 %1996
  %v1999 = vsel %vm118, %v1994, %v1997
  %v2000 = vld [vmem:[%s1] sm:$0xf]
  %v2002 = vsel %vm141, %v1975, 0
  %2004 = vmatprep.subr.mxu0 %v48
  %2005 = vmatpush1.msra.mxu0 %v47
  %2006 = vmatprep.subr.mxu0 %v50
  %2007 = vmatpush1.msra.mxu0 %v49
  %2008 = vmatprep.subr.mxu0 %v52
  %2009 = vmatpush1.msra.mxu0 %v51
  %2010 = vmatprep.subr.mxu0 %v54
  %2011 = vmatpush1.msra.mxu0 %v53
  %2012 = vmatprep.subr.mxu0 %v56
  %2013 = vmatpush1.msra.mxu0 %v55
  %2014 = vmatprep.subr.mxu0 %v58
  %2015 = vmatpush1.msra.mxu0 %v57
  %2016 = vmatprep.subr.mxu0 %v60
  %2017 = vmatpush1.msra.mxu0 %v59
  %2018 = vmatprep.subr.mxu0 %v62
  %2019 = vmatpush1.msra.mxu0 %v61
  %2020 = vmatprep.subr.mxu0 0.0
  %2021 = vmatpush1.msra.mxu0 0.0
  %2022 = vmatprep.subr.mxu0 0.0
  %2023 = vmatpush1.msra.mxu0 0.0
  %2024 = vmatprep.subr.mxu0 0.0
  %2025 = vmatpush1.msra.mxu0 0.0
  %2026 = vmatprep.subr.mxu0 0.0
  %2027 = vmatpush1.msra.mxu0 0.0
  %2028 = vmatprep.subr.mxu0 0.0
  %2029 = vmatpush1.msra.mxu0 0.0
  %2030 = vmatprep.subr.mxu0 0.0
  %2031 = vmatpush1.msra.mxu0 0.0
  %2032 = vmatprep.subr.mxu0 0.0
  %2033 = vmatpush1.msra.mxu0 0.0
  %2034 = vmatprep.subr.mxu0 0.0
  %2035 = vmatpush1.msra.mxu0 0.0
  %2036 = vmatprep.subr.mxu0 0.0
  %2037 = vmatpush1.msra.mxu0 0.0
  %2038 = vmatprep.subr.mxu0 0.0
  %2039 = vmatpush1.msra.mxu0 0.0
  %2040 = vmatprep.subr.mxu0 0.0
  %2041 = vmatpush1.msra.mxu0 0.0
  %2042 = vmatprep.subr.mxu0 0.0
  %2043 = vmatpush1.msra.mxu0 0.0
  %2044 = vmatprep.subr.mxu0 0.0
  %2045 = vmatpush1.msra.mxu0 0.0
  %2046 = vmatprep.subr.mxu0 0.0
  %2047 = vmatpush1.msra.mxu0 0.0
  %2048 = vmatprep.subr.mxu0 0.0
  %2049 = vmatpush1.msra.mxu0 0.0
  %2050 = vmatprep.subr.mxu0 0.0
  %2051 = vmatpush1.msra.mxu0 0.0
  %2052 = vmatprep.subr.mxu0 0.0
  %2053 = vmatpush1.msra.mxu0 0.0
  %2054 = vmatprep.subr.mxu0 0.0
  %2055 = vmatpush1.msra.mxu0 0.0
  %2056 = vmatprep.subr.mxu0 0.0
  %2057 = vmatpush1.msra.mxu0 0.0
  %2058 = vmatprep.subr.mxu0 0.0
  %2059 = vmatpush1.msra.mxu0 0.0
  %2060 = vmatprep.subr.mxu0 0.0
  %2061 = vmatpush1.msra.mxu0 0.0
  %2062 = vmatprep.subr.mxu0 0.0
  %2063 = vmatpush1.msra.mxu0 0.0
  %2064 = vmatprep.subr.mxu0 0.0
  %2065 = vmatpush1.msra.mxu0 0.0
  %2066 = vmatprep.subr.mxu0 0.0
  %2067 = vmatpush1.msra.mxu0 0.0
  %2068 = vmatprep.mubr.f32.mxu0 0.0
  %2069 = vmatmul.mubr.f32.gmra.mrb[0].mxu0 %v2002
  %v2070 = vpop.f32.mrb[0].mxu0
  %v2071 = vadd.f32 0.0, %v2070
  %v2072 = vpop.f32.mrb[0].mxu0
  %v2073 = vadd.f32 0.0, %v2072
  %2074 = vdwg.mxu0
  %v2077 = vcombine.low %v2071, %v2073
  %v2079 = vunpack.c.l.s4 1983009808
  %v2080 = vunpack.c.0.s8 %v2079
  %v2081 = vlaneseq
  %v2082 = vshrl.u32 %v2081, 7
  %v2083 = vsub.s32 %v2080, %v2082
  %v2084 = vrot.slane %v2077, %v2083
  %v2086 = vadd.f32 %v2000, %v2084
  %v2087 = vmul.f32 %v2086, 0.5
  %v2090 = vunpack.c.l.s4 1983009808
  %v2091 = vunpack.c.0.s8 %v2090
  %v2092 = vlaneseq
  %v2093 = vshrl.u32 %v2092, 7
  %v2094 = vsub.s32 %v2091, %v2093
  %v2095 = vrot.slane %v2086, %v2094
  %v2096 = vcombine.high %v2095, %v2095
  %v2101 = vunpack.c.l.s4 1983009808
  %v2102 = vunpack.c.0.s8 %v2101
  %v2103 = vlaneseq
  %v2104 = vshrl.u32 %v2103, 7
  %v2105 = vsub.s32 %v2102, %v2104
  %v2106 = vrot.slane %v2087, %v2105
  %v2107 = vcombine.high %v2106, %v2106
  %v2110 = vsel %vm111, %v2095, %v2106
  %v2111 = vsel %vm112, %v2096, %v2107
  %v2112 = vtanh.pop %v2110
  %v2113 = vtanh.pop %v2111
  %v2114 = vmul.f32 %v2112, 0.5
  %v2115 = vmul.f32 %v2113, 0.5
  %v2116 = vadd.f32 %v2114, 0.5
  %v2117 = vadd.f32 %v2115, 0.5
  %v2118 = vsel %vm111, %v2112, %v2116
  %v2119 = vsel %vm112, %v2113, %v2117
  %2121 = vrot.lane.b32.xlu0 %v1991, 64
  %v2122 = vpop.permute.xlu0 %2121
  %v2124 = vmul.f32 %v2118, %v2122
  %v2125 = vmul.f32 %v2118, %v2119
  %2127 = vrot.lane.b32.xlu0 %v2125, 64
  %v2128 = vpop.permute.xlu0 %2127
  %v2130 = vadd.f32 %v2124, %v2128
  %v2131 = vtanh.pop %v2130
  %v2132 = vmul.f32 %v2119, %v2131
  %2134 = vrot.lane.b32.xlu0 %v2132, 64
  %v2135 = vpop.permute.xlu0 %2134
  %2138 = vrot.lane.b32.xlu0 %v1983, 64
  %v2139 = vpop.permute.xlu0 %2138
  %v2141 = vsel %vm141, %v2135, %v2139
  %2142 = vmatprep.subr.mxu0 %v64
  %2143 = vmatpush1.msra.mxu0 %v63
  %2144 = vmatprep.subr.mxu0 %v66
  %2145 = vmatpush1.msra.mxu0 %v65
  %2146 = vmatprep.subr.mxu0 %v68
  %2147 = vmatpush1.msra.mxu0 %v67
  %2148 = vmatprep.subr.mxu0 %v70
  %2149 = vmatpush1.msra.mxu0 %v69
  %2150 = vmatprep.subr.mxu0 %v72
  %2151 = vmatpush1.msra.mxu0 %v71
  %2152 = vmatprep.subr.mxu0 %v74
  %2153 = vmatpush1.msra.mxu0 %v73
  %2154 = vmatprep.subr.mxu0 %v76
  %2155 = vmatpush1.msra.mxu0 %v75
  %2156 = vmatprep.subr.mxu0 %v78
  %2157 = vmatpush1.msra.mxu0 %v77
  %2158 = vmatprep.subr.mxu0 %v80
  %2159 = vmatpush1.msra.mxu0 %v79
  %2160 = vmatprep.subr.mxu0 %v82
  %2161 = vmatpush1.msra.mxu0 %v81
  %2162 = vmatprep.subr.mxu0 %v84
  %2163 = vmatpush1.msra.mxu0 %v83
  %2164 = vmatprep.subr.mxu0 %v86
  %2165 = vmatpush1.msra.mxu0 %v85
  %2166 = vmatprep.subr.mxu0 %v88
  %2167 = vmatpush1.msra.mxu0 %v87
  %2168 = vmatprep.subr.mxu0 %v90
  %2169 = vmatpush1.msra.mxu0 %v89
  %2170 = vmatprep.subr.mxu0 %v92
  %2171 = vmatpush1.msra.mxu0 %v91
  %2172 = vmatprep.subr.mxu0 %v94
  %2173 = vmatpush1.msra.mxu0 %v93
  %2174 = vmatprep.subr.mxu0 0.0
  %2175 = vmatpush1.msra.mxu0 0.0
  %2176 = vmatprep.subr.mxu0 0.0
  %2177 = vmatpush1.msra.mxu0 0.0
  %2178 = vmatprep.subr.mxu0 0.0
  %2179 = vmatpush1.msra.mxu0 0.0
  %2180 = vmatprep.subr.mxu0 0.0
  %2181 = vmatpush1.msra.mxu0 0.0
  %2182 = vmatprep.subr.mxu0 0.0
  %2183 = vmatpush1.msra.mxu0 0.0
  %2184 = vmatprep.subr.mxu0 0.0
  %2185 = vmatpush1.msra.mxu0 0.0
  %2186 = vmatprep.subr.mxu0 0.0
  %2187 = vmatpush1.msra.mxu0 0.0
  %2188 = vmatprep.subr.mxu0 0.0
  %2189 = vmatpush1.msra.mxu0 0.0
  %2190 = vmatprep.subr.mxu0 0.0
  %2191 = vmatpush1.msra.mxu0 0.0
  %2192 = vmatprep.subr.mxu0 0.0
  %2193 = vmatpush1.msra.mxu0 0.0
  %2194 = vmatprep.subr.mxu0 0.0
  %2195 = vmatpush1.msra.mxu0 0.0
  %2196 = vmatprep.subr.mxu0 0.0
  %2197 = vmatpush1.msra.mxu0 0.0
  %2198 = vmatprep.subr.mxu0 0.0
  %2199 = vmatpush1.msra.mxu0 0.0
  %2200 = vmatprep.subr.mxu0 0.0
  %2201 = vmatpush1.msra.mxu0 0.0
  %2202 = vmatprep.subr.mxu0 0.0
  %2203 = vmatpush1.msra.mxu0 0.0
  %2204 = vmatprep.subr.mxu0 0.0
  %2205 = vmatpush1.msra.mxu0 0.0
  %2206 = vmatprep.mubr.f32.mxu0 0.0
  %2207 = vmatmul.mubr.f32.gmra.mrb[0].mxu0 %v2141
  %v2208 = vpop.f32.mrb[0].mxu0
  %v2209 = vadd.f32 %v287, %v2208
  %v2210 = vpop.f32.mrb[0].mxu0
  %v2211 = vadd.f32 %v291, %v2210
  %2212 = vdwg.mxu0
  %v2213 = vmul.f32 %v2209, 0.5
  %v2214 = vmul.f32 %v2211, 0.5
  %v2215 = vsel %vm111, %v2209, %v2213
  %v2216 = vsel %vm112, %v2211, %v2214
  %v2217 = vtanh.pop %v2215
  %v2218 = vtanh.pop %v2216
  %v2219 = vmul.f32 %v2217, 0.5
  %v2220 = vmul.f32 %v2218, 0.5
  %v2221 = vadd.f32 %v2219, 0.5
  %v2222 = vadd.f32 %v2220, 0.5
  %v2223 = vsel %vm111, %v2217, %v2221
  %v2224 = vsel %vm112, %v2218, %v2222
  %2226 = vrot.lane.b32.xlu0 %v1999, 64
  %v2227 = vpop.permute.xlu0 %2226
  %v2229 = vmul.f32 %v2223, %v2227
  %v2230 = vmul.f32 %v2223, %v2224
  %2232 = vrot.lane.b32.xlu0 %v2230, 64
  %v2233 = vpop.permute.xlu0 %2232
  %v2235 = vadd.f32 %v2229, %v2233
  %v2236 = vtanh.pop %v2235
  %v2237 = vmul.f32 %v2224, %v2236
  %s2238 = scalar_lea.vmem %s1, 4
  %v2239 = vld [vmem:[%s2238] sm:$0xf]
  %v2240 = vsel %vm141, %v2135, 0
  %2242 = vmatprep.subr.mxu0 %v48
  %2243 = vmatpush1.msra.mxu0 %v47
  %2244 = vmatprep.subr.mxu0 %v50
  %2245 = vmatpush1.msra.mxu0 %v49
  %2246 = vmatprep.subr.mxu0 %v52
  %2247 = vmatpush1.msra.mxu0 %v51
  %2248 = vmatprep.subr.mxu0 %v54
  %2249 = vmatpush1.msra.mxu0 %v53
  %2250 = vmatprep.subr.mxu0 %v56
  %2251 = vmatpush1.msra.mxu0 %v55
  %2252 = vmatprep.subr.mxu0 %v58
  %2253 = vmatpush1.msra.mxu0 %v57
  %2254 = vmatprep.subr.mxu0 %v60
  %2255 = vmatpush1.msra.mxu0 %v59
  %2256 = vmatprep.subr.mxu0 %v62
  %2257 = vmatpush1.msra.mxu0 %v61
  %2258 = vmatprep.subr.mxu0 0.0
  %2259 = vmatpush1.msra.mxu0 0.0
  %2260 = vmatprep.subr.mxu0 0.0
  %2261 = vmatpush1.msra.mxu0 0.0
  %2262 = vmatprep.subr.mxu0 0.0
  %2263 = vmatpush1.msra.mxu0 0.0
  %2264 = vmatprep.subr.mxu0 0.0
  %2265 = vmatpush1.msra.mxu0 0.0
  %2266 = vmatprep.subr.mxu0 0.0
  %2267 = vmatpush1.msra.mxu0 0.0
  %2268 = vmatprep.subr.mxu0 0.0
  %2269 = vmatpush1.msra.mxu0 0.0
  %2270 = vmatprep.subr.mxu0 0.0
  %2271 = vmatpush1.msra.mxu0 0.0
  %2272 = vmatprep.subr.mxu0 0.0
  %2273 = vmatpush1.msra.mxu0 0.0
  %2274 = vmatprep.subr.mxu0 0.0
  %2275 = vmatpush1.msra.mxu0 0.0
  %2276 = vmatprep.subr.mxu0 0.0
  %2277 = vmatpush1.msra.mxu0 0.0
  %2278 = vmatprep.subr.mxu0 0.0
  %2279 = vmatpush1.msra.mxu0 0.0
  %2280 = vmatprep.subr.mxu0 0.0
  %2281 = vmatpush1.msra.mxu0 0.0
  %2282 = vmatprep.subr.mxu0 0.0
  %2283 = vmatpush1.msra.mxu0 0.0
  %2284 = vmatprep.subr.mxu0 0.0
  %2285 = vmatpush1.msra.mxu0 0.0
  %2286 = vmatprep.subr.mxu0 0.0
  %2287 = vmatpush1.msra.mxu0 0.0
  %2288 = vmatprep.subr.mxu0 0.0
  %2289 = vmatpush1.msra.mxu0 0.0
  %2290 = vmatprep.subr.mxu0 0.0
  %2291 = vmatpush1.msra.mxu0 0.0
  %2292 = vmatprep.subr.mxu0 0.0
  %2293 = vmatpush1.msra.mxu0 0.0
  %2294 = vmatprep.subr.mxu0 0.0
  %2295 = vmatpush1.msra.mxu0 0.0
  %2296 = vmatprep.subr.mxu0 0.0
  %2297 = vmatpush1.msra.mxu0 0.0
  %2298 = vmatprep.subr.mxu0 0.0
  %2299 = vmatpush1.msra.mxu0 0.0
  %2300 = vmatprep.subr.mxu0 0.0
  %2301 = vmatpush1.msra.mxu0 0.0
  %2302 = vmatprep.subr.mxu0 0.0
  %2303 = vmatpush1.msra.mxu0 0.0
  %2304 = vmatprep.subr.mxu0 0.0
  %2305 = vmatpush1.msra.mxu0 0.0
  %2306 = vmatprep.mubr.f32.mxu0 0.0
  %2307 = vmatmul.mubr.f32.gmra.mrb[0].mxu0 %v2240
  %v2308 = vpop.f32.mrb[0].mxu0
  %v2309 = vadd.f32 0.0, %v2308
  %v2310 = vpop.f32.mrb[0].mxu0
  %v2311 = vadd.f32 0.0, %v2310
  %2312 = vdwg.mxu0
  %v2315 = vcombine.low %v2309, %v2311
  %v2317 = vunpack.c.l.s4 1983009808
  %v2318 = vunpack.c.0.s8 %v2317
  %v2319 = vlaneseq
  %v2320 = vshrl.u32 %v2319, 7
  %v2321 = vsub.s32 %v2318, %v2320
  %v2322 = vrot.slane %v2315, %v2321
  %v2324 = vadd.f32 %v2239, %v2322
  %v2325 = vmul.f32 %v2324, 0.5
  %v2328 = vunpack.c.l.s4 1983009808
  %v2329 = vunpack.c.0.s8 %v2328
  %v2330 = vlaneseq
  %v2331 = vshrl.u32 %v2330, 7
  %v2332 = vsub.s32 %v2329, %v2331
  %v2333 = vrot.slane %v2324, %v2332
  %v2334 = vcombine.high %v2333, %v2333
  %v2339 = vunpack.c.l.s4 1983009808
  %v2340 = vunpack.c.0.s8 %v2339
  %v2341 = vlaneseq
  %v2342 = vshrl.u32 %v2341, 7
  %v2343 = vsub.s32 %v2340, %v2342
  %v2344 = vrot.slane %v2325, %v2343
  %v2345 = vcombine.high %v2344, %v2344
  %v2348 = vsel %vm111, %v2333, %v2344
  %v2349 = vsel %vm112, %v2334, %v2345
  %v2350 = vtanh.pop %v2348
  %v2351 = vtanh.pop %v2349
  %v2352 = vmul.f32 %v2350, 0.5
  %v2353 = vmul.f32 %v2351, 0.5
  %v2354 = vadd.f32 %v2352, 0.5
  %v2355 = vadd.f32 %v2353, 0.5
  %v2356 = vsel %vm111, %v2350, %v2354
  %v2357 = vsel %vm112, %v2351, %v2355
  %v2358 = vmul.f32 %v2356, %v2130
  %v2359 = vmul.f32 %v2356, %v2357
  %2361 = vrot.lane.b32.xlu0 %v2359, 64
  %v2362 = vpop.permute.xlu0 %2361
  %v2364 = vadd.f32 %v2358, %v2362
  %v2365 = vtanh.pop %v2364
  %v2366 = vmul.f32 %v2357, %v2365
  %2368 = vrot.lane.b32.xlu0 %v2366, 64
  %v2369 = vpop.permute.xlu0 %2368
  %v2371 = vsel %vm141, %v2369, %v2237
  %2372 = vmatprep.subr.mxu0 %v64
  %2373 = vmatpush1.msra.mxu0 %v63
  %2374 = vmatprep.subr.mxu0 %v66
  %2375 = vmatpush1.msra.mxu0 %v65
  %2376 = vmatprep.subr.mxu0 %v68
  %2377 = vmatpush1.msra.mxu0 %v67
  %2378 = vmatprep.subr.mxu0 %v70
  %2379 = vmatpush1.msra.mxu0 %v69
  %2380 = vmatprep.subr.mxu0 %v72
  %2381 = vmatpush1.msra.mxu0 %v71
  %2382 = vmatprep.subr.mxu0 %v74
  %2383 = vmatpush1.msra.mxu0 %v73
  %2384 = vmatprep.subr.mxu0 %v76
  %2385 = vmatpush1.msra.mxu0 %v75
  %2386 = vmatprep.subr.mxu0 %v78
  %2387 = vmatpush1.msra.mxu0 %v77
  %2388 = vmatprep.subr.mxu0 %v80
  %2389 = vmatpush1.msra.mxu0 %v79
  %2390 = vmatprep.subr.mxu0 %v82
  %2391 = vmatpush1.msra.mxu0 %v81
  %2392 = vmatprep.subr.mxu0 %v84
  %2393 = vmatpush1.msra.mxu0 %v83
  %2394 = vmatprep.subr.mxu0 %v86
  %2395 = vmatpush1.msra.mxu0 %v85
  %2396 = vmatprep.subr.mxu0 %v88
  %2397 = vmatpush1.msra.mxu0 %v87
  %2398 = vmatprep.subr.mxu0 %v90
  %2399 = vmatpush1.msra.mxu0 %v89
  %2400 = vmatprep.subr.mxu0 %v92
  %2401 = vmatpush1.msra.mxu0 %v91
  %2402 = vmatprep.subr.mxu0 %v94
  %2403 = vmatpush1.msra.mxu0 %v93
  %2404 = vmatprep.subr.mxu0 0.0
  %2405 = vmatpush1.msra.mxu0 0.0
  %2406 = vmatprep.subr.mxu0 0.0
  %2407 = vmatpush1.msra.mxu0 0.0
  %2408 = vmatprep.subr.mxu0 0.0
  %2409 = vmatpush1.msra.mxu0 0.0
  %2410 = vmatprep.subr.mxu0 0.0
  %2411 = vmatpush1.msra.mxu0 0.0
  %2412 = vmatprep.subr.mxu0 0.0
  %2413 = vmatpush1.msra.mxu0 0.0
  %2414 = vmatprep.subr.mxu0 0.0
  %2415 = vmatpush1.msra.mxu0 0.0
  %2416 = vmatprep.subr.mxu0 0.0
  %2417 = vmatpush1.msra.mxu0 0.0
  %2418 = vmatprep.subr.mxu0 0.0
  %2419 = vmatpush1.msra.mxu0 0.0
  %2420 = vmatprep.subr.mxu0 0.0
  %2421 = vmatpush1.msra.mxu0 0.0
  %2422 = vmatprep.subr.mxu0 0.0
  %2423 = vmatpush1.msra.mxu0 0.0
  %2424 = vmatprep.subr.mxu0 0.0
  %2425 = vmatpush1.msra.mxu0 0.0
  %2426 = vmatprep.subr.mxu0 0.0
  %2427 = vmatpush1.msra.mxu0 0.0
  %2428 = vmatprep.subr.mxu0 0.0
  %2429 = vmatpush1.msra.mxu0 0.0
  %2430 = vmatprep.subr.mxu0 0.0
  %2431 = vmatpush1.msra.mxu0 0.0
  %2432 = vmatprep.subr.mxu0 0.0
  %2433 = vmatpush1.msra.mxu0 0.0
  %2434 = vmatprep.subr.mxu0 0.0
  %2435 = vmatpush1.msra.mxu0 0.0
  %2436 = vmatprep.mubr.f32.mxu0 0.0
  %2437 = vmatmul.mubr.f32.gmra.mrb[0].mxu0 %v2371
  %v2438 = vpop.f32.mrb[0].mxu0
  %v2439 = vadd.f32 %v287, %v2438
  %v2440 = vpop.f32.mrb[0].mxu0
  %v2441 = vadd.f32 %v291, %v2440
  %2442 = vdwg.mxu0
  %v2443 = vmul.f32 %v2439, 0.5
  %v2444 = vmul.f32 %v2441, 0.5
  %v2445 = vsel %vm111, %v2439, %v2443
  %v2446 = vsel %vm112, %v2441, %v2444
  %v2447 = vtanh.pop %v2445
  %v2448 = vtanh.pop %v2446
  %v2449 = vmul.f32 %v2447, 0.5
  %v2450 = vmul.f32 %v2448, 0.5
  %v2451 = vadd.f32 %v2449, 0.5
  %v2452 = vadd.f32 %v2450, 0.5
  %v2453 = vsel %vm111, %v2447, %v2451
  %v2454 = vsel %vm112, %v2448, %v2452
  %v2455 = vmul.f32 %v2453, %v2235
  %v2456 = vmul.f32 %v2453, %v2454
  %2458 = vrot.lane.b32.xlu0 %v2456, 64
  %v2459 = vpop.permute.xlu0 %2458
  %v2461 = vadd.f32 %v2455, %v2459
  %v2462 = vtanh.pop %v2461
  %v2463 = vmul.f32 %v2454, %v2462
  %s2464 = scalar_lea.vmem %s1, 8
  %v2465 = vld [vmem:[%s2464] sm:$0xf]
  %v2466 = vsel %vm141, %v2369, 0
  %2468 = vmatprep.subr.mxu0 %v48
  %2469 = vmatpush1.msra.mxu0 %v47
  %2470 = vmatprep.subr.mxu0 %v50
  %2471 = vmatpush1.msra.mxu0 %v49
  %2472 = vmatprep.subr.mxu0 %v52
  %2473 = vmatpush1.msra.mxu0 %v51
  %2474 = vmatprep.subr.mxu0 %v54
  %2475 = vmatpush1.msra.mxu0 %v53
  %2476 = vmatprep.subr.mxu0 %v56
  %2477 = vmatpush1.msra.mxu0 %v55
  %2478 = vmatprep.subr.mxu0 %v58
  %2479 = vmatpush1.msra.mxu0 %v57
  %2480 = vmatprep.subr.mxu0 %v60
  %2481 = vmatpush1.msra.mxu0 %v59
  %2482 = vmatprep.subr.mxu0 %v62
  %2483 = vmatpush1.msra.mxu0 %v61
  %2484 = vmatprep.subr.mxu0 0.0
  %2485 = vmatpush1.msra.mxu0 0.0
  %2486 = vmatprep.subr.mxu0 0.0
  %2487 = vmatpush1.msra.mxu0 0.0
  %2488 = vmatprep.subr.mxu0 0.0
  %2489 = vmatpush1.msra.mxu0 0.0
  %2490 = vmatprep.subr.mxu0 0.0
  %2491 = vmatpush1.msra.mxu0 0.0
  %2492 = vmatprep.subr.mxu0 0.0
  %2493 = vmatpush1.msra.mxu0 0.0
  %2494 = vmatprep.subr.mxu0 0.0
  %2495 = vmatpush1.msra.mxu0 0.0
  %2496 = vmatprep.subr.mxu0 0.0
  %2497 = vmatpush1.msra.mxu0 0.0
  %2498 = vmatprep.subr.mxu0 0.0
  %2499 = vmatpush1.msra.mxu0 0.0
  %2500 = vmatprep.subr.mxu0 0.0
  %2501 = vmatpush1.msra.mxu0 0.0
  %2502 = vmatprep.subr.mxu0 0.0
  %2503 = vmatpush1.msra.mxu0 0.0
  %2504 = vmatprep.subr.mxu0 0.0
  %2505 = vmatpush1.msra.mxu0 0.0
  %2506 = vmatprep.subr.mxu0 0.0
  %2507 = vmatpush1.msra.mxu0 0.0
  %2508 = vmatprep.subr.mxu0 0.0
  %2509 = vmatpush1.msra.mxu0 0.0
  %2510 = vmatprep.subr.mxu0 0.0
  %2511 = vmatpush1.msra.mxu0 0.0
  %2512 = vmatprep.subr.mxu0 0.0
  %2513 = vmatpush1.msra.mxu0 0.0
  %2514 = vmatprep.subr.mxu0 0.0
  %2515 = vmatpush1.msra.mxu0 0.0
  %2516 = vmatprep.subr.mxu0 0.0
  %2517 = vmatpush1.msra.mxu0 0.0
  %2518 = vmatprep.subr.mxu0 0.0
  %2519 = vmatpush1.msra.mxu0 0.0
  %2520 = vmatprep.subr.mxu0 0.0
  %2521 = vmatpush1.msra.mxu0 0.0
  %2522 = vmatprep.subr.mxu0 0.0
  %2523 = vmatpush1.msra.mxu0 0.0
  %2524 = vmatprep.subr.mxu0 0.0
  %2525 = vmatpush1.msra.mxu0 0.0
  %2526 = vmatprep.subr.mxu0 0.0
  %2527 = vmatpush1.msra.mxu0 0.0
  %2528 = vmatprep.subr.mxu0 0.0
  %2529 = vmatpush1.msra.mxu0 0.0
  %2530 = vmatprep.subr.mxu0 0.0
  %2531 = vmatpush1.msra.mxu0 0.0
  %2532 = vmatprep.mubr.f32.mxu0 0.0
  %2533 = vmatmul.mubr.f32.gmra.mrb[0].mxu0 %v2466
  %v2534 = vpop.f32.mrb[0].mxu0
  %v2535 = vadd.f32 0.0, %v2534
  %v2536 = vpop.f32.mrb[0].mxu0
  %v2537 = vadd.f32 0.0, %v2536
  %2538 = vdwg.mxu0
  %v2541 = vcombine.low %v2535, %v2537
  %v2543 = vunpack.c.l.s4 1983009808
  %v2544 = vunpack.c.0.s8 %v2543
  %v2545 = vlaneseq
  %v2546 = vshrl.u32 %v2545, 7
  %v2547 = vsub.s32 %v2544, %v2546
  %v2548 = vrot.slane %v2541, %v2547
  %v2550 = vadd.f32 %v2465, %v2548
  %v2551 = vmul.f32 %v2550, 0.5
  %v2554 = vunpack.c.l.s4 1983009808
  %v2555 = vunpack.c.0.s8 %v2554
  %v2556 = vlaneseq
  %v2557 = vshrl.u32 %v2556, 7
  %v2558 = vsub.s32 %v2555, %v2557
  %v2559 = vrot.slane %v2550, %v2558
  %v2560 = vcombine.high %v2559, %v2559
  %v2565 = vunpack.c.l.s4 1983009808
  %v2566 = vunpack.c.0.s8 %v2565
  %v2567 = vlaneseq
  %v2568 = vshrl.u32 %v2567, 7
  %v2569 = vsub.s32 %v2566, %v2568
  %v2570 = vrot.slane %v2551, %v2569
  %v2571 = vcombine.high %v2570, %v2570
  %v2574 = vsel %vm111, %v2559, %v2570
  %v2575 = vsel %vm112, %v2560, %v2571
  %v2576 = vtanh.pop %v2574
  %v2577 = vtanh.pop %v2575
  %v2578 = vmul.f32 %v2576, 0.5
  %v2579 = vmul.f32 %v2577, 0.5
  %v2580 = vadd.f32 %v2578, 0.5
  %v2581 = vadd.f32 %v2579, 0.5
  %v2582 = vsel %vm111, %v2576, %v2580
  %v2583 = vsel %vm112, %v2577, %v2581
  %v2584 = vmul.f32 %v2582, %v2364
  %v2585 = vmul.f32 %v2582, %v2583
  %2587 = vrot.lane.b32.xlu0 %v2585, 64
  %v2588 = vpop.permute.xlu0 %2587
  %v2590 = vadd.f32 %v2584, %v2588
  %v2591 = vtanh.pop %v2590
  %v2592 = vmul.f32 %v2583, %v2591
  %2594 = vrot.lane.b32.xlu0 %v2592, 64
  %v2595 = vpop.permute.xlu0 %2594
  %v2597 = vsel %vm141, %v2595, %v2463
  %2598 = vmatprep.subr.mxu0 %v64
  %2599 = vmatpush1.msra.mxu0 %v63
  %2600 = vmatprep.subr.mxu0 %v66
  %2601 = vmatpush1.msra.mxu0 %v65
  %2602 = vmatprep.subr.mxu0 %v68
  %2603 = vmatpush1.msra.mxu0 %v67
  %2604 = vmatprep.subr.mxu0 %v70
  %2605 = vmatpush1.msra.mxu0 %v69
  %2606 = vmatprep.subr.mxu0 %v72
  %2607 = vmatpush1.msra.mxu0 %v71
  %2608 = vmatprep.subr.mxu0 %v74
  %2609 = vmatpush1.msra.mxu0 %v73
  %2610 = vmatprep.subr.mxu0 %v76
  %2611 = vmatpush1.msra.mxu0 %v75
  %2612 = vmatprep.subr.mxu0 %v78
  %2613 = vmatpush1.msra.mxu0 %v77
  %2614 = vmatprep.subr.mxu0 %v80
  %2615 = vmatpush1.msra.mxu0 %v79
  %2616 = vmatprep.subr.mxu0 %v82
  %2617 = vmatpush1.msra.mxu0 %v81
  %2618 = vmatprep.subr.mxu0 %v84
  %2619 = vmatpush1.msra.mxu0 %v83
  %2620 = vmatprep.subr.mxu0 %v86
  %2621 = vmatpush1.msra.mxu0 %v85
  %2622 = vmatprep.subr.mxu0 %v88
  %2623 = vmatpush1.msra.mxu0 %v87
  %2624 = vmatprep.subr.mxu0 %v90
  %2625 = vmatpush1.msra.mxu0 %v89
  %2626 = vmatprep.subr.mxu0 %v92
  %2627 = vmatpush1.msra.mxu0 %v91
  %2628 = vmatprep.subr.mxu0 %v94
  %2629 = vmatpush1.msra.mxu0 %v93
  %2630 = vmatprep.subr.mxu0 0.0
  %2631 = vmatpush1.msra.mxu0 0.0
  %2632 = vmatprep.subr.mxu0 0.0
  %2633 = vmatpush1.msra.mxu0 0.0
  %2634 = vmatprep.subr.mxu0 0.0
  %2635 = vmatpush1.msra.mxu0 0.0
  %2636 = vmatprep.subr.mxu0 0.0
  %2637 = vmatpush1.msra.mxu0 0.0
  %2638 = vmatprep.subr.mxu0 0.0
  %2639 = vmatpush1.msra.mxu0 0.0
  %2640 = vmatprep.subr.mxu0 0.0
  %2641 = vmatpush1.msra.mxu0 0.0
  %2642 = vmatprep.subr.mxu0 0.0
  %2643 = vmatpush1.msra.mxu0 0.0
  %2644 = vmatprep.subr.mxu0 0.0
  %2645 = vmatpush1.msra.mxu0 0.0
  %2646 = vmatprep.subr.mxu0 0.0
  %2647 = vmatpush1.msra.mxu0 0.0
  %2648 = vmatprep.subr.mxu0 0.0
  %2649 = vmatpush1.msra.mxu0 0.0
  %2650 = vmatprep.subr.mxu0 0.0
  %2651 = vmatpush1.msra.mxu0 0.0
  %2652 = vmatprep.subr.mxu0 0.0
  %2653 = vmatpush1.msra.mxu0 0.0
  %2654 = vmatprep.subr.mxu0 0.0
  %2655 = vmatpush1.msra.mxu0 0.0
  %2656 = vmatprep.subr.mxu0 0.0
  %2657 = vmatpush1.msra.mxu0 0.0
  %2658 = vmatprep.subr.mxu0 0.0
  %2659 = vmatpush1.msra.mxu0 0.0
  %2660 = vmatprep.subr.mxu0 0.0
  %2661 = vmatpush1.msra.mxu0 0.0
  %2662 = vmatprep.mubr.f32.mxu0 0.0
  %2663 = vmatmul.mubr.f32.gmra.mrb[0].mxu0 %v2597
  %v2664 = vpop.f32.mrb[0].mxu0
  %v2665 = vadd.f32 %v287, %v2664
  %v2666 = vpop.f32.mrb[0].mxu0
  %v2667 = vadd.f32 %v291, %v2666
  %2668 = vdwg.mxu0
  %v2669 = vmul.f32 %v2665, 0.5
  %v2670 = vmul.f32 %v2667, 0.5
  %v2671 = vsel %vm111, %v2665, %v2669
  %v2672 = vsel %vm112, %v2667, %v2670
  %v2673 = vtanh.pop %v2671
  %v2674 = vtanh.pop %v2672
  %v2675 = vmul.f32 %v2673, 0.5
  %v2676 = vmul.f32 %v2674, 0.5
  %v2677 = vadd.f32 %v2675, 0.5
  %v2678 = vadd.f32 %v2676, 0.5
  %v2679 = vsel %vm111, %v2673, %v2677
  %v2680 = vsel %vm112, %v2674, %v2678
  %v2681 = vmul.f32 %v2679, %v2461
  %v2682 = vmul.f32 %v2679, %v2680
  %2684 = vrot.lane.b32.xlu0 %v2682, 64
  %v2685 = vpop.permute.xlu0 %2684
  %v2687 = vadd.f32 %v2681, %v2685
  %v2688 = vtanh.pop %v2687
  %v2689 = vmul.f32 %v2680, %v2688
  %s2690 = scalar_lea.vmem %s1, 12
  %v2691 = vld [vmem:[%s2690] sm:$0xf]
  %v2692 = vsel %vm141, %v2595, 0
  %2694 = vmatprep.subr.mxu0 %v48
  %2695 = vmatpush1.msra.mxu0 %v47
  %2696 = vmatprep.subr.mxu0 %v50
  %2697 = vmatpush1.msra.mxu0 %v49
  %2698 = vmatprep.subr.mxu0 %v52
  %2699 = vmatpush1.msra.mxu0 %v51
  %2700 = vmatprep.subr.mxu0 %v54
  %2701 = vmatpush1.msra.mxu0 %v53
  %2702 = vmatprep.subr.mxu0 %v56
  %2703 = vmatpush1.msra.mxu0 %v55
  %2704 = vmatprep.subr.mxu0 %v58
  %2705 = vmatpush1.msra.mxu0 %v57
  %2706 = vmatprep.subr.mxu0 %v60
  %2707 = vmatpush1.msra.mxu0 %v59
  %2708 = vmatprep.subr.mxu0 %v62
  %2709 = vmatpush1.msra.mxu0 %v61
  %2710 = vmatprep.subr.mxu0 0.0
  %2711 = vmatpush1.msra.mxu0 0.0
  %2712 = vmatprep.subr.mxu0 0.0
  %2713 = vmatpush1.msra.mxu0 0.0
  %2714 = vmatprep.subr.mxu0 0.0
  %2715 = vmatpush1.msra.mxu0 0.0
  %2716 = vmatprep.subr.mxu0 0.0
  %2717 = vmatpush1.msra.mxu0 0.0
  %2718 = vmatprep.subr.mxu0 0.0
  %2719 = vmatpush1.msra.mxu0 0.0
  %2720 = vmatprep.subr.mxu0 0.0
  %2721 = vmatpush1.msra.mxu0 0.0
  %2722 = vmatprep.subr.mxu0 0.0
  %2723 = vmatpush1.msra.mxu0 0.0
  %2724 = vmatprep.subr.mxu0 0.0
  %2725 = vmatpush1.msra.mxu0 0.0
  %2726 = vmatprep.subr.mxu0 0.0
  %2727 = vmatpush1.msra.mxu0 0.0
  %2728 = vmatprep.subr.mxu0 0.0
  %2729 = vmatpush1.msra.mxu0 0.0
  %2730 = vmatprep.subr.mxu0 0.0
  %2731 = vmatpush1.msra.mxu0 0.0
  %2732 = vmatprep.subr.mxu0 0.0
  %2733 = vmatpush1.msra.mxu0 0.0
  %2734 = vmatprep.subr.mxu0 0.0
  %2735 = vmatpush1.msra.mxu0 0.0
  %2736 = vmatprep.subr.mxu0 0.0
  %2737 = vmatpush1.msra.mxu0 0.0
  %2738 = vmatprep.subr.mxu0 0.0
  %2739 = vmatpush1.msra.mxu0 0.0
  %2740 = vmatprep.subr.mxu0 0.0
  %2741 = vmatpush1.msra.mxu0 0.0
  %2742 = vmatprep.subr.mxu0 0.0
  %2743 = vmatpush1.msra.mxu0 0.0
  %2744 = vmatprep.subr.mxu0 0.0
  %2745 = vmatpush1.msra.mxu0 0.0
  %2746 = vmatprep.subr.mxu0 0.0
  %2747 = vmatpush1.msra.mxu0 0.0
  %2748 = vmatprep.subr.mxu0 0.0
  %2749 = vmatpush1.msra.mxu0 0.0
  %2750 = vmatprep.subr.mxu0 0.0
  %2751 = vmatpush1.msra.mxu0 0.0
  %2752 = vmatprep.subr.mxu0 0.0
  %2753 = vmatpush1.msra.mxu0 0.0
  %2754 = vmatprep.subr.mxu0 0.0
  %2755 = vmatpush1.msra.mxu0 0.0
  %2756 = vmatprep.subr.mxu0 0.0
  %2757 = vmatpush1.msra.mxu0 0.0
  %2758 = vmatprep.mubr.f32.mxu0 0.0
  %2759 = vmatmul.mubr.f32.gmra.mrb[0].mxu0 %v2692
  %v2760 = vpop.f32.mrb[0].mxu0
  %v2761 = vadd.f32 0.0, %v2760
  %v2762 = vpop.f32.mrb[0].mxu0
  %v2763 = vadd.f32 0.0, %v2762
  %2764 = vdwg.mxu0
  %v2767 = vcombine.low %v2761, %v2763
  %v2769 = vunpack.c.l.s4 1983009808
  %v2770 = vunpack.c.0.s8 %v2769
  %v2771 = vlaneseq
  %v2772 = vshrl.u32 %v2771, 7
  %v2773 = vsub.s32 %v2770, %v2772
  %v2774 = vrot.slane %v2767, %v2773
  %v2776 = vadd.f32 %v2691, %v2774
  %v2777 = vmul.f32 %v2776, 0.5
  %v2780 = vunpack.c.l.s4 1983009808
  %v2781 = vunpack.c.0.s8 %v2780
  %v2782 = vlaneseq
  %v2783 = vshrl.u32 %v2782, 7
  %v2784 = vsub.s32 %v2781, %v2783
  %v2785 = vrot.slane %v2776, %v2784
  %v2786 = vcombine.high %v2785, %v2785
  %v2791 = vunpack.c.l.s4 1983009808
  %v2792 = vunpack.c.0.s8 %v2791
  %v2793 = vlaneseq
  %v2794 = vshrl.u32 %v2793, 7
  %v2795 = vsub.s32 %v2792, %v2794
  %v2796 = vrot.slane %v2777, %v2795
  %v2797 = vcombine.high %v2796, %v2796
  %v2800 = vsel %vm111, %v2785, %v2796
  %v2801 = vsel %vm112, %v2786, %v2797
  %v2802 = vtanh.pop %v2800
  %v2803 = vtanh.pop %v2801
  %v2804 = vmul.f32 %v2802, 0.5
  %v2805 = vmul.f32 %v2803, 0.5
  %v2806 = vadd.f32 %v2804, 0.5
  %v2807 = vadd.f32 %v2805, 0.5
  %v2808 = vsel %vm111, %v2802, %v2806
  %v2809 = vsel %vm112, %v2803, %v2807
  %v2810 = vmul.f32 %v2808, %v2590
  %v2811 = vmul.f32 %v2808, %v2809
  %2813 = vrot.lane.b32.xlu0 %v2811, 64
  %v2814 = vpop.permute.xlu0 %2813
  %v2816 = vadd.f32 %v2810, %v2814
  %v2817 = vtanh.pop %v2816
  %v2818 = vmul.f32 %v2809, %v2817
  %2820 = vrot.lane.b32.xlu0 %v2818, 64
  %v2821 = vpop.permute.xlu0 %2820
  %v2823 = vsel %vm141, %v2821, %v2689
  %2824 = vmatprep.subr.mxu0 %v64
  %2825 = vmatpush1.msra.mxu0 %v63
  %2826 = vmatprep.subr.mxu0 %v66
  %2827 = vmatpush1.msra.mxu0 %v65
  %2828 = vmatprep.subr.mxu0 %v68
  %2829 = vmatpush1.msra.mxu0 %v67
  %2830 = vmatprep.subr.mxu0 %v70
  %2831 = vmatpush1.msra.mxu0 %v69
  %2832 = vmatprep.subr.mxu0 %v72
  %2833 = vmatpush1.msra.mxu0 %v71
  %2834 = vmatprep.subr.mxu0 %v74
  %2835 = vmatpush1.msra.mxu0 %v73
  %2836 = vmatprep.subr.mxu0 %v76
  %2837 = vmatpush1.msra.mxu0 %v75
  %2838 = vmatprep.subr.mxu0 %v78
  %2839 = vmatpush1.msra.mxu0 %v77
  %2840 = vmatprep.subr.mxu0 %v80
  %2841 = vmatpush1.msra.mxu0 %v79
  %2842 = vmatprep.subr.mxu0 %v82
  %2843 = vmatpush1.msra.mxu0 %v81
  %2844 = vmatprep.subr.mxu0 %v84
  %2845 = vmatpush1.msra.mxu0 %v83
  %2846 = vmatprep.subr.mxu0 %v86
  %2847 = vmatpush1.msra.mxu0 %v85
  %2848 = vmatprep.subr.mxu0 %v88
  %2849 = vmatpush1.msra.mxu0 %v87
  %2850 = vmatprep.subr.mxu0 %v90
  %2851 = vmatpush1.msra.mxu0 %v89
  %2852 = vmatprep.subr.mxu0 %v92
  %2853 = vmatpush1.msra.mxu0 %v91
  %2854 = vmatprep.subr.mxu0 %v94
  %2855 = vmatpush1.msra.mxu0 %v93
  %2856 = vmatprep.subr.mxu0 0.0
  %2857 = vmatpush1.msra.mxu0 0.0
  %2858 = vmatprep.subr.mxu0 0.0
  %2859 = vmatpush1.msra.mxu0 0.0
  %2860 = vmatprep.subr.mxu0 0.0
  %2861 = vmatpush1.msra.mxu0 0.0
  %2862 = vmatprep.subr.mxu0 0.0
  %2863 = vmatpush1.msra.mxu0 0.0
  %2864 = vmatprep.subr.mxu0 0.0
  %2865 = vmatpush1.msra.mxu0 0.0
  %2866 = vmatprep.subr.mxu0 0.0
  %2867 = vmatpush1.msra.mxu0 0.0
  %2868 = vmatprep.subr.mxu0 0.0
  %2869 = vmatpush1.msra.mxu0 0.0
  %2870 = vmatprep.subr.mxu0 0.0
  %2871 = vmatpush1.msra.mxu0 0.0
  %2872 = vmatprep.subr.mxu0 0.0
  %2873 = vmatpush1.msra.mxu0 0.0
  %2874 = vmatprep.subr.mxu0 0.0
  %2875 = vmatpush1.msra.mxu0 0.0
  %2876 = vmatprep.subr.mxu0 0.0
  %2877 = vmatpush1.msra.mxu0 0.0
  %2878 = vmatprep.subr.mxu0 0.0
  %2879 = vmatpush1.msra.mxu0 0.0
  %2880 = vmatprep.subr.mxu0 0.0
  %2881 = vmatpush1.msra.mxu0 0.0
  %2882 = vmatprep.subr.mxu0 0.0
  %2883 = vmatpush1.msra.mxu0 0.0
  %2884 = vmatprep.subr.mxu0 0.0
  %2885 = vmatpush1.msra.mxu0 0.0
  %2886 = vmatprep.subr.mxu0 0.0
  %2887 = vmatpush1.msra.mxu0 0.0
  %2888 = vmatprep.mubr.f32.mxu0 0.0
  %2889 = vmatmul.mubr.f32.gmra.mrb[0].mxu0 %v2823
  %v2890 = vpop.f32.mrb[0].mxu0
  %v2891 = vadd.f32 %v287, %v2890
  %v2892 = vpop.f32.mrb[0].mxu0
  %v2893 = vadd.f32 %v291, %v2892
  %2894 = vdwg.mxu0
  %v2895 = vmul.f32 %v2891, 0.5
  %v2896 = vmul.f32 %v2893, 0.5
  %v2897 = vsel %vm111, %v2891, %v2895
  %v2898 = vsel %vm112, %v2893, %v2896
  %v2899 = vtanh.pop %v2897
  %v2900 = vtanh.pop %v2898
  %v2901 = vmul.f32 %v2899, 0.5
  %v2902 = vmul.f32 %v2900, 0.5
  %v2903 = vadd.f32 %v2901, 0.5
  %v2904 = vadd.f32 %v2902, 0.5
  %v2905 = vsel %vm111, %v2899, %v2903
  %v2906 = vsel %vm112, %v2900, %v2904
  %v2907 = vmul.f32 %v2905, %v2687
  %v2908 = vmul.f32 %v2905, %v2906
  %2910 = vrot.lane.b32.xlu0 %v2908, 64
  %v2911 = vpop.permute.xlu0 %2910
  %v2913 = vadd.f32 %v2907, %v2911
  %v2914 = vtanh.pop %v2913
  %v2915 = vmul.f32 %v2906, %v2914
  %s2916 = scalar_lea.vmem %s1, 16
  %v2917 = vld [vmem:[%s2916] sm:$0xf]
  %v2918 = vsel %vm141, %v2821, 0
  %2920 = vmatprep.subr.mxu0 %v48
  %2921 = vmatpush1.msra.mxu0 %v47
  %2922 = vmatprep.subr.mxu0 %v50
  %2923 = vmatpush1.msra.mxu0 %v49
  %2924 = vmatprep.subr.mxu0 %v52
  %2925 = vmatpush1.msra.mxu0 %v51
  %2926 = vmatprep.subr.mxu0 %v54
  %2927 = vmatpush1.msra.mxu0 %v53
  %2928 = vmatprep.subr.mxu0 %v56
  %2929 = vmatpush1.msra.mxu0 %v55
  %2930 = vmatprep.subr.mxu0 %v58
  %2931 = vmatpush1.msra.mxu0 %v57
  %2932 = vmatprep.subr.mxu0 %v60
  %2933 = vmatpush1.msra.mxu0 %v59
  %2934 = vmatprep.subr.mxu0 %v62
  %2935 = vmatpush1.msra.mxu0 %v61
  %2936 = vmatprep.subr.mxu0 0.0
  %2937 = vmatpush1.msra.mxu0 0.0
  %2938 = vmatprep.subr.mxu0 0.0
  %2939 = vmatpush1.msra.mxu0 0.0
  %2940 = vmatprep.subr.mxu0 0.0
  %2941 = vmatpush1.msra.mxu0 0.0
  %2942 = vmatprep.subr.mxu0 0.0
  %2943 = vmatpush1.msra.mxu0 0.0
  %2944 = vmatprep.subr.mxu0 0.0
  %2945 = vmatpush1.msra.mxu0 0.0
  %2946 = vmatprep.subr.mxu0 0.0
  %2947 = vmatpush1.msra.mxu0 0.0
  %2948 = vmatprep.subr.mxu0 0.0
  %2949 = vmatpush1.msra.mxu0 0.0
  %2950 = vmatprep.subr.mxu0 0.0
  %2951 = vmatpush1.msra.mxu0 0.0
  %2952 = vmatprep.subr.mxu0 0.0
  %2953 = vmatpush1.msra.mxu0 0.0
  %2954 = vmatprep.subr.mxu0 0.0
  %2955 = vmatpush1.msra.mxu0 0.0
  %2956 = vmatprep.subr.mxu0 0.0
  %2957 = vmatpush1.msra.mxu0 0.0
  %2958 = vmatprep.subr.mxu0 0.0
  %2959 = vmatpush1.msra.mxu0 0.0
  %2960 = vmatprep.subr.mxu0 0.0
  %2961 = vmatpush1.msra.mxu0 0.0
  %2962 = vmatprep.subr.mxu0 0.0
  %2963 = vmatpush1.msra.mxu0 0.0
  %2964 = vmatprep.subr.mxu0 0.0
  %2965 = vmatpush1.msra.mxu0 0.0
  %2966 = vmatprep.subr.mxu0 0.0
  %2967 = vmatpush1.msra.mxu0 0.0
  %2968 = vmatprep.subr.mxu0 0.0
  %2969 = vmatpush1.msra.mxu0 0.0
  %2970 = vmatprep.subr.mxu0 0.0
  %2971 = vmatpush1.msra.mxu0 0.0
  %2972 = vmatprep.subr.mxu0 0.0
  %2973 = vmatpush1.msra.mxu0 0.0
  %2974 = vmatprep.subr.mxu0 0.0
  %2975 = vmatpush1.msra.mxu0 0.0
  %2976 = vmatprep.subr.mxu0 0.0
  %2977 = vmatpush1.msra.mxu0 0.0
  %2978 = vmatprep.subr.mxu0 0.0
  %2979 = vmatpush1.msra.mxu0 0.0
  %2980 = vmatprep.subr.mxu0 0.0
  %2981 = vmatpush1.msra.mxu0 0.0
  %2982 = vmatprep.subr.mxu0 0.0
  %2983 = vmatpush1.msra.mxu0 0.0
  %2984 = vmatprep.mubr.f32.mxu0 0.0
  %2985 = vmatmul.mubr.f32.gmra.mrb[0].mxu0 %v2918
  %v2986 = vpop.f32.mrb[0].mxu0
  %v2987 = vadd.f32 0.0, %v2986
  %v2988 = vpop.f32.mrb[0].mxu0
  %v2989 = vadd.f32 0.0, %v2988
  %2990 = vdwg.mxu0
  %v2993 = vcombine.low %v2987, %v2989
  %v2995 = vunpack.c.l.s4 1983009808
  %v2996 = vunpack.c.0.s8 %v2995
  %v2997 = vlaneseq
  %v2998 = vshrl.u32 %v2997, 7
  %v2999 = vsub.s32 %v2996, %v2998
  %v3000 = vrot.slane %v2993, %v2999
  %v3002 = vadd.f32 %v2917, %v3000
  %v3003 = vmul.f32 %v3002, 0.5
  %v3006 = vunpack.c.l.s4 1983009808
  %v3007 = vunpack.c.0.s8 %v3006
  %v3008 = vlaneseq
  %v3009 = vshrl.u32 %v3008, 7
  %v3010 = vsub.s32 %v3007, %v3009
  %v3011 = vrot.slane %v3002, %v3010
  %v3012 = vcombine.high %v3011, %v3011
  %v3017 = vunpack.c.l.s4 1983009808
  %v3018 = vunpack.c.0.s8 %v3017
  %v3019 = vlaneseq
  %v3020 = vshrl.u32 %v3019, 7
  %v3021 = vsub.s32 %v3018, %v3020
  %v3022 = vrot.slane %v3003, %v3021
  %v3023 = vcombine.high %v3022, %v3022
  %v3026 = vsel %vm111, %v3011, %v3022
  %v3027 = vsel %vm112, %v3012, %v3023
  %v3028 = vtanh.pop %v3026
  %v3029 = vtanh.pop %v3027
  %v3030 = vmul.f32 %v3028, 0.5
  %v3031 = vmul.f32 %v3029, 0.5
  %v3032 = vadd.f32 %v3030, 0.5
  %v3033 = vadd.f32 %v3031, 0.5
  %v3034 = vsel %vm111, %v3028, %v3032
  %v3035 = vsel %vm112, %v3029, %v3033
  %v3036 = vmul.f32 %v3034, %v2816
  %v3037 = vmul.f32 %v3034, %v3035
  %3039 = vrot.lane.b32.xlu0 %v3037, 64
  %v3040 = vpop.permute.xlu0 %3039
  %v3042 = vadd.f32 %v3036, %v3040
  %v3043 = vtanh.pop %v3042
  %v3044 = vmul.f32 %v3035, %v3043
  %3046 = vrot.lane.b32.xlu0 %v3044, 64
  %v3047 = vpop.permute.xlu0 %3046
  %v3049 = vsel %vm141, %v3047, %v2915
  %3050 = vmatprep.subr.mxu0 %v64
  %3051 = vmatpush1.msra.mxu0 %v63
  %3052 = vmatprep.subr.mxu0 %v66
  %3053 = vmatpush1.msra.mxu0 %v65
  %3054 = vmatprep.subr.mxu0 %v68
  %3055 = vmatpush1.msra.mxu0 %v67
  %3056 = vmatprep.subr.mxu0 %v70
  %3057 = vmatpush1.msra.mxu0 %v69
  %3058 = vmatprep.subr.mxu0 %v72
  %3059 = vmatpush1.msra.mxu0 %v71
  %3060 = vmatprep.subr.mxu0 %v74
  %3061 = vmatpush1.msra.mxu0 %v73
  %3062 = vmatprep.subr.mxu0 %v76
  %3063 = vmatpush1.msra.mxu0 %v75
  %3064 = vmatprep.subr.mxu0 %v78
  %3065 = vmatpush1.msra.mxu0 %v77
  %3066 = vmatprep.subr.mxu0 %v80
  %3067 = vmatpush1.msra.mxu0 %v79
  %3068 = vmatprep.subr.mxu0 %v82
  %3069 = vmatpush1.msra.mxu0 %v81
  %3070 = vmatprep.subr.mxu0 %v84
  %3071 = vmatpush1.msra.mxu0 %v83
  %3072 = vmatprep.subr.mxu0 %v86
  %3073 = vmatpush1.msra.mxu0 %v85
  %3074 = vmatprep.subr.mxu0 %v88
  %3075 = vmatpush1.msra.mxu0 %v87
  %3076 = vmatprep.subr.mxu0 %v90
  %3077 = vmatpush1.msra.mxu0 %v89
  %3078 = vmatprep.subr.mxu0 %v92
  %3079 = vmatpush1.msra.mxu0 %v91
  %3080 = vmatprep.subr.mxu0 %v94
  %3081 = vmatpush1.msra.mxu0 %v93
  %3082 = vmatprep.subr.mxu0 0.0
  %3083 = vmatpush1.msra.mxu0 0.0
  %3084 = vmatprep.subr.mxu0 0.0
  %3085 = vmatpush1.msra.mxu0 0.0
  %3086 = vmatprep.subr.mxu0 0.0
  %3087 = vmatpush1.msra.mxu0 0.0
  %3088 = vmatprep.subr.mxu0 0.0
  %3089 = vmatpush1.msra.mxu0 0.0
  %3090 = vmatprep.subr.mxu0 0.0
  %3091 = vmatpush1.msra.mxu0 0.0
  %3092 = vmatprep.subr.mxu0 0.0
  %3093 = vmatpush1.msra.mxu0 0.0
  %3094 = vmatprep.subr.mxu0 0.0
  %3095 = vmatpush1.msra.mxu0 0.0
  %3096 = vmatprep.subr.mxu0 0.0
  %3097 = vmatpush1.msra.mxu0 0.0
  %3098 = vmatprep.subr.mxu0 0.0
  %3099 = vmatpush1.msra.mxu0 0.0
  %3100 = vmatprep.subr.mxu0 0.0
  %3101 = vmatpush1.msra.mxu0 0.0
  %3102 = vmatprep.subr.mxu0 0.0
  %3103 = vmatpush1.msra.mxu0 0.0
  %3104 = vmatprep.subr.mxu0 0.0
  %3105 = vmatpush1.msra.mxu0 0.0
  %3106 = vmatprep.subr.mxu0 0.0
  %3107 = vmatpush1.msra.mxu0 0.0
  %3108 = vmatprep.subr.mxu0 0.0
  %3109 = vmatpush1.msra.mxu0 0.0
  %3110 = vmatprep.subr.mxu0 0.0
  %3111 = vmatpush1.msra.mxu0 0.0
  %3112 = vmatprep.subr.mxu0 0.0
  %3113 = vmatpush1.msra.mxu0 0.0
  %3114 = vmatprep.mubr.f32.mxu0 0.0
  %3115 = vmatmul.mubr.f32.gmra.mrb[0].mxu0 %v3049
  %v3116 = vpop.f32.mrb[0].mxu0
  %v3117 = vadd.f32 %v287, %v3116
  %v3118 = vpop.f32.mrb[0].mxu0
  %v3119 = vadd.f32 %v291, %v3118
  %3120 = vdwg.mxu0
  %v3121 = vmul.f32 %v3117, 0.5
  %v3122 = vmul.f32 %v3119, 0.5
  %v3123 = vsel %vm111, %v3117, %v3121
  %v3124 = vsel %vm112, %v3119, %v3122
  %v3125 = vtanh.pop %v3123
  %v3126 = vtanh.pop %v3124
  %v3127 = vmul.f32 %v3125, 0.5
  %v3128 = vmul.f32 %v3126, 0.5
  %v3129 = vadd.f32 %v3127, 0.5
  %v3130 = vadd.f32 %v3128, 0.5
  %v3131 = vsel %vm111, %v3125, %v3129
  %v3132 = vsel %vm112, %v3126, %v3130
  %v3133 = vmul.f32 %v3131, %v2913
  %v3134 = vmul.f32 %v3131, %v3132
  %3136 = vrot.lane.b32.xlu0 %v3134, 64
  %v3137 = vpop.permute.xlu0 %3136
  %v3139 = vadd.f32 %v3133, %v3137
  %v3140 = vtanh.pop %v3139
  %v3141 = vmul.f32 %v3132, %v3140
  %s3142 = scalar_lea.vmem %s1, 20
  %v3143 = vld [vmem:[%s3142] sm:$0xf]
  %v3144 = vsel %vm141, %v3047, 0
  %3146 = vmatprep.subr.mxu0 %v48
  %3147 = vmatpush1.msra.mxu0 %v47
  %3148 = vmatprep.subr.mxu0 %v50
  %3149 = vmatpush1.msra.mxu0 %v49
  %3150 = vmatprep.subr.mxu0 %v52
  %3151 = vmatpush1.msra.mxu0 %v51
  %3152 = vmatprep.subr.mxu0 %v54
  %3153 = vmatpush1.msra.mxu0 %v53
  %3154 = vmatprep.subr.mxu0 %v56
  %3155 = vmatpush1.msra.mxu0 %v55
  %3156 = vmatprep.subr.mxu0 %v58
  %3157 = vmatpush1.msra.mxu0 %v57
  %3158 = vmatprep.subr.mxu0 %v60
  %3159 = vmatpush1.msra.mxu0 %v59
  %3160 = vmatprep.subr.mxu0 %v62
  %3161 = vmatpush1.msra.mxu0 %v61
  %3162 = vmatprep.subr.mxu0 0.0
  %3163 = vmatpush1.msra.mxu0 0.0
  %3164 = vmatprep.subr.mxu0 0.0
  %3165 = vmatpush1.msra.mxu0 0.0
  %3166 = vmatprep.subr.mxu0 0.0
  %3167 = vmatpush1.msra.mxu0 0.0
  %3168 = vmatprep.subr.mxu0 0.0
  %3169 = vmatpush1.msra.mxu0 0.0
  %3170 = vmatprep.subr.mxu0 0.0
  %3171 = vmatpush1.msra.mxu0 0.0
  %3172 = vmatprep.subr.mxu0 0.0
  %3173 = vmatpush1.msra.mxu0 0.0
  %3174 = vmatprep.subr.mxu0 0.0
  %3175 = vmatpush1.msra.mxu0 0.0
  %3176 = vmatprep.subr.mxu0 0.0
  %3177 = vmatpush1.msra.mxu0 0.0
  %3178 = vmatprep.subr.mxu0 0.0
  %3179 = vmatpush1.msra.mxu0 0.0
  %3180 = vmatprep.subr.mxu0 0.0
  %3181 = vmatpush1.msra.mxu0 0.0
  %3182 = vmatprep.subr.mxu0 0.0
  %3183 = vmatpush1.msra.mxu0 0.0
  %3184 = vmatprep.subr.mxu0 0.0
  %3185 = vmatpush1.msra.mxu0 0.0
  %3186 = vmatprep.subr.mxu0 0.0
  %3187 = vmatpush1.msra.mxu0 0.0
  %3188 = vmatprep.subr.mxu0 0.0
  %3189 = vmatpush1.msra.mxu0 0.0
  %3190 = vmatprep.subr.mxu0 0.0
  %3191 = vmatpush1.msra.mxu0 0.0
  %3192 = vmatprep.subr.mxu0 0.0
  %3193 = vmatpush1.msra.mxu0 0.0
  %3194 = vmatprep.subr.mxu0 0.0
  %3195 = vmatpush1.msra.mxu0 0.0
  %3196 = vmatprep.subr.mxu0 0.0
  %3197 = vmatpush1.msra.mxu0 0.0
  %3198 = vmatprep.subr.mxu0 0.0
  %3199 = vmatpush1.msra.mxu0 0.0
  %3200 = vmatprep.subr.mxu0 0.0
  %3201 = vmatpush1.msra.mxu0 0.0
  %3202 = vmatprep.subr.mxu0 0.0
  %3203 = vmatpush1.msra.mxu0 0.0
  %3204 = vmatprep.subr.mxu0 0.0
  %3205 = vmatpush1.msra.mxu0 0.0
  %3206 = vmatprep.subr.mxu0 0.0
  %3207 = vmatpush1.msra.mxu0 0.0
  %3208 = vmatprep.subr.mxu0 0.0
  %3209 = vmatpush1.msra.mxu0 0.0
  %3210 = vmatprep.mubr.f32.mxu0 0.0
  %3211 = vmatmul.mubr.f32.gmra.mrb[0].mxu0 %v3144
  %v3212 = vpop.f32.mrb[0].mxu0
  %v3213 = vadd.f32 0.0, %v3212
  %v3214 = vpop.f32.mrb[0].mxu0
  %v3215 = vadd.f32 0.0, %v3214
  %3216 = vdwg.mxu0
  %v3219 = vcombine.low %v3213, %v3215
  %v3221 = vunpack.c.l.s4 1983009808
  %v3222 = vunpack.c.0.s8 %v3221
  %v3223 = vlaneseq
  %v3224 = vshrl.u32 %v3223, 7
  %v3225 = vsub.s32 %v3222, %v3224
  %v3226 = vrot.slane %v3219, %v3225
  %v3228 = vadd.f32 %v3143, %v3226
  %v3229 = vmul.f32 %v3228, 0.5
  %v3232 = vunpack.c.l.s4 1983009808
  %v3233 = vunpack.c.0.s8 %v3232
  %v3234 = vlaneseq
  %v3235 = vshrl.u32 %v3234, 7
  %v3236 = vsub.s32 %v3233, %v3235
  %v3237 = vrot.slane %v3228, %v3236
  %v3238 = vcombine.high %v3237, %v3237
  %v3243 = vunpack.c.l.s4 1983009808
  %v3244 = vunpack.c.0.s8 %v3243
  %v3245 = vlaneseq
  %v3246 = vshrl.u32 %v3245, 7
  %v3247 = vsub.s32 %v3244, %v3246
  %v3248 = vrot.slane %v3229, %v3247
  %v3249 = vcombine.high %v3248, %v3248
  %v3252 = vsel %vm111, %v3237, %v3248
  %v3253 = vsel %vm112, %v3238, %v3249
  %v3254 = vtanh.pop %v3252
  %v3255 = vtanh.pop %v3253
  %v3256 = vmul.f32 %v3254, 0.5
  %v3257 = vmul.f32 %v3255, 0.5
  %v3258 = vadd.f32 %v3256, 0.5
  %v3259 = vadd.f32 %v3257, 0.5
  %v3260 = vsel %vm111, %v3254, %v3258
  %v3261 = vsel %vm112, %v3255, %v3259
  %v3262 = vmul.f32 %v3260, %v3042
  %v3263 = vmul.f32 %v3260, %v3261
  %3265 = vrot.lane.b32.xlu0 %v3263, 64
  %v3266 = vpop.permute.xlu0 %3265
  %v3268 = vadd.f32 %v3262, %v3266
  %v3269 = vtanh.pop %v3268
  %v3270 = vmul.f32 %v3261, %v3269
  %3272 = vrot.lane.b32.xlu0 %v3270, 64
  %v3273 = vpop.permute.xlu0 %3272
  %v3275 = vsel %vm141, %v3273, %v3141
  %3276 = vmatprep.subr.mxu0 %v64
  %3277 = vmatpush1.msra.mxu0 %v63
  %3278 = vmatprep.subr.mxu0 %v66
  %3279 = vmatpush1.msra.mxu0 %v65
  %3280 = vmatprep.subr.mxu0 %v68
  %3281 = vmatpush1.msra.mxu0 %v67
  %3282 = vmatprep.subr.mxu0 %v70
  %3283 = vmatpush1.msra.mxu0 %v69
  %3284 = vmatprep.subr.mxu0 %v72
  %3285 = vmatpush1.msra.mxu0 %v71
  %3286 = vmatprep.subr.mxu0 %v74
  %3287 = vmatpush1.msra.mxu0 %v73
  %3288 = vmatprep.subr.mxu0 %v76
  %3289 = vmatpush1.msra.mxu0 %v75
  %3290 = vmatprep.subr.mxu0 %v78
  %3291 = vmatpush1.msra.mxu0 %v77
  %3292 = vmatprep.subr.mxu0 %v80
  %3293 = vmatpush1.msra.mxu0 %v79
  %3294 = vmatprep.subr.mxu0 %v82
  %3295 = vmatpush1.msra.mxu0 %v81
  %3296 = vmatprep.subr.mxu0 %v84
  %3297 = vmatpush1.msra.mxu0 %v83
  %3298 = vmatprep.subr.mxu0 %v86
  %3299 = vmatpush1.msra.mxu0 %v85
  %3300 = vmatprep.subr.mxu0 %v88
  %3301 = vmatpush1.msra.mxu0 %v87
  %3302 = vmatprep.subr.mxu0 %v90
  %3303 = vmatpush1.msra.mxu0 %v89
  %3304 = vmatprep.subr.mxu0 %v92
  %3305 = vmatpush1.msra.mxu0 %v91
  %3306 = vmatprep.subr.mxu0 %v94
  %3307 = vmatpush1.msra.mxu0 %v93
  %3308 = vmatprep.subr.mxu0 0.0
  %3309 = vmatpush1.msra.mxu0 0.0
  %3310 = vmatprep.subr.mxu0 0.0
  %3311 = vmatpush1.msra.mxu0 0.0
  %3312 = vmatprep.subr.mxu0 0.0
  %3313 = vmatpush1.msra.mxu0 0.0
  %3314 = vmatprep.subr.mxu0 0.0
  %3315 = vmatpush1.msra.mxu0 0.0
  %3316 = vmatprep.subr.mxu0 0.0
  %3317 = vmatpush1.msra.mxu0 0.0
  %3318 = vmatprep.subr.mxu0 0.0
  %3319 = vmatpush1.msra.mxu0 0.0
  %3320 = vmatprep.subr.mxu0 0.0
  %3321 = vmatpush1.msra.mxu0 0.0
  %3322 = vmatprep.subr.mxu0 0.0
  %3323 = vmatpush1.msra.mxu0 0.0
  %3324 = vmatprep.subr.mxu0 0.0
  %3325 = vmatpush1.msra.mxu0 0.0
  %3326 = vmatprep.subr.mxu0 0.0
  %3327 = vmatpush1.msra.mxu0 0.0
  %3328 = vmatprep.subr.mxu0 0.0
  %3329 = vmatpush1.msra.mxu0 0.0
  %3330 = vmatprep.subr.mxu0 0.0
  %3331 = vmatpush1.msra.mxu0 0.0
  %3332 = vmatprep.subr.mxu0 0.0
  %3333 = vmatpush1.msra.mxu0 0.0
  %3334 = vmatprep.subr.mxu0 0.0
  %3335 = vmatpush1.msra.mxu0 0.0
  %3336 = vmatprep.subr.mxu0 0.0
  %3337 = vmatpush1.msra.mxu0 0.0
  %3338 = vmatprep.subr.mxu0 0.0
  %3339 = vmatpush1.msra.mxu0 0.0
  %3340 = vmatprep.mubr.f32.mxu0 0.0
  %3341 = vmatmul.mubr.f32.gmra.mrb[0].mxu0 %v3275
  %v3342 = vpop.f32.mrb[0].mxu0
  %v3343 = vadd.f32 %v287, %v3342
  %v3344 = vpop.f32.mrb[0].mxu0
  %v3345 = vadd.f32 %v291, %v3344
  %3346 = vdwg.mxu0
  %v3347 = vmul.f32 %v3343, 0.5
  %v3348 = vmul.f32 %v3345, 0.5
  %v3349 = vsel %vm111, %v3343, %v3347
  %v3350 = vsel %vm112, %v3345, %v3348
  %v3351 = vtanh.pop %v3349
  %v3352 = vtanh.pop %v3350
  %v3353 = vmul.f32 %v3351, 0.5
  %v3354 = vmul.f32 %v3352, 0.5
  %v3355 = vadd.f32 %v3353, 0.5
  %v3356 = vadd.f32 %v3354, 0.5
  %v3357 = vsel %vm111, %v3351, %v3355
  %v3358 = vsel %vm112, %v3352, %v3356
  %v3359 = vmul.f32 %v3357, %v3139
  %v3360 = vmul.f32 %v3357, %v3358
  %3362 = vrot.lane.b32.xlu0 %v3360, 64
  %v3363 = vpop.permute.xlu0 %3362
  %v3365 = vadd.f32 %v3359, %v3363
  %v3366 = vtanh.pop %v3365
  %v3367 = vmul.f32 %v3358, %v3366
  %s3368 = scalar_lea.vmem %s1, 24
  %v3369 = vld [vmem:[%s3368] sm:$0xf]
  %v3370 = vsel %vm141, %v3273, 0
  %3372 = vmatprep.subr.mxu0 %v48
  %3373 = vmatpush1.msra.mxu0 %v47
  %3374 = vmatprep.subr.mxu0 %v50
  %3375 = vmatpush1.msra.mxu0 %v49
  %3376 = vmatprep.subr.mxu0 %v52
  %3377 = vmatpush1.msra.mxu0 %v51
  %3378 = vmatprep.subr.mxu0 %v54
  %3379 = vmatpush1.msra.mxu0 %v53
  %3380 = vmatprep.subr.mxu0 %v56
  %3381 = vmatpush1.msra.mxu0 %v55
  %3382 = vmatprep.subr.mxu0 %v58
  %3383 = vmatpush1.msra.mxu0 %v57
  %3384 = vmatprep.subr.mxu0 %v60
  %3385 = vmatpush1.msra.mxu0 %v59
  %3386 = vmatprep.subr.mxu0 %v62
  %3387 = vmatpush1.msra.mxu0 %v61
  %3388 = vmatprep.subr.mxu0 0.0
  %3389 = vmatpush1.msra.mxu0 0.0
  %3390 = vmatprep.subr.mxu0 0.0
  %3391 = vmatpush1.msra.mxu0 0.0
  %3392 = vmatprep.subr.mxu0 0.0
  %3393 = vmatpush1.msra.mxu0 0.0
  %3394 = vmatprep.subr.mxu0 0.0
  %3395 = vmatpush1.msra.mxu0 0.0
  %3396 = vmatprep.subr.mxu0 0.0
  %3397 = vmatpush1.msra.mxu0 0.0
  %3398 = vmatprep.subr.mxu0 0.0
  %3399 = vmatpush1.msra.mxu0 0.0
  %3400 = vmatprep.subr.mxu0 0.0
  %3401 = vmatpush1.msra.mxu0 0.0
  %3402 = vmatprep.subr.mxu0 0.0
  %3403 = vmatpush1.msra.mxu0 0.0
  %3404 = vmatprep.subr.mxu0 0.0
  %3405 = vmatpush1.msra.mxu0 0.0
  %3406 = vmatprep.subr.mxu0 0.0
  %3407 = vmatpush1.msra.mxu0 0.0
  %3408 = vmatprep.subr.mxu0 0.0
  %3409 = vmatpush1.msra.mxu0 0.0
  %3410 = vmatprep.subr.mxu0 0.0
  %3411 = vmatpush1.msra.mxu0 0.0
  %3412 = vmatprep.subr.mxu0 0.0
  %3413 = vmatpush1.msra.mxu0 0.0
  %3414 = vmatprep.subr.mxu0 0.0
  %3415 = vmatpush1.msra.mxu0 0.0
  %3416 = vmatprep.subr.mxu0 0.0
  %3417 = vmatpush1.msra.mxu0 0.0
  %3418 = vmatprep.subr.mxu0 0.0
  %3419 = vmatpush1.msra.mxu0 0.0
  %3420 = vmatprep.subr.mxu0 0.0
  %3421 = vmatpush1.msra.mxu0 0.0
  %3422 = vmatprep.subr.mxu0 0.0
  %3423 = vmatpush1.msra.mxu0 0.0
  %3424 = vmatprep.subr.mxu0 0.0
  %3425 = vmatpush1.msra.mxu0 0.0
  %3426 = vmatprep.subr.mxu0 0.0
  %3427 = vmatpush1.msra.mxu0 0.0
  %3428 = vmatprep.subr.mxu0 0.0
  %3429 = vmatpush1.msra.mxu0 0.0
  %3430 = vmatprep.subr.mxu0 0.0
  %3431 = vmatpush1.msra.mxu0 0.0
  %3432 = vmatprep.subr.mxu0 0.0
  %3433 = vmatpush1.msra.mxu0 0.0
  %3434 = vmatprep.subr.mxu0 0.0
  %3435 = vmatpush1.msra.mxu0 0.0
  %3436 = vmatprep.mubr.f32.mxu0 0.0
  %3437 = vmatmul.mubr.f32.gmra.mrb[0].mxu0 %v3370
  %v3438 = vpop.f32.mrb[0].mxu0
  %v3439 = vadd.f32 0.0, %v3438
  %v3440 = vpop.f32.mrb[0].mxu0
  %v3441 = vadd.f32 0.0, %v3440
  %3442 = vdwg.mxu0
  %v3445 = vcombine.low %v3439, %v3441
  %v3447 = vunpack.c.l.s4 1983009808
  %v3448 = vunpack.c.0.s8 %v3447
  %v3449 = vlaneseq
  %v3450 = vshrl.u32 %v3449, 7
  %v3451 = vsub.s32 %v3448, %v3450
  %v3452 = vrot.slane %v3445, %v3451
  %v3454 = vadd.f32 %v3369, %v3452
  %v3455 = vmul.f32 %v3454, 0.5
  %v3458 = vunpack.c.l.s4 1983009808
  %v3459 = vunpack.c.0.s8 %v3458
  %v3460 = vlaneseq
  %v3461 = vshrl.u32 %v3460, 7
  %v3462 = vsub.s32 %v3459, %v3461
  %v3463 = vrot.slane %v3454, %v3462
  %v3464 = vcombine.high %v3463, %v3463
  %v3469 = vunpack.c.l.s4 1983009808
  %v3470 = vunpack.c.0.s8 %v3469
  %v3471 = vlaneseq
  %v3472 = vshrl.u32 %v3471, 7
  %v3473 = vsub.s32 %v3470, %v3472
  %v3474 = vrot.slane %v3455, %v3473
  %v3475 = vcombine.high %v3474, %v3474
  %v3478 = vsel %vm111, %v3463, %v3474
  %v3479 = vsel %vm112, %v3464, %v3475
  %v3480 = vtanh.pop %v3478
  %v3481 = vtanh.pop %v3479
  %v3482 = vmul.f32 %v3480, 0.5
  %v3483 = vmul.f32 %v3481, 0.5
  %v3484 = vadd.f32 %v3482, 0.5
  %v3485 = vadd.f32 %v3483, 0.5
  %v3486 = vsel %vm111, %v3480, %v3484
  %v3487 = vsel %vm112, %v3481, %v3485
  %v3488 = vmul.f32 %v3486, %v3268
  %v3489 = vmul.f32 %v3486, %v3487
  %3491 = vrot.lane.b32.xlu0 %v3489, 64
  %v3492 = vpop.permute.xlu0 %3491
  %v3494 = vadd.f32 %v3488, %v3492
  %v3495 = vtanh.pop %v3494
  %v3496 = vmul.f32 %v3487, %v3495
  %3498 = vrot.lane.b32.xlu0 %v3496, 64
  %v3499 = vpop.permute.xlu0 %3498
  %v3501 = vsel %vm141, %v3499, %v3367
  %3502 = vmatprep.subr.mxu0 %v64
  %3503 = vmatpush1.msra.mxu0 %v63
  %3504 = vmatprep.subr.mxu0 %v66
  %3505 = vmatpush1.msra.mxu0 %v65
  %3506 = vmatprep.subr.mxu0 %v68
  %3507 = vmatpush1.msra.mxu0 %v67
  %3508 = vmatprep.subr.mxu0 %v70
  %3509 = vmatpush1.msra.mxu0 %v69
  %3510 = vmatprep.subr.mxu0 %v72
  %3511 = vmatpush1.msra.mxu0 %v71
  %3512 = vmatprep.subr.mxu0 %v74
  %3513 = vmatpush1.msra.mxu0 %v73
  %3514 = vmatprep.subr.mxu0 %v76
  %3515 = vmatpush1.msra.mxu0 %v75
  %3516 = vmatprep.subr.mxu0 %v78
  %3517 = vmatpush1.msra.mxu0 %v77
  %3518 = vmatprep.subr.mxu0 %v80
  %3519 = vmatpush1.msra.mxu0 %v79
  %3520 = vmatprep.subr.mxu0 %v82
  %3521 = vmatpush1.msra.mxu0 %v81
  %3522 = vmatprep.subr.mxu0 %v84
  %3523 = vmatpush1.msra.mxu0 %v83
  %3524 = vmatprep.subr.mxu0 %v86
  %3525 = vmatpush1.msra.mxu0 %v85
  %3526 = vmatprep.subr.mxu0 %v88
  %3527 = vmatpush1.msra.mxu0 %v87
  %3528 = vmatprep.subr.mxu0 %v90
  %3529 = vmatpush1.msra.mxu0 %v89
  %3530 = vmatprep.subr.mxu0 %v92
  %3531 = vmatpush1.msra.mxu0 %v91
  %3532 = vmatprep.subr.mxu0 %v94
  %3533 = vmatpush1.msra.mxu0 %v93
  %3534 = vmatprep.subr.mxu0 0.0
  %3535 = vmatpush1.msra.mxu0 0.0
  %3536 = vmatprep.subr.mxu0 0.0
  %3537 = vmatpush1.msra.mxu0 0.0
  %3538 = vmatprep.subr.mxu0 0.0
  %3539 = vmatpush1.msra.mxu0 0.0
  %3540 = vmatprep.subr.mxu0 0.0
  %3541 = vmatpush1.msra.mxu0 0.0
  %3542 = vmatprep.subr.mxu0 0.0
  %3543 = vmatpush1.msra.mxu0 0.0
  %3544 = vmatprep.subr.mxu0 0.0
  %3545 = vmatpush1.msra.mxu0 0.0
  %3546 = vmatprep.subr.mxu0 0.0
  %3547 = vmatpush1.msra.mxu0 0.0
  %3548 = vmatprep.subr.mxu0 0.0
  %3549 = vmatpush1.msra.mxu0 0.0
  %3550 = vmatprep.subr.mxu0 0.0
  %3551 = vmatpush1.msra.mxu0 0.0
  %3552 = vmatprep.subr.mxu0 0.0
  %3553 = vmatpush1.msra.mxu0 0.0
  %3554 = vmatprep.subr.mxu0 0.0
  %3555 = vmatpush1.msra.mxu0 0.0
  %3556 = vmatprep.subr.mxu0 0.0
  %3557 = vmatpush1.msra.mxu0 0.0
  %3558 = vmatprep.subr.mxu0 0.0
  %3559 = vmatpush1.msra.mxu0 0.0
  %3560 = vmatprep.subr.mxu0 0.0
  %3561 = vmatpush1.msra.mxu0 0.0
  %3562 = vmatprep.subr.mxu0 0.0
  %3563 = vmatpush1.msra.mxu0 0.0
  %3564 = vmatprep.subr.mxu0 0.0
  %3565 = vmatpush1.msra.mxu0 0.0
  %3566 = vmatprep.mubr.f32.mxu0 0.0
  %3567 = vmatmul.mubr.f32.gmra.mrb[0].mxu0 %v3501
  %v3568 = vpop.f32.mrb[0].mxu0
  %v3569 = vadd.f32 %v287, %v3568
  %v3570 = vpop.f32.mrb[0].mxu0
  %v3571 = vadd.f32 %v291, %v3570
  %3572 = vdwg.mxu0
  %v3573 = vmul.f32 %v3569, 0.5
  %v3574 = vmul.f32 %v3571, 0.5
  %v3575 = vsel %vm111, %v3569, %v3573
  %v3576 = vsel %vm112, %v3571, %v3574
  %v3577 = vtanh.pop %v3575
  %v3578 = vtanh.pop %v3576
  %v3579 = vmul.f32 %v3577, 0.5
  %v3580 = vmul.f32 %v3578, 0.5
  %v3581 = vadd.f32 %v3579, 0.5
  %v3582 = vadd.f32 %v3580, 0.5
  %v3583 = vsel %vm111, %v3577, %v3581
  %v3584 = vsel %vm112, %v3578, %v3582
  %v3585 = vmul.f32 %v3583, %v3365
  %v3586 = vmul.f32 %v3583, %v3584
  %3588 = vrot.lane.b32.xlu0 %v3586, 64
  %v3589 = vpop.permute.xlu0 %3588
  %v3591 = vadd.f32 %v3585, %v3589
  %v3592 = vtanh.pop %v3591
  %v3593 = vmul.f32 %v3584, %v3592
  %s3594 = scalar_lea.vmem %s1, 28
  %v3595 = vld [vmem:[%s3594] sm:$0xf]
  %v3596 = vsel %vm141, %v3499, 0
  %3598 = vmatprep.subr.mxu0 %v48
  %3599 = vmatpush1.msra.mxu0 %v47
  %3600 = vmatprep.subr.mxu0 %v50
  %3601 = vmatpush1.msra.mxu0 %v49
  %3602 = vmatprep.subr.mxu0 %v52
  %3603 = vmatpush1.msra.mxu0 %v51
  %3604 = vmatprep.subr.mxu0 %v54
  %3605 = vmatpush1.msra.mxu0 %v53
  %3606 = vmatprep.subr.mxu0 %v56
  %3607 = vmatpush1.msra.mxu0 %v55
  %3608 = vmatprep.subr.mxu0 %v58
  %3609 = vmatpush1.msra.mxu0 %v57
  %3610 = vmatprep.subr.mxu0 %v60
  %3611 = vmatpush1.msra.mxu0 %v59
  %3612 = vmatprep.subr.mxu0 %v62
  %3613 = vmatpush1.msra.mxu0 %v61
  %3614 = vmatprep.subr.mxu0 0.0
  %3615 = vmatpush1.msra.mxu0 0.0
  %3616 = vmatprep.subr.mxu0 0.0
  %3617 = vmatpush1.msra.mxu0 0.0
  %3618 = vmatprep.subr.mxu0 0.0
  %3619 = vmatpush1.msra.mxu0 0.0
  %3620 = vmatprep.subr.mxu0 0.0
  %3621 = vmatpush1.msra.mxu0 0.0
  %3622 = vmatprep.subr.mxu0 0.0
  %3623 = vmatpush1.msra.mxu0 0.0
  %3624 = vmatprep.subr.mxu0 0.0
  %3625 = vmatpush1.msra.mxu0 0.0
  %3626 = vmatprep.subr.mxu0 0.0
  %3627 = vmatpush1.msra.mxu0 0.0
  %3628 = vmatprep.subr.mxu0 0.0
  %3629 = vmatpush1.msra.mxu0 0.0
  %3630 = vmatprep.subr.mxu0 0.0
  %3631 = vmatpush1.msra.mxu0 0.0
  %3632 = vmatprep.subr.mxu0 0.0
  %3633 = vmatpush1.msra.mxu0 0.0
  %3634 = vmatprep.subr.mxu0 0.0
  %3635 = vmatpush1.msra.mxu0 0.0
  %3636 = vmatprep.subr.mxu0 0.0
  %3637 = vmatpush1.msra.mxu0 0.0
  %3638 = vmatprep.subr.mxu0 0.0
  %3639 = vmatpush1.msra.mxu0 0.0
  %3640 = vmatprep.subr.mxu0 0.0
  %3641 = vmatpush1.msra.mxu0 0.0
  %3642 = vmatprep.subr.mxu0 0.0
  %3643 = vmatpush1.msra.mxu0 0.0
  %3644 = vmatprep.subr.mxu0 0.0
  %3645 = vmatpush1.msra.mxu0 0.0
  %3646 = vmatprep.subr.mxu0 0.0
  %3647 = vmatpush1.msra.mxu0 0.0
  %3648 = vmatprep.subr.mxu0 0.0
  %3649 = vmatpush1.msra.mxu0 0.0
  %3650 = vmatprep.subr.mxu0 0.0
  %3651 = vmatpush1.msra.mxu0 0.0
  %3652 = vmatprep.subr.mxu0 0.0
  %3653 = vmatpush1.msra.mxu0 0.0
  %3654 = vmatprep.subr.mxu0 0.0
  %3655 = vmatpush1.msra.mxu0 0.0
  %3656 = vmatprep.subr.mxu0 0.0
  %3657 = vmatpush1.msra.mxu0 0.0
  %3658 = vmatprep.subr.mxu0 0.0
  %3659 = vmatpush1.msra.mxu0 0.0
  %3660 = vmatprep.subr.mxu0 0.0
  %3661 = vmatpush1.msra.mxu0 0.0
  %3662 = vmatprep.mubr.f32.mxu0 0.0
  %3663 = vmatmul.mubr.f32.gmra.mrb[0].mxu0 %v3596
  %v3664 = vpop.f32.mrb[0].mxu0
  %v3665 = vadd.f32 0.0, %v3664
  %v3666 = vpop.f32.mrb[0].mxu0
  %v3667 = vadd.f32 0.0, %v3666
  %3668 = vdwg.mxu0
  %v3671 = vcombine.low %v3665, %v3667
  %v3673 = vunpack.c.l.s4 1983009808
  %v3674 = vunpack.c.0.s8 %v3673
  %v3675 = vlaneseq
  %v3676 = vshrl.u32 %v3675, 7
  %v3677 = vsub.s32 %v3674, %v3676
  %v3678 = vrot.slane %v3671, %v3677
  %v3680 = vadd.f32 %v3595, %v3678
  %v3681 = vmul.f32 %v3680, 0.5
  %v3684 = vunpack.c.l.s4 1983009808
  %v3685 = vunpack.c.0.s8 %v3684
  %v3686 = vlaneseq
  %v3687 = vshrl.u32 %v3686, 7
  %v3688 = vsub.s32 %v3685, %v3687
  %v3689 = vrot.slane %v3680, %v3688
  %v3690 = vcombine.high %v3689, %v3689
  %v3695 = vunpack.c.l.s4 1983009808
  %v3696 = vunpack.c.0.s8 %v3695
  %v3697 = vlaneseq
  %v3698 = vshrl.u32 %v3697, 7
  %v3699 = vsub.s32 %v3696, %v3698
  %v3700 = vrot.slane %v3681, %v3699
  %v3701 = vcombine.high %v3700, %v3700
  %v3704 = vsel %vm111, %v3689, %v3700
  %v3705 = vsel %vm112, %v3690, %v3701
  %v3706 = vtanh.pop %v3704
  %v3707 = vtanh.pop %v3705
  %v3708 = vmul.f32 %v3706, 0.5
  %v3709 = vmul.f32 %v3707, 0.5
  %v3710 = vadd.f32 %v3708, 0.5
  %v3711 = vadd.f32 %v3709, 0.5
  %v3712 = vsel %vm111, %v3706, %v3710
  %v3713 = vsel %vm112, %v3707, %v3711
  %v3714 = vmul.f32 %v3712, %v3494
  %v3715 = vmul.f32 %v3712, %v3713
  %3717 = vrot.lane.b32.xlu0 %v3715, 64
  %v3718 = vpop.permute.xlu0 %3717
  %v3720 = vadd.f32 %v3714, %v3718
  %v3721 = vtanh.pop %v3720
  %v3722 = vmul.f32 %v3713, %v3721
  %3724 = vrot.lane.b32.xlu0 %v3722, 64
  %v3725 = vpop.permute.xlu0 %3724
  %v3727 = vsel %vm141, %v3725, %v3593
  %3728 = vmatprep.subr.mxu0 %v64
  %3729 = vmatpush1.msra.mxu0 %v63
  %3730 = vmatprep.subr.mxu0 %v66
  %3731 = vmatpush1.msra.mxu0 %v65
  %3732 = vmatprep.subr.mxu0 %v68
  %3733 = vmatpush1.msra.mxu0 %v67
  %3734 = vmatprep.subr.mxu0 %v70
  %3735 = vmatpush1.msra.mxu0 %v69
  %3736 = vmatprep.subr.mxu0 %v72
  %3737 = vmatpush1.msra.mxu0 %v71
  %3738 = vmatprep.subr.mxu0 %v74
  %3739 = vmatpush1.msra.mxu0 %v73
  %3740 = vmatprep.subr.mxu0 %v76
  %3741 = vmatpush1.msra.mxu0 %v75
  %3742 = vmatprep.subr.mxu0 %v78
  %3743 = vmatpush1.msra.mxu0 %v77
  %3744 = vmatprep.subr.mxu0 %v80
  %3745 = vmatpush1.msra.mxu0 %v79
  %3746 = vmatprep.subr.mxu0 %v82
  %3747 = vmatpush1.msra.mxu0 %v81
  %3748 = vmatprep.subr.mxu0 %v84
  %3749 = vmatpush1.msra.mxu0 %v83
  %3750 = vmatprep.subr.mxu0 %v86
  %3751 = vmatpush1.msra.mxu0 %v85
  %3752 = vmatprep.subr.mxu0 %v88
  %3753 = vmatpush1.msra.mxu0 %v87
  %3754 = vmatprep.subr.mxu0 %v90
  %3755 = vmatpush1.msra.mxu0 %v89
  %3756 = vmatprep.subr.mxu0 %v92
  %3757 = vmatpush1.msra.mxu0 %v91
  %3758 = vmatprep.subr.mxu0 %v94
  %3759 = vmatpush1.msra.mxu0 %v93
  %3760 = vmatprep.subr.mxu0 0.0
  %3761 = vmatpush1.msra.mxu0 0.0
  %3762 = vmatprep.subr.mxu0 0.0
  %3763 = vmatpush1.msra.mxu0 0.0
  %3764 = vmatprep.subr.mxu0 0.0
  %3765 = vmatpush1.msra.mxu0 0.0
  %3766 = vmatprep.subr.mxu0 0.0
  %3767 = vmatpush1.msra.mxu0 0.0
  %3768 = vmatprep.subr.mxu0 0.0
  %3769 = vmatpush1.msra.mxu0 0.0
  %3770 = vmatprep.subr.mxu0 0.0
  %3771 = vmatpush1.msra.mxu0 0.0
  %3772 = vmatprep.subr.mxu0 0.0
  %3773 = vmatpush1.msra.mxu0 0.0
  %3774 = vmatprep.subr.mxu0 0.0
  %3775 = vmatpush1.msra.mxu0 0.0
  %3776 = vmatprep.subr.mxu0 0.0
  %3777 = vmatpush1.msra.mxu0 0.0
  %3778 = vmatprep.subr.mxu0 0.0
  %3779 = vmatpush1.msra.mxu0 0.0
  %3780 = vmatprep.subr.mxu0 0.0
  %3781 = vmatpush1.msra.mxu0 0.0
  %3782 = vmatprep.subr.mxu0 0.0
  %3783 = vmatpush1.msra.mxu0 0.0
  %3784 = vmatprep.subr.mxu0 0.0
  %3785 = vmatpush1.msra.mxu0 0.0
  %3786 = vmatprep.subr.mxu0 0.0
  %3787 = vmatpush1.msra.mxu0 0.0
  %3788 = vmatprep.subr.mxu0 0.0
  %3789 = vmatpush1.msra.mxu0 0.0
  %3790 = vmatprep.subr.mxu0 0.0
  %3791 = vmatpush1.msra.mxu0 0.0
  %3792 = vmatprep.mubr.f32.mxu0 0.0
  %3793 = vmatmul.mubr.f32.gmra.mrb[0].mxu0 %v3727
  %v3794 = vpop.f32.mrb[0].mxu0
  %v3795 = vadd.f32 %v287, %v3794
  %v3796 = vpop.f32.mrb[0].mxu0
  %v3797 = vadd.f32 %v291, %v3796
  %3798 = vdwg.mxu0
  %v3799 = vmul.f32 %v3795, 0.5
  %v3800 = vmul.f32 %v3797, 0.5
  %v3801 = vsel %vm111, %v3795, %v3799
  %v3802 = vsel %vm112, %v3797, %v3800
  %v3803 = vtanh.pop %v3801
  %v3804 = vtanh.pop %v3802
  %v3805 = vmul.f32 %v3803, 0.5
  %v3806 = vmul.f32 %v3804, 0.5
  %v3807 = vadd.f32 %v3805, 0.5
  %v3808 = vadd.f32 %v3806, 0.5
  %v3809 = vsel %vm111, %v3803, %v3807
  %v3810 = vsel %vm112, %v3804, %v3808
  %v3811 = vmul.f32 %v3809, %v3591
  %v3812 = vmul.f32 %v3809, %v3810
  %3814 = vrot.lane.b32.xlu0 %v3812, 64
  %v3815 = vpop.permute.xlu0 %3814
  %v3817 = vadd.f32 %v3811, %v3815
  %v3818 = vtanh.pop %v3817
  %v3819 = vmul.f32 %v3810, %v3818
  %v3821 = vrot.slane %v2463, 6
  %v3824 = vrot.slane %v2689, 4
  %v3827 = vrot.slane %v2915, 2
  %v3830 = vrot.slane %v3367, 6
  %v3833 = vrot.slane %v3593, 4
  %v3836 = vrot.slane %v3819, 2
  %vm3838 = vcmask 1041408
  %v3839 = vsel %vm3838, %v2237, %v3821
  %vm3840 = vcmask 1043456
  %v3841 = vsel %vm3840, %v3839, %v3824
  %vm3842 = vcmask 1045504
  %v3843 = vsel %vm3842, %v3841, %v3827
  %v3844 = vsel %vm3838, %v3141, %v3830
  %v3845 = vsel %vm3840, %v3844, %v3833
  %v3846 = vsel %vm3842, %v3845, %v3836
  %v3848 = vlaneseq
  %v3849 = vshrl.u32 %v3848, 7
  %v3850 = vsub.s32 0, %v3849
  %v3851 = vrot.slane %v103, %v3850
  %3855 = vrot.lane.b32.xlu0 %v3843, 64
  %v3856 = vpop.permute.xlu0 %3855
  %3857 = vrot.lane.b32.xlu0 %v3846, 64
  %v3858 = vpop.permute.xlu0 %3857
  %v3859 = vsel %vm118, %v3856, 0
  %v3861 = vsel %vm118, %v3858, 0
  %3863 = vmatprep.subr.mxu0 0.0
  %3864 = vmatpush1.msra.mxu0 %v99
  %3865 = vmatprep.subr.mxu0 0.0
  %3866 = vmatpush1.msra.mxu0 %v100
  %3867 = vmatprep.subr.mxu0 0.0
  %3868 = vmatpush1.msra.mxu0 %v101
  %3869 = vmatprep.subr.mxu0 0.0
  %3870 = vmatpush1.msra.mxu0 %v102
  %3871 = vmatprep.subr.mxu0 0.0
  %3872 = vmatpush1.msra.mxu0 0.0
  %3873 = vmatprep.subr.mxu0 0.0
  %3874 = vmatpush1.msra.mxu0 0.0
  %3875 = vmatprep.subr.mxu0 0.0
  %3876 = vmatpush1.msra.mxu0 0.0
  %3877 = vmatprep.subr.mxu0 0.0
  %3878 = vmatpush1.msra.mxu0 0.0
  %3879 = vmatprep.subr.mxu0 0.0
  %3880 = vmatpush1.msra.mxu0 0.0
  %3881 = vmatprep.subr.mxu0 0.0
  %3882 = vmatpush1.msra.mxu0 0.0
  %3883 = vmatprep.subr.mxu0 0.0
  %3884 = vmatpush1.msra.mxu0 0.0
  %3885 = vmatprep.subr.mxu0 0.0
  %3886 = vmatpush1.msra.mxu0 0.0
  %3887 = vmatprep.subr.mxu0 0.0
  %3888 = vmatpush1.msra.mxu0 0.0
  %3889 = vmatprep.subr.mxu0 0.0
  %3890 = vmatpush1.msra.mxu0 0.0
  %3891 = vmatprep.subr.mxu0 0.0
  %3892 = vmatpush1.msra.mxu0 0.0
  %3893 = vmatprep.subr.mxu0 0.0
  %3894 = vmatpush1.msra.mxu0 0.0
  %3895 = vmatprep.subr.mxu0 0.0
  %3896 = vmatpush1.msra.mxu0 0.0
  %3897 = vmatprep.subr.mxu0 0.0
  %3898 = vmatpush1.msra.mxu0 0.0
  %3899 = vmatprep.subr.mxu0 0.0
  %3900 = vmatpush1.msra.mxu0 0.0
  %3901 = vmatprep.subr.mxu0 0.0
  %3902 = vmatpush1.msra.mxu0 0.0
  %3903 = vmatprep.subr.mxu0 0.0
  %3904 = vmatpush1.msra.mxu0 0.0
  %3905 = vmatprep.subr.mxu0 0.0
  %3906 = vmatpush1.msra.mxu0 0.0
  %3907 = vmatprep.subr.mxu0 0.0
  %3908 = vmatpush1.msra.mxu0 0.0
  %3909 = vmatprep.subr.mxu0 0.0
  %3910 = vmatpush1.msra.mxu0 0.0
  %3911 = vmatprep.subr.mxu0 0.0
  %3912 = vmatpush1.msra.mxu0 0.0
  %3913 = vmatprep.subr.mxu0 0.0
  %3914 = vmatpush1.msra.mxu0 0.0
  %3915 = vmatprep.subr.mxu0 0.0
  %3916 = vmatpush1.msra.mxu0 0.0
  %3917 = vmatprep.subr.mxu0 0.0
  %3918 = vmatpush1.msra.mxu0 0.0
  %3919 = vmatprep.subr.mxu0 0.0
  %3920 = vmatpush1.msra.mxu0 0.0
  %3921 = vmatprep.subr.mxu0 0.0
  %3922 = vmatpush1.msra.mxu0 0.0
  %3923 = vmatprep.subr.mxu0 0.0
  %3924 = vmatpush1.msra.mxu0 0.0
  %3925 = vmatprep.subr.mxu0 0.0
  %3926 = vmatpush1.msra.mxu0 0.0
  %3927 = vmatprep.mubr.f32.mxu0 0.0
  %3928 = vmatmul.mubr.f32.gmra.mrb[0].mxu0 %v3859
  %v3929 = vpop.f32.mrb[0].mxu0
  %v3930 = vadd.f32 %v3851, %v3929
  %v3931 = vpop.f32.mrb[0].mxu0
  %3932 = vmatprep.mubr.f32.mxu0 0.0
  %3933 = vmatmul.mubr.f32.gmra.mrb[0].mxu0 %v3861
  %v3934 = vpop.f32.mrb[0].mxu0
  %v3935 = vadd.f32 %v3851, %v3934
  %v3936 = vpop.f32.mrb[0].mxu0
  %3937 = vdwg.mxu0
  %v3940 = vsel %vm118, %v3930, %v3856
  %v3941 = vsel %vm118, %v3935, %v3858
  %3942 = vst.msk [vmem:[%s12] sm:$0xff] %vm141, %v3940
  %3943 = vst.msk [vmem:[%s12 + $0x8] sm:$0xff] %vm141, %v3941
  %v3945 = vlaneseq
  %v3946 = vshrl.u32 %v3945, 7
  %v3947 = vsub.s32 0, %v3946
  %v3948 = vrot.slane %v96, %v3947
  %3949 = vrot.lane.b32.xlu0 %v3948, 64
  %v3950 = vpop.permute.xlu0 %3949
  %v3952 = vmul.f32 %v3843, %v3950
  %v3953 = vmul.f32 %v3846, %v3950
  %3956 = vrot.lane.b32.xlu0 %v3952, 64
  %v3957 = vpop.permute.xlu0 %3956
  %3958 = vrot.lane.b32.xlu0 %v3953, 64
  %v3959 = vpop.permute.xlu0 %3958
  %v3962 = vsel %vm118, %v3957, 0.0
  %3963 = vadd.xlane.f32.xlu0 %v3962
  %v3964 = vpop.xlane.xlu0 %3963
  %v3965 = vsel %vm118, %v3959, 0.0
  %3966 = vadd.xlane.f32.xlu0 %v3965
  %v3967 = vpop.xlane.xlu0 %3966
  %v3969 = vlaneseq
  %v3970 = vshrl.u32 %v3969, 7
  %v3971 = vsub.s32 0, %v3970
  %v3972 = vrot.slane %v97, %v3971
  %v3974 = vadd.f32 %v3964, %v3972
  %v3975 = vadd.f32 %v3967, %v3972
  %3976 = vrot.lane.b32.xlu0 %v3952, 32
  %v3977 = vpop.permute.xlu0 %3976
  %3978 = vrot.lane.b32.xlu0 %v3953, 32
  %v3979 = vpop.permute.xlu0 %3978
  %v3982 = vsel %vm118, %v3977, 0.0
  %3983 = vadd.xlane.f32.xlu0 %v3982
  %v3984 = vpop.xlane.xlu0 %3983
  %v3985 = vsel %vm118, %v3979, 0.0
  %3986 = vadd.xlane.f32.xlu0 %v3985
  %v3987 = vpop.xlane.xlu0 %3986
  %v3989 = vlaneseq
  %v3990 = vshrl.u32 %v3989, 7
  %v3991 = vsub.s32 0, %v3990
  %v3992 = vrot.slane %v98, %v3991
  %v3994 = vadd.f32 %v3984, %v3992
  %v3995 = vadd.f32 %v3987, %v3992
  %3998 = vrot.lane.b32.xlu0 %v3994, 1
  %v3999 = vpop.permute.xlu0 %3998
  %4000 = vrot.lane.b32.xlu0 %v3995, 1
  %v4001 = vpop.permute.xlu0 %4000
  %vm4004 = vcmask 7168
  %v4005 = vsel %vm4004, %v3974, %v3999
  %v4006 = vsel %vm4004, %v3975, %v4001
  %v4007 = vxor.u32 %v4005, 2147483648
  %v4008 = vxor.u32 %v4006, 2147483648
  %v4009 = vmul.f32 %v4007, 1.442695
  %v4010 = vpow.pop %v4009
  %v4011 = vmul.f32 %v4008, 1.442695
  %v4012 = vpow.pop %v4011
  %v4013 = vadd.f32 %v4010, 1.0
  %v4014 = vadd.f32 %v4012, 1.0
  %v4015 = vrcp.pop %v4013
  %v4016 = vmul.f32 1.0, %v4015
  %v4017 = vrcp.pop %v4014
  %v4018 = vmul.f32 1.0, %v4017
  %vm4019 = vcmask 15360
  %4020 = vst.msk [vmem:[%s13] sm:$0xff] %vm4019, %v4016
  %4021 = vst.msk [vmem:[%s13 + $0x8] sm:$0xff] %vm4019, %v4018
  // Predicated region
  $region50: #{model_forward_impl.1} parent=0 // pred_check
    _
  $region51: #{model_forward_impl.1} parent=0 // pred_check_branch
    %4023 = sbr.rel (0) target = $region53
  $region52: #{model_forward_impl.1} parent=0 // pred_region
    _
  $region53: #{model_forward_impl.1} parent=0 // pred_fallthru
    _
  // Predicated region
  $region54: #{model_forward_impl.1} parent=0 // pred_check
    _
  $region55: #{model_forward_impl.1} parent=0 // pred_check_branch
    %4025 = sbr.rel (0) target = $region57
  $region56: #{model_forward_impl.1} parent=0 // pred_region
    _
  $region57: #{model_forward_impl.1} parent=0 // pred_fallthru
    _
  // Predicated region
  $region58: #{model_forward_impl.1} parent=0 // pred_check
    _
  $region59: #{model_forward_impl.1} parent=0 // pred_check_branch
    %4027 = sbr.rel (0) target = $region61
  $region60: #{model_forward_impl.1} parent=0 // pred_region
    _
  $region61: #{model_forward_impl.1} parent=0 // pred_fallthru
    _
  // Predicated region
  $region62: #{model_forward_impl.1} parent=0 // pred_check
    _
  $region63: #{model_forward_impl.1} parent=0 // pred_check_branch
    %4029 = sbr.rel (0) target = $region65
  $region64: #{model_forward_impl.1} parent=0 // pred_region
    _
  $region65: #{model_forward_impl.1} parent=0 // pred_fallthru
    _

</llo_original>
